<compile_context>
chip_gen: v7x
topology: tpu7x:2x2x1
jax: 0.10.0
libtpu: 0.0.40
codegen_flags: <defaults>
</compile_context>

<pallas_src>
import jax
import jax.numpy as jnp
from jax.experimental import pallas as pl
from jax.experimental.pallas import tpu as pltpu

# ----------------- synthetic CaduceusConfig (small shapes) -----------------
D_MODEL = 32
N_LAYER = 2
VOCAB_SIZE = 16
D_STATE = 16
D_CONV = 4
EXPAND = 2
D_INNER = EXPAND * D_MODEL           # 64
DT_RANK = (D_MODEL + 15) // 16       # "auto" -> 2
NORM_EPS = 1e-5
RCPS = False                         # config.rcps
CONJOIN_TRAIN = False
CONJOIN_TEST = False
TRAINING = False                     # eval mode -> dropout is identity

_PAD = D_CONV - 1
_WEIGHT_KEYS = ("norm_w", "in_proj_w", "conv_w", "conv_b", "x_proj_w",
                "dt_proj_w", "dt_proj_b", "A_log", "D", "out_proj_w",
                "norm_f_w")


# ----------------------------- kernel helpers -------------------------------
def _rmsnorm(x, w):
    var = jnp.mean(x * x, axis=-1, keepdims=True)
    return x * jax.lax.rsqrt(var + NORM_EPS) * w


def _ssm_direction(xpad_ref, z, conv_w, conv_b, xproj_w, dt_w, dt_b, a_log,
                   d_skip, row_idx, reverse):
    """One Mamba selective-SSM direction on (L, D_INNER) pre-activations.

    Everything runs in original time order: the reverse direction is an
    anti-causal conv (reads forward in time) plus a backward scan, which is
    exactly equivalent to flip -> causal mixer -> flip, so no data reversal
    copies are needed.

    xpad_ref holds [zeros(_PAD); xc; zeros(_PAD)] (rows), so shifted conv
    taps are plain static slices.
    """
    L = z.shape[0]

    # --- depthwise causal / anti-causal conv via static shifted slices -----
    acc = conv_b                                            # (1, d_inner)
    for k in range(D_CONV):
        off = (2 * _PAD - k) if reverse else k
        acc = acc + xpad_ref[off:off + L, :] * conv_w[k:k + 1, :]
    u = acc * jax.nn.sigmoid(acc)                           # SiLU, (L, d_inner)

    # --- x_proj -> dt, B, C -------------------------------------------------
    x_dbl = jnp.dot(u, xproj_w, preferred_element_type=jnp.float32)
    dt = x_dbl[:, :DT_RANK]                                 # (L, dt_rank)
    Bm_t = x_dbl[:, DT_RANK:DT_RANK + D_STATE].T            # (d_state, L)
    Cm_t = x_dbl[:, DT_RANK + D_STATE:].T                   # (d_state, L)
    dt = jnp.dot(dt, dt_w, preferred_element_type=jnp.float32) + dt_b
    dt = jax.nn.softplus(dt)                                # (L, d_inner)

    A = -jnp.exp(a_log)                                     # (d_state, d_inner)

    # --- selective scan (unrolled over small static L); reverse = backward.
    # y rows stay in vregs (masked selects), no per-row scratch stores.
    # TODO(synk): for realistic Caduceus lengths (L >= 1k) tile L on a grid
    # axis and carry the (d_state, d_inner) state in VMEM scratch instead of
    # unrolling (also needed to fit v7x's 64 MiB VMEM).
    h = jnp.zeros((D_STATE, D_INNER), jnp.float32)
    y = jnp.zeros((L, D_INNER), jnp.float32)
    order = range(L - 1, -1, -1) if reverse else range(L)
    for t in order:
        dt_t = dt[t:t + 1, :]                               # (1, d_inner)
        u_t = u[t:t + 1, :]                                 # (1, d_inner)
        b_t = Bm_t[:, t:t + 1]                              # (d_state, 1)
        c_t = Cm_t[:, t:t + 1]                              # (d_state, 1)
        h = jnp.exp(dt_t * A) * h + (dt_t * u_t) * b_t      # (d_state, d_inner)
        y_t = jnp.sum(c_t * h, axis=0, keepdims=True) + d_skip * u_t  # VPU+XLU
        y = jnp.where(row_idx == t, y_t, y)
    # gate with SiLU(z); z is valid in original time order for both dirs
    return y * (z * jax.nn.sigmoid(z))


def _caduceus_backbone_kernel(x_ref, norm_w_ref, in_w_ref, conv_w_ref,
                              conv_b_ref, xproj_w_ref, dt_w_ref, dt_b_ref,
                              a_log_ref, d_ref, out_w_ref, norm_f_w_ref,
                              out_ref, xpad_ref):
    """Whole Caduceus backbone (minus embedding gather) for one batch element:
    n_layer x [add+RMSNorm -> tied in_proj -> fwd & rev SSM -> tied out_proj]
    -> final add+RMSNorm."""
    L = x_ref.shape[1]
    row_idx = jax.lax.broadcasted_iota(jnp.int32, (L, D_INNER), 0)  # hoisted

    # Zero the conv padding buffer once; pad rows are never overwritten.
    xpad_ref[...] = jnp.zeros_like(xpad_ref)

    hidden = x_ref[0].astype(jnp.float32)                   # (L, D)
    residual = jnp.zeros_like(hidden)                       # residual in fp32

    for layer in range(N_LAYER):
        residual = hidden + residual
        normed = _rmsnorm(residual, norm_w_ref[layer])      # (L, D)

        # tied in_proj (bidirectional_weight_tie=True): computed once and
        # shared by both directions (flip-then-linear == linear-then-flip).
        xz = jnp.dot(normed, in_w_ref[layer],
                     preferred_element_type=jnp.float32)    # (L, 2*d_inner)
        z = xz[:, D_INNER:]
        xpad_ref[_PAD:_PAD + L, :] = xz[:, :D_INNER]        # xc into padded buf

        gated = jnp.zeros((L, D_INNER), jnp.float32)
        for dirn in range(2):                               # 0 = fwd, 1 = rev
            gated = gated + _ssm_direction(
                xpad_ref, z,
                conv_w_ref[layer, dirn], conv_b_ref[layer, dirn],
                xproj_w_ref[layer, dirn], dt_w_ref[layer, dirn],
                dt_b_ref[layer, dirn], a_log_ref[layer, dirn],
                d_ref[layer, dirn], row_idx, reverse=(dirn == 1))

        # tied out_proj applied once to (gated_fwd + gated_rev)
        hidden = jnp.dot(gated, out_w_ref[layer],
                         preferred_element_type=jnp.float32)        # (L, D)

    residual = hidden + residual
    out_ref[0] = _rmsnorm(residual, norm_f_w_ref[...]).astype(out_ref.dtype)


# ------------------------------ kernel wrapper -------------------------------
def _full_spec(shape):
    n = len(shape)
    return pl.BlockSpec(shape, lambda b: (0,) * n)


def caduceus_forward(params, input_ids):
    """Caduceus backbone: embedding gather (XLA glue) + one fused Pallas call."""
    B, L = input_ids.shape
    hidden = params["embedding"][input_ids].astype(jnp.float32)     # (B, L, D)
    io_spec = pl.BlockSpec((1, L, D_MODEL), lambda b: (b, 0, 0))
    weights = [params[k] for k in _WEIGHT_KEYS]
    return pl.pallas_call(
        _caduceus_backbone_kernel,
        out_shape=jax.ShapeDtypeStruct((B, L, D_MODEL), jnp.float32),
        grid=(B,),
        in_specs=[io_spec] + [_full_spec(w.shape) for w in weights],
        out_specs=io_spec,
        scratch_shapes=[pltpu.VMEM((L + 2 * _PAD, D_INNER), jnp.float32)],
        compiler_params=pltpu.CompilerParams(
            dimension_semantics=("parallel",)),   # batch -> both TCs on v7x
    )(hidden, *weights)


def dna_embedding_caduceus_forward(params, input_ids):
    """DNAEmbeddingModelCaduceus.forward (returns (hidden_states, None))."""
    if RCPS:
        # TODO(synk): rcps=True branch (split channels + flip(dims=[1,2]) stack)
        # needs the RCPS-equivariant Caduceus backbone; not implemented here.
        raise NotImplementedError
    if CONJOIN_TRAIN or (CONJOIN_TEST and not TRAINING):
        assert input_ids.ndim == 3
        h_fwd = caduceus_forward(params, input_ids[..., 0])
        h_rc = caduceus_forward(params, input_ids[..., 1])
        return jnp.stack([h_fwd, h_rc], axis=-1), None
    return caduceus_forward(params, input_ids), None


# ------------------------------ parameter init ------------------------------
def _dense(key, shape, scale=0.02):
    return (scale * jax.random.normal(key, shape)).astype(jnp.float32)


def init_params(key):
    # Per-layer weights stacked on a leading layer axis; per-direction weights
    # additionally stacked on axis 1 (0 = fwd, 1 = rev).  bidirectional_weight_tie
    # => a single in_proj / out_proj per layer shared by both directions.
    # TODO(synk): bf16 weight storage (v6e/v7x DMA/MXU win) left in f32 here to
    # keep exact parity with the f32 reference math.
    ks = jax.random.split(key, 7)
    a_log = jnp.log(jnp.tile(
        jnp.arange(1, D_STATE + 1, dtype=jnp.float32)[None, None, :, None],
        (N_LAYER, 2, 1, D_INNER)))                       # S4D-real, state-major
    return {
        "embedding": _dense(ks[0], (VOCAB_SIZE, D_MODEL)),
        "norm_w": jnp.ones((N_LAYER, 1, D_MODEL), jnp.float32),
        "norm_f_w": jnp.ones((1, D_MODEL), jnp.float32),
        "in_proj_w": _dense(ks[1], (N_LAYER, D_MODEL, 2 * D_INNER)),
        "out_proj_w": _dense(ks[2], (N_LAYER, D_INNER, D_MODEL)),
        "conv_w": _dense(ks[3], (N_LAYER, 2, D_CONV, D_INNER), 0.2),
        "conv_b": jnp.zeros((N_LAYER, 2, 1, D_INNER), jnp.float32),
        "x_proj_w": _dense(ks[4], (N_LAYER, 2, D_INNER, DT_RANK + 2 * D_STATE)),
        "dt_proj_w": _dense(ks[5], (N_LAYER, 2, DT_RANK, D_INNER), 0.5),
        "dt_proj_b": _dense(ks[6], (N_LAYER, 2, 1, D_INNER), 0.1),
        "A_log": a_log,
        "D": jnp.ones((N_LAYER, 2, 1, D_INNER), jnp.float32),
    }


# ----------------------------------- main ------------------------------------
if __name__ == "__main__":
    key = jax.random.PRNGKey(0)
    pkey, dkey = jax.random.split(key)
    params = init_params(pkey)

    B, L = 2, 8
    input_ids = jax.random.randint(dkey, (B, L), 0, VOCAB_SIZE, dtype=jnp.int32)

    fwd = jax.jit(dna_embedding_caduceus_forward)
    hidden_states, _ = fwd(params, input_ids)
    hidden_states = jax.block_until_ready(hidden_states)

    assert hidden_states.shape == (B, L, D_MODEL), hidden_states.shape
    assert hidden_states.dtype == jnp.float32
    assert bool(jnp.all(jnp.isfinite(hidden_states)))
    print("KERNEL_OK")
</pallas_src>

<mosaic_0001>
module attributes {stable_mosaic.version = 11 : i64} {
  func.func @_caduceus_backbone_kernel(%arg0: i32, %arg1: memref<1x8x32xf32, #tpu.memory_space<vmem>>, %arg2: memref<2x1x32xf32, #tpu.memory_space<vmem>>, %arg3: memref<2x32x128xf32, #tpu.memory_space<vmem>>, %arg4: memref<2x2x4x64xf32, #tpu.memory_space<vmem>>, %arg5: memref<2x2x1x64xf32, #tpu.memory_space<vmem>>, %arg6: memref<2x2x64x34xf32, #tpu.memory_space<vmem>>, %arg7: memref<2x2x2x64xf32, #tpu.memory_space<vmem>>, %arg8: memref<2x2x1x64xf32, #tpu.memory_space<vmem>>, %arg9: memref<2x2x16x64xf32, #tpu.memory_space<vmem>>, %arg10: memref<2x2x1x64xf32, #tpu.memory_space<vmem>>, %arg11: memref<2x64x32xf32, #tpu.memory_space<vmem>>, %arg12: memref<1x32xf32, #tpu.memory_space<vmem>>, %arg13: memref<1x8x32xf32, #tpu.memory_space<vmem>>, %arg14: memref<14x64xf32, #tpu.memory_space<vmem>>) attributes {dimension_semantics = [#tpu.dimension_semantics<parallel>], iteration_bounds = array<i64: 2>, scalar_prefetch = 0 : i64, scratch_operands = 1 : i64, tpu.core_type = #tpu.core_type<tc>, window_params = [{transform_indices = @transform_0, window_bounds = array<i64: 1, 8, 32>}, {pipeline_mode = #tpu.pipeline_mode<synchronous>, transform_indices = @transform_1, window_bounds = array<i64: 2, 1, 32>}, {pipeline_mode = #tpu.pipeline_mode<synchronous>, transform_indices = @transform_2, window_bounds = array<i64: 2, 32, 128>}, {pipeline_mode = #tpu.pipeline_mode<synchronous>, transform_indices = @transform_3, window_bounds = array<i64: 2, 2, 4, 64>}, {pipeline_mode = #tpu.pipeline_mode<synchronous>, transform_indices = @transform_4, window_bounds = array<i64: 2, 2, 1, 64>}, {pipeline_mode = #tpu.pipeline_mode<synchronous>, transform_indices = @transform_5, window_bounds = array<i64: 2, 2, 64, 34>}, {pipeline_mode = #tpu.pipeline_mode<synchronous>, transform_indices = @transform_6, window_bounds = array<i64: 2, 2, 2, 64>}, {pipeline_mode = #tpu.pipeline_mode<synchronous>, transform_indices = @transform_7, window_bounds = array<i64: 2, 2, 1, 64>}, {pipeline_mode = #tpu.pipeline_mode<synchronous>, transform_indices = @transform_8, window_bounds = array<i64: 2, 2, 16, 64>}, {pipeline_mode = #tpu.pipeline_mode<synchronous>, transform_indices = @transform_9, window_bounds = array<i64: 2, 2, 1, 64>}, {pipeline_mode = #tpu.pipeline_mode<synchronous>, transform_indices = @transform_10, window_bounds = array<i64: 2, 64, 32>}, {pipeline_mode = #tpu.pipeline_mode<synchronous>, transform_indices = @transform_11, window_bounds = array<i64: 1, 32>}, {transform_indices = @transform_12, window_bounds = array<i64: 1, 8, 32>}]} {
    %0 = tpu.iota {dimensions = array<i32: 0>} : vector<8x64xi32>
    %cst = arith.constant 0.000000e+00 : f32
    %1 = vector.broadcast %cst : f32 to vector<14x64xf32>
    %c0 = arith.constant 0 : index
    %c0_0 = arith.constant 0 : index
    %2 = vector.load %arg14[%c0, %c0_0] : memref<14x64xf32, #tpu.memory_space<vmem>>, vector<14x64xf32>
    tpu.vector_store %arg14[%c0, %c0_0], %1 {strides = array<i32>} : memref<14x64xf32, #tpu.memory_space<vmem>>, vector<14x64xf32>,
    %c0_1 = arith.constant 0 : index
    %c0_2 = arith.constant 0 : index
    %c0_3 = arith.constant 0 : index
    %3 = vector.load %arg1[%c0_1, %c0_2, %c0_3] : memref<1x8x32xf32, #tpu.memory_space<vmem>>, vector<1x8x32xf32>
    %4 = vector.shape_cast %3 : vector<1x8x32xf32> to vector<8x32xf32>
    %cst_4 = arith.constant 0.000000e+00 : f32
    %5 = vector.broadcast %cst_4 : f32 to vector<8x32xf32>
    %6 = arith.addf %4, %5 : vector<8x32xf32>
    %c0_5 = arith.constant 0 : index
    %c0_6 = arith.constant 0 : index
    %c0_7 = arith.constant 0 : index
    %7 = vector.load %arg2[%c0_5, %c0_6, %c0_7] : memref<2x1x32xf32, #tpu.memory_space<vmem>>, vector<1x1x32xf32>
    %8 = vector.shape_cast %7 : vector<1x1x32xf32> to vector<1x32xf32>
    %9 = arith.mulf %6, %6 : vector<8x32xf32>
    %cst_8 = arith.constant dense<0.000000e+00> : vector<8xf32>
    %10 = vector.multi_reduction <add>, %9, %cst_8 [1] : vector<8x32xf32> to vector<8xf32>
    %11 = vector.shape_cast %10 : vector<8xf32> to vector<8x1xf32>
    %cst_9 = arith.constant 3.200000e+01 : f32
    %12 = vector.broadcast %cst_9 : f32 to vector<8x1xf32>
    %13 = arith.divf %11, %12 : vector<8x1xf32>
    %cst_10 = arith.constant 9.99999974E-6 : f32
    %14 = vector.broadcast %cst_10 : f32 to vector<8x1xf32>
    %15 = arith.addf %13, %14 : vector<8x1xf32>
    %16 = math.rsqrt %15 : vector<8x1xf32>
    %17 = vector.broadcast %16 : vector<8x1xf32> to vector<8x32xf32>
    %18 = arith.mulf %6, %17 : vector<8x32xf32>
    %19 = vector.broadcast %8 : vector<1x32xf32> to vector<8x32xf32>
    %20 = arith.mulf %18, %19 : vector<8x32xf32>
    %c0_11 = arith.constant 0 : index
    %c0_12 = arith.constant 0 : index
    %c0_13 = arith.constant 0 : index
    %21 = vector.load %arg3[%c0_11, %c0_12, %c0_13] : memref<2x32x128xf32, #tpu.memory_space<vmem>>, vector<1x32x128xf32>
    %22 = vector.shape_cast %21 : vector<1x32x128xf32> to vector<32x128xf32>
    %cst_14 = arith.constant dense<0.000000e+00> : vector<8x128xf32>
    %23 = tpu.matmul %20, %22, %cst_14 {dimension_numbers = #tpu.dot_dimension_numbers<[1], [0], [0], [1], [0, 0, 1, 1], [], []>} : vector<8x32xf32>, vector<32x128xf32>, vector<8x128xf32> -> vector<8x128xf32>
    %24 = vector.extract_strided_slice %23 {offsets = [0, 64], sizes = [8, 64], strides = [1, 1]} : vector<8x128xf32> to vector<8x64xf32>
    %25 = vector.extract_strided_slice %23 {offsets = [0, 0], sizes = [8, 64], strides = [1, 1]} : vector<8x128xf32> to vector<8x64xf32>
    %c3 = arith.constant 3 : index
    %c0_15 = arith.constant 0 : index
    %26 = vector.load %arg14[%c3, %c0_15] : memref<14x64xf32, #tpu.memory_space<vmem>>, vector<8x64xf32>
    tpu.vector_store %arg14[%c3, %c0_15], %25 {strides = array<i32>} : memref<14x64xf32, #tpu.memory_space<vmem>>, vector<8x64xf32>,
    %cst_16 = arith.constant 0.000000e+00 : f32
    %27 = vector.broadcast %cst_16 : f32 to vector<8x64xf32>
    %c0_17 = arith.constant 0 : index
    %c0_18 = arith.constant 0 : index
    %c0_19 = arith.constant 0 : index
    %c0_20 = arith.constant 0 : index
    %28 = vector.load %arg4[%c0_17, %c0_18, %c0_19, %c0_20] : memref<2x2x4x64xf32, #tpu.memory_space<vmem>>, vector<1x1x4x64xf32>
    %29 = vector.shape_cast %28 : vector<1x1x4x64xf32> to vector<4x64xf32>
    %c0_21 = arith.constant 0 : index
    %c0_22 = arith.constant 0 : index
    %c0_23 = arith.constant 0 : index
    %c0_24 = arith.constant 0 : index
    %30 = vector.load %arg5[%c0_21, %c0_22, %c0_23, %c0_24] : memref<2x2x1x64xf32, #tpu.memory_space<vmem>>, vector<1x1x1x64xf32>
    %31 = vector.shape_cast %30 : vector<1x1x1x64xf32> to vector<1x64xf32>
    %c0_25 = arith.constant 0 : index
    %c0_26 = arith.constant 0 : index
    %c0_27 = arith.constant 0 : index
    %c0_28 = arith.constant 0 : index
    %32 = vector.load %arg6[%c0_25, %c0_26, %c0_27, %c0_28] : memref<2x2x64x34xf32, #tpu.memory_space<vmem>>, vector<1x1x64x34xf32>
    %33 = vector.shape_cast %32 : vector<1x1x64x34xf32> to vector<64x34xf32>
    %c0_29 = arith.constant 0 : index
    %c0_30 = arith.constant 0 : index
    %c0_31 = arith.constant 0 : index
    %c0_32 = arith.constant 0 : index
    %34 = vector.load %arg7[%c0_29, %c0_30, %c0_31, %c0_32] : memref<2x2x2x64xf32, #tpu.memory_space<vmem>>, vector<1x1x2x64xf32>
    %35 = vector.shape_cast %34 : vector<1x1x2x64xf32> to vector<2x64xf32>
    %c0_33 = arith.constant 0 : index
    %c0_34 = arith.constant 0 : index
    %c0_35 = arith.constant 0 : index
    %c0_36 = arith.constant 0 : index
    %36 = vector.load %arg8[%c0_33, %c0_34, %c0_35, %c0_36] : memref<2x2x1x64xf32, #tpu.memory_space<vmem>>, vector<1x1x1x64xf32>
    %37 = vector.shape_cast %36 : vector<1x1x1x64xf32> to vector<1x64xf32>
    %c0_37 = arith.constant 0 : index
    %c0_38 = arith.constant 0 : index
    %c0_39 = arith.constant 0 : index
    %c0_40 = arith.constant 0 : index
    %38 = vector.load %arg9[%c0_37, %c0_38, %c0_39, %c0_40] : memref<2x2x16x64xf32, #tpu.memory_space<vmem>>, vector<1x1x16x64xf32>
    %39 = vector.shape_cast %38 : vector<1x1x16x64xf32> to vector<16x64xf32>
    %c0_41 = arith.constant 0 : index
    %c0_42 = arith.constant 0 : index
    %c0_43 = arith.constant 0 : index
    %c0_44 = arith.constant 0 : index
    %40 = vector.load %arg10[%c0_41, %c0_42, %c0_43, %c0_44] : memref<2x2x1x64xf32, #tpu.memory_space<vmem>>, vector<1x1x1x64xf32>
    %41 = vector.shape_cast %40 : vector<1x1x1x64xf32> to vector<1x64xf32>
    %c0_45 = arith.constant 0 : index
    %c0_46 = arith.constant 0 : index
    %42 = vector.load %arg14[%c0_45, %c0_46] : memref<14x64xf32, #tpu.memory_space<vmem>>, vector<8x64xf32>
    %43 = vector.extract_strided_slice %29 {offsets = [0, 0], sizes = [1, 64], strides = [1, 1]} : vector<4x64xf32> to vector<1x64xf32>
    %44 = vector.broadcast %43 : vector<1x64xf32> to vector<8x64xf32>
    %45 = arith.mulf %42, %44 : vector<8x64xf32>
    %46 = vector.broadcast %31 : vector<1x64xf32> to vector<8x64xf32>
    %47 = arith.addf %46, %45 : vector<8x64xf32>
    %c1 = arith.constant 1 : index
    %c0_47 = arith.constant 0 : index
    %48 = vector.load %arg14[%c1, %c0_47] : memref<14x64xf32, #tpu.memory_space<vmem>>, vector<8x64xf32>
    %49 = vector.extract_strided_slice %29 {offsets = [1, 0], sizes = [1, 64], strides = [1, 1]} : vector<4x64xf32> to vector<1x64xf32>
    %50 = vector.broadcast %49 : vector<1x64xf32> to vector<8x64xf32>
    %51 = arith.mulf %48, %50 : vector<8x64xf32>
    %52 = arith.addf %47, %51 : vector<8x64xf32>
    %c2 = arith.constant 2 : index
    %c0_48 = arith.constant 0 : index
    %53 = vector.load %arg14[%c2, %c0_48] : memref<14x64xf32, #tpu.memory_space<vmem>>, vector<8x64xf32>
    %54 = vector.extract_strided_slice %29 {offsets = [2, 0], sizes = [1, 64], strides = [1, 1]} : vector<4x64xf32> to vector<1x64xf32>
    %55 = vector.broadcast %54 : vector<1x64xf32> to vector<8x64xf32>
    %56 = arith.mulf %53, %55 : vector<8x64xf32>
    %57 = arith.addf %52, %56 : vector<8x64xf32>
    %c3_49 = arith.constant 3 : index
    %c0_50 = arith.constant 0 : index
    %58 = vector.load %arg14[%c3_49, %c0_50] : memref<14x64xf32, #tpu.memory_space<vmem>>, vector<8x64xf32>
    %59 = vector.extract_strided_slice %29 {offsets = [3, 0], sizes = [1, 64], strides = [1, 1]} : vector<4x64xf32> to vector<1x64xf32>
    %60 = vector.broadcast %59 : vector<1x64xf32> to vector<8x64xf32>
    %61 = arith.mulf %58, %60 : vector<8x64xf32>
    %62 = arith.addf %57, %61 : vector<8x64xf32>
    %63 = arith.negf %62 : vector<8x64xf32>
    %64 = math.exp %63 : vector<8x64xf32>
    %cst_51 = arith.constant 1.000000e+00 : f32
    %65 = vector.broadcast %cst_51 : f32 to vector<8x64xf32>
    %66 = arith.addf %65, %64 : vector<8x64xf32>
    %67 = arith.divf %65, %66 : vector<8x64xf32>
    %68 = arith.mulf %62, %67 : vector<8x64xf32>
    %cst_52 = arith.constant dense<0.000000e+00> : vector<8x34xf32>
    %69 = tpu.matmul %68, %33, %cst_52 {dimension_numbers = #tpu.dot_dimension_numbers<[1], [0], [0], [1], [0, 0, 1, 1], [], []>} : vector<8x64xf32>, vector<64x34xf32>, vector<8x34xf32> -> vector<8x34xf32>
    %70 = vector.extract_strided_slice %69 {offsets = [0, 0], sizes = [8, 2], strides = [1, 1]} : vector<8x34xf32> to vector<8x2xf32>
    %71 = vector.extract_strided_slice %69 {offsets = [0, 2], sizes = [8, 16], strides = [1, 1]} : vector<8x34xf32> to vector<8x16xf32>
    %72 = tpu.transpose %71, [1, 0] : vector<8x16xf32> -> vector<16x8xf32>
    %73 = vector.extract_strided_slice %69 {offsets = [0, 18], sizes = [8, 16], strides = [1, 1]} : vector<8x34xf32> to vector<8x16xf32>
    %74 = tpu.transpose %73, [1, 0] : vector<8x16xf32> -> vector<16x8xf32>
    %cst_53 = arith.constant dense<0.000000e+00> : vector<8x64xf32>
    %75 = tpu.matmul %70, %35, %cst_53 {dimension_numbers = #tpu.dot_dimension_numbers<[1], [0], [0], [1], [0, 0, 1, 1], [], []>} : vector<8x2xf32>, vector<2x64xf32>, vector<8x64xf32> -> vector<8x64xf32>
    %76 = vector.broadcast %37 : vector<1x64xf32> to vector<8x64xf32>
    %77 = arith.addf %75, %76 : vector<8x64xf32>
    %cst_54 = arith.constant 0.000000e+00 : f32
    %78 = vector.broadcast %cst_54 : f32 to vector<8x64xf32>
    %79 = arith.maximumf %77, %78 : vector<8x64xf32>
    %80 = vector.broadcast %cst_54 : f32 to vector<8x64xf32>
    %81 = arith.subf %77, %80 : vector<8x64xf32>
    %82 = arith.cmpf one, %81, %81 : vector<8x64xf32>
    %83 = vector.broadcast %cst_54 : f32 to vector<8x64xf32>
    %84 = arith.addf %77, %83 : vector<8x64xf32>
    %85 = math.absf %81 : vector<8x64xf32>
    %cst_55 = arith.constant 0.000000e+00 : f32
    %86 = vector.broadcast %cst_55 : f32 to vector<8x64xf32>
    %87 = arith.subf %86, %85 : vector<8x64xf32>
    %88 = math.exp %87 : vector<8x64xf32>
    %89 = math.log1p %88 : vector<8x64xf32>
    %90 = arith.addf %79, %89 : vector<8x64xf32>
    %91 = arith.select %82, %84, %90 : vector<8x64xi1>, vector<8x64xf32>
    %92 = math.exp %39 : vector<16x64xf32>
    %cst_56 = arith.constant 0.000000e+00 : f32
    %93 = vector.broadcast %cst_56 : f32 to vector<16x64xf32>
    %94 = arith.subf %93, %92 : vector<16x64xf32>
    %cst_57 = arith.constant 0.000000e+00 : f32
    %95 = vector.broadcast %cst_57 : f32 to vector<16x64xf32>
    %cst_58 = arith.constant 0.000000e+00 : f32
    %96 = vector.broadcast %cst_58 : f32 to vector<8x64xf32>
    %97 = vector.extract_strided_slice %91 {offsets = [0, 0], sizes = [1, 64], strides = [1, 1]} : vector<8x64xf32> to vector<1x64xf32>
    %98 = vector.extract_strided_slice %68 {offsets = [0, 0], sizes = [1, 64], strides = [1, 1]} : vector<8x64xf32> to vector<1x64xf32>
    %99 = vector.extract_strided_slice %72 {offsets = [0, 0], sizes = [16, 1], strides = [1, 1]} : vector<16x8xf32> to vector<16x1xf32>
    %100 = vector.extract_strided_slice %74 {offsets = [0, 0], sizes = [16, 1], strides = [1, 1]} : vector<16x8xf32> to vector<16x1xf32>
    %101 = vector.broadcast %97 : vector<1x64xf32> to vector<16x64xf32>
    %102 = arith.mulf %101, %94 : vector<16x64xf32>
    %103 = math.exp %102 : vector<16x64xf32>
    %104 = arith.mulf %103, %95 : vector<16x64xf32>
    %105 = arith.mulf %97, %98 : vector<1x64xf32>
    %106 = vector.broadcast %105 : vector<1x64xf32> to vector<16x64xf32>
    %107 = vector.broadcast %99 : vector<16x1xf32> to vector<16x64xf32>
    %108 = arith.mulf %106, %107 : vector<16x64xf32>
    %109 = arith.addf %104, %108 : vector<16x64xf32>
    %110 = vector.broadcast %100 : vector<16x1xf32> to vector<16x64xf32>
    %111 = arith.mulf %110, %109 : vector<16x64xf32>
    %cst_59 = arith.constant dense<0.000000e+00> : vector<64xf32>
    %112 = vector.multi_reduction <add>, %111, %cst_59 [0] : vector<16x64xf32> to vector<64xf32>
    %113 = vector.shape_cast %112 : vector<64xf32> to vector<1x64xf32>
    %114 = arith.mulf %41, %98 : vector<1x64xf32>
    %115 = arith.addf %113, %114 : vector<1x64xf32>
    %c0_i32 = arith.constant 0 : i32
    %116 = vector.broadcast %c0_i32 : i32 to vector<8x64xi32>
    %117 = arith.cmpi eq, %0, %116 : vector<8x64xi32>
    %118 = vector.shape_cast %115 : vector<1x64xf32> to vector<1x64xf32>
    %119 = vector.broadcast %118 : vector<1x64xf32> to vector<8x64xf32>
    %120 = arith.select %117, %119, %96 : vector<8x64xi1>, vector<8x64xf32>
    %121 = vector.extract_strided_slice %91 {offsets = [1, 0], sizes = [1, 64], strides = [1, 1]} : vector<8x64xf32> to vector<1x64xf32>
    %122 = vector.extract_strided_slice %68 {offsets = [1, 0], sizes = [1, 64], strides = [1, 1]} : vector<8x64xf32> to vector<1x64xf32>
    %123 = vector.extract_strided_slice %72 {offsets = [0, 1], sizes = [16, 1], strides = [1, 1]} : vector<16x8xf32> to vector<16x1xf32>
    %124 = vector.extract_strided_slice %74 {offsets = [0, 1], sizes = [16, 1], strides = [1, 1]} : vector<16x8xf32> to vector<16x1xf32>
    %125 = vector.broadcast %121 : vector<1x64xf32> to vector<16x64xf32>
    %126 = arith.mulf %125, %94 : vector<16x64xf32>
    %127 = math.exp %126 : vector<16x64xf32>
    %128 = arith.mulf %127, %109 : vector<16x64xf32>
    %129 = arith.mulf %121, %122 : vector<1x64xf32>
    %130 = vector.broadcast %129 : vector<1x64xf32> to vector<16x64xf32>
    %131 = vector.broadcast %123 : vector<16x1xf32> to vector<16x64xf32>
    %132 = arith.mulf %130, %131 : vector<16x64xf32>
    %133 = arith.addf %128, %132 : vector<16x64xf32>
    %134 = vector.broadcast %124 : vector<16x1xf32> to vector<16x64xf32>
    %135 = arith.mulf %134, %133 : vector<16x64xf32>
    %cst_60 = arith.constant dense<0.000000e+00> : vector<64xf32>
    %136 = vector.multi_reduction <add>, %135, %cst_60 [0] : vector<16x64xf32> to vector<64xf32>
    %137 = vector.shape_cast %136 : vector<64xf32> to vector<1x64xf32>
    %138 = arith.mulf %41, %122 : vector<1x64xf32>
    %139 = arith.addf %137, %138 : vector<1x64xf32>
    %c1_i32 = arith.constant 1 : i32
    %140 = vector.broadcast %c1_i32 : i32 to vector<8x64xi32>
    %141 = arith.cmpi eq, %0, %140 : vector<8x64xi32>
    %142 = vector.shape_cast %139 : vector<1x64xf32> to vector<1x64xf32>
    %143 = vector.broadcast %142 : vector<1x64xf32> to vector<8x64xf32>
    %144 = arith.select %141, %143, %120 : vector<8x64xi1>, vector<8x64xf32>
    %145 = vector.extract_strided_slice %91 {offsets = [2, 0], sizes = [1, 64], strides = [1, 1]} : vector<8x64xf32> to vector<1x64xf32>
    %146 = vector.extract_strided_slice %68 {offsets = [2, 0], sizes = [1, 64], strides = [1, 1]} : vector<8x64xf32> to vector<1x64xf32>
    %147 = vector.extract_strided_slice %72 {offsets = [0, 2], sizes = [16, 1], strides = [1, 1]} : vector<16x8xf32> to vector<16x1xf32>
    %148 = vector.extract_strided_slice %74 {offsets = [0, 2], sizes = [16, 1], strides = [1, 1]} : vector<16x8xf32> to vector<16x1xf32>
    %149 = vector.broadcast %145 : vector<1x64xf32> to vector<16x64xf32>
    %150 = arith.mulf %149, %94 : vector<16x64xf32>
    %151 = math.exp %150 : vector<16x64xf32>
    %152 = arith.mulf %151, %133 : vector<16x64xf32>
    %153 = arith.mulf %145, %146 : vector<1x64xf32>
    %154 = vector.broadcast %153 : vector<1x64xf32> to vector<16x64xf32>
    %155 = vector.broadcast %147 : vector<16x1xf32> to vector<16x64xf32>
    %156 = arith.mulf %154, %155 : vector<16x64xf32>
    %157 = arith.addf %152, %156 : vector<16x64xf32>
    %158 = vector.broadcast %148 : vector<16x1xf32> to vector<16x64xf32>
    %159 = arith.mulf %158, %157 : vector<16x64xf32>
    %cst_61 = arith.constant dense<0.000000e+00> : vector<64xf32>
    %160 = vector.multi_reduction <add>, %159, %cst_61 [0] : vector<16x64xf32> to vector<64xf32>
    %161 = vector.shape_cast %160 : vector<64xf32> to vector<1x64xf32>
    %162 = arith.mulf %41, %146 : vector<1x64xf32>
    %163 = arith.addf %161, %162 : vector<1x64xf32>
    %c2_i32 = arith.constant 2 : i32
    %164 = vector.broadcast %c2_i32 : i32 to vector<8x64xi32>
    %165 = arith.cmpi eq, %0, %164 : vector<8x64xi32>
    %166 = vector.shape_cast %163 : vector<1x64xf32> to vector<1x64xf32>
    %167 = vector.broadcast %166 : vector<1x64xf32> to vector<8x64xf32>
    %168 = arith.select %165, %167, %144 : vector<8x64xi1>, vector<8x64xf32>
    %169 = vector.extract_strided_slice %91 {offsets = [3, 0], sizes = [1, 64], strides = [1, 1]} : vector<8x64xf32> to vector<1x64xf32>
    %170 = vector.extract_strided_slice %68 {offsets = [3, 0], sizes = [1, 64], strides = [1, 1]} : vector<8x64xf32> to vector<1x64xf32>
    %171 = vector.extract_strided_slice %72 {offsets = [0, 3], sizes = [16, 1], strides = [1, 1]} : vector<16x8xf32> to vector<16x1xf32>
    %172 = vector.extract_strided_slice %74 {offsets = [0, 3], sizes = [16, 1], strides = [1, 1]} : vector<16x8xf32> to vector<16x1xf32>
    %173 = vector.broadcast %169 : vector<1x64xf32> to vector<16x64xf32>
    %174 = arith.mulf %173, %94 : vector<16x64xf32>
    %175 = math.exp %174 : vector<16x64xf32>
    %176 = arith.mulf %175, %157 : vector<16x64xf32>
    %177 = arith.mulf %169, %170 : vector<1x64xf32>
    %178 = vector.broadcast %177 : vector<1x64xf32> to vector<16x64xf32>
    %179 = vector.broadcast %171 : vector<16x1xf32> to vector<16x64xf32>
    %180 = arith.mulf %178, %179 : vector<16x64xf32>
    %181 = arith.addf %176, %180 : vector<16x64xf32>
    %182 = vector.broadcast %172 : vector<16x1xf32> to vector<16x64xf32>
    %183 = arith.mulf %182, %181 : vector<16x64xf32>
    %cst_62 = arith.constant dense<0.000000e+00> : vector<64xf32>
    %184 = vector.multi_reduction <add>, %183, %cst_62 [0] : vector<16x64xf32> to vector<64xf32>
    %185 = vector.shape_cast %184 : vector<64xf32> to vector<1x64xf32>
    %186 = arith.mulf %41, %170 : vector<1x64xf32>
    %187 = arith.addf %185, %186 : vector<1x64xf32>
    %c3_i32 = arith.constant 3 : i32
    %188 = vector.broadcast %c3_i32 : i32 to vector<8x64xi32>
    %189 = arith.cmpi eq, %0, %188 : vector<8x64xi32>
    %190 = vector.shape_cast %187 : vector<1x64xf32> to vector<1x64xf32>
    %191 = vector.broadcast %190 : vector<1x64xf32> to vector<8x64xf32>
    %192 = arith.select %189, %191, %168 : vector<8x64xi1>, vector<8x64xf32>
    %193 = vector.extract_strided_slice %91 {offsets = [4, 0], sizes = [1, 64], strides = [1, 1]} : vector<8x64xf32> to vector<1x64xf32>
    %194 = vector.extract_strided_slice %68 {offsets = [4, 0], sizes = [1, 64], strides = [1, 1]} : vector<8x64xf32> to vector<1x64xf32>
    %195 = vector.extract_strided_slice %72 {offsets = [0, 4], sizes = [16, 1], strides = [1, 1]} : vector<16x8xf32> to vector<16x1xf32>
    %196 = vector.extract_strided_slice %74 {offsets = [0, 4], sizes = [16, 1], strides = [1, 1]} : vector<16x8xf32> to vector<16x1xf32>
    %197 = vector.broadcast %193 : vector<1x64xf32> to vector<16x64xf32>
    %198 = arith.mulf %197, %94 : vector<16x64xf32>
    %199 = math.exp %198 : vector<16x64xf32>
    %200 = arith.mulf %199, %181 : vector<16x64xf32>
    %201 = arith.mulf %193, %194 : vector<1x64xf32>
    %202 = vector.broadcast %201 : vector<1x64xf32> to vector<16x64xf32>
    %203 = vector.broadcast %195 : vector<16x1xf32> to vector<16x64xf32>
    %204 = arith.mulf %202, %203 : vector<16x64xf32>
    %205 = arith.addf %200, %204 : vector<16x64xf32>
    %206 = vector.broadcast %196 : vector<16x1xf32> to vector<16x64xf32>
    %207 = arith.mulf %206, %205 : vector<16x64xf32>
    %cst_63 = arith.constant dense<0.000000e+00> : vector<64xf32>
    %208 = vector.multi_reduction <add>, %207, %cst_63 [0] : vector<16x64xf32> to vector<64xf32>
    %209 = vector.shape_cast %208 : vector<64xf32> to vector<1x64xf32>
    %210 = arith.mulf %41, %194 : vector<1x64xf32>
    %211 = arith.addf %209, %210 : vector<1x64xf32>
    %c4_i32 = arith.constant 4 : i32
    %212 = vector.broadcast %c4_i32 : i32 to vector<8x64xi32>
    %213 = arith.cmpi eq, %0, %212 : vector<8x64xi32>
    %214 = vector.shape_cast %211 : vector<1x64xf32> to vector<1x64xf32>
    %215 = vector.broadcast %214 : vector<1x64xf32> to vector<8x64xf32>
    %216 = arith.select %213, %215, %192 : vector<8x64xi1>, vector<8x64xf32>
    %217 = vector.extract_strided_slice %91 {offsets = [5, 0], sizes = [1, 64], strides = [1, 1]} : vector<8x64xf32> to vector<1x64xf32>
    %218 = vector.extract_strided_slice %68 {offsets = [5, 0], sizes = [1, 64], strides = [1, 1]} : vector<8x64xf32> to vector<1x64xf32>
    %219 = vector.extract_strided_slice %72 {offsets = [0, 5], sizes = [16, 1], strides = [1, 1]} : vector<16x8xf32> to vector<16x1xf32>
    %220 = vector.extract_strided_slice %74 {offsets = [0, 5], sizes = [16, 1], strides = [1, 1]} : vector<16x8xf32> to vector<16x1xf32>
    %221 = vector.broadcast %217 : vector<1x64xf32> to vector<16x64xf32>
    %222 = arith.mulf %221, %94 : vector<16x64xf32>
    %223 = math.exp %222 : vector<16x64xf32>
    %224 = arith.mulf %223, %205 : vector<16x64xf32>
    %225 = arith.mulf %217, %218 : vector<1x64xf32>
    %226 = vector.broadcast %225 : vector<1x64xf32> to vector<16x64xf32>
    %227 = vector.broadcast %219 : vector<16x1xf32> to vector<16x64xf32>
    %228 = arith.mulf %226, %227 : vector<16x64xf32>
    %229 = arith.addf %224, %228 : vector<16x64xf32>
    %230 = vector.broadcast %220 : vector<16x1xf32> to vector<16x64xf32>
    %231 = arith.mulf %230, %229 : vector<16x64xf32>
    %cst_64 = arith.constant dense<0.000000e+00> : vector<64xf32>
    %232 = vector.multi_reduction <add>, %231, %cst_64 [0] : vector<16x64xf32> to vector<64xf32>
    %233 = vector.shape_cast %232 : vector<64xf32> to vector<1x64xf32>
    %234 = arith.mulf %41, %218 : vector<1x64xf32>
    %235 = arith.addf %233, %234 : vector<1x64xf32>
    %c5_i32 = arith.constant 5 : i32
    %236 = vector.broadcast %c5_i32 : i32 to vector<8x64xi32>
    %237 = arith.cmpi eq, %0, %236 : vector<8x64xi32>
    %238 = vector.shape_cast %235 : vector<1x64xf32> to vector<1x64xf32>
    %239 = vector.broadcast %238 : vector<1x64xf32> to vector<8x64xf32>
    %240 = arith.select %237, %239, %216 : vector<8x64xi1>, vector<8x64xf32>
    %241 = vector.extract_strided_slice %91 {offsets = [6, 0], sizes = [1, 64], strides = [1, 1]} : vector<8x64xf32> to vector<1x64xf32>
    %242 = vector.extract_strided_slice %68 {offsets = [6, 0], sizes = [1, 64], strides = [1, 1]} : vector<8x64xf32> to vector<1x64xf32>
    %243 = vector.extract_strided_slice %72 {offsets = [0, 6], sizes = [16, 1], strides = [1, 1]} : vector<16x8xf32> to vector<16x1xf32>
    %244 = vector.extract_strided_slice %74 {offsets = [0, 6], sizes = [16, 1], strides = [1, 1]} : vector<16x8xf32> to vector<16x1xf32>
    %245 = vector.broadcast %241 : vector<1x64xf32> to vector<16x64xf32>
    %246 = arith.mulf %245, %94 : vector<16x64xf32>
    %247 = math.exp %246 : vector<16x64xf32>
    %248 = arith.mulf %247, %229 : vector<16x64xf32>
    %249 = arith.mulf %241, %242 : vector<1x64xf32>
    %250 = vector.broadcast %249 : vector<1x64xf32> to vector<16x64xf32>
    %251 = vector.broadcast %243 : vector<16x1xf32> to vector<16x64xf32>
    %252 = arith.mulf %250, %251 : vector<16x64xf32>
    %253 = arith.addf %248, %252 : vector<16x64xf32>
    %254 = vector.broadcast %244 : vector<16x1xf32> to vector<16x64xf32>
    %255 = arith.mulf %254, %253 : vector<16x64xf32>
    %cst_65 = arith.constant dense<0.000000e+00> : vector<64xf32>
    %256 = vector.multi_reduction <add>, %255, %cst_65 [0] : vector<16x64xf32> to vector<64xf32>
    %257 = vector.shape_cast %256 : vector<64xf32> to vector<1x64xf32>
    %258 = arith.mulf %41, %242 : vector<1x64xf32>
    %259 = arith.addf %257, %258 : vector<1x64xf32>
    %c6_i32 = arith.constant 6 : i32
    %260 = vector.broadcast %c6_i32 : i32 to vector<8x64xi32>
    %261 = arith.cmpi eq, %0, %260 : vector<8x64xi32>
    %262 = vector.shape_cast %259 : vector<1x64xf32> to vector<1x64xf32>
    %263 = vector.broadcast %262 : vector<1x64xf32> to vector<8x64xf32>
    %264 = arith.select %261, %263, %240 : vector<8x64xi1>, vector<8x64xf32>
    %265 = vector.extract_strided_slice %91 {offsets = [7, 0], sizes = [1, 64], strides = [1, 1]} : vector<8x64xf32> to vector<1x64xf32>
    %266 = vector.extract_strided_slice %68 {offsets = [7, 0], sizes = [1, 64], strides = [1, 1]} : vector<8x64xf32> to vector<1x64xf32>
    %267 = vector.extract_strided_slice %72 {offsets = [0, 7], sizes = [16, 1], strides = [1, 1]} : vector<16x8xf32> to vector<16x1xf32>
    %268 = vector.extract_strided_slice %74 {offsets = [0, 7], sizes = [16, 1], strides = [1, 1]} : vector<16x8xf32> to vector<16x1xf32>
    %269 = vector.broadcast %265 : vector<1x64xf32> to vector<16x64xf32>
    %270 = arith.mulf %269, %94 : vector<16x64xf32>
    %271 = math.exp %270 : vector<16x64xf32>
    %272 = arith.mulf %271, %253 : vector<16x64xf32>
    %273 = arith.mulf %265, %266 : vector<1x64xf32>
    %274 = vector.broadcast %273 : vector<1x64xf32> to vector<16x64xf32>
    %275 = vector.broadcast %267 : vector<16x1xf32> to vector<16x64xf32>
    %276 = arith.mulf %274, %275 : vector<16x64xf32>
    %277 = arith.addf %272, %276 : vector<16x64xf32>
    %278 = vector.broadcast %268 : vector<16x1xf32> to vector<16x64xf32>
    %279 = arith.mulf %278, %277 : vector<16x64xf32>
    %cst_66 = arith.constant dense<0.000000e+00> : vector<64xf32>
    %280 = vector.multi_reduction <add>, %279, %cst_66 [0] : vector<16x64xf32> to vector<64xf32>
    %281 = vector.shape_cast %280 : vector<64xf32> to vector<1x64xf32>
    %282 = arith.mulf %41, %266 : vector<1x64xf32>
    %283 = arith.addf %281, %282 : vector<1x64xf32>
    %c7_i32 = arith.constant 7 : i32
    %284 = vector.broadcast %c7_i32 : i32 to vector<8x64xi32>
    %285 = arith.cmpi eq, %0, %284 : vector<8x64xi32>
    %286 = vector.shape_cast %283 : vector<1x64xf32> to vector<1x64xf32>
    %287 = vector.broadcast %286 : vector<1x64xf32> to vector<8x64xf32>
    %288 = arith.select %285, %287, %264 : vector<8x64xi1>, vector<8x64xf32>
    %289 = arith.negf %24 : vector<8x64xf32>
    %290 = math.exp %289 : vector<8x64xf32>
    %cst_67 = arith.constant 1.000000e+00 : f32
    %291 = vector.broadcast %cst_67 : f32 to vector<8x64xf32>
    %292 = arith.addf %291, %290 : vector<8x64xf32>
    %293 = arith.divf %291, %292 : vector<8x64xf32>
    %294 = arith.mulf %24, %293 : vector<8x64xf32>
    %295 = arith.mulf %288, %294 : vector<8x64xf32>
    %296 = arith.addf %27, %295 : vector<8x64xf32>
    %c0_68 = arith.constant 0 : index
    %c1_69 = arith.constant 1 : index
    %c0_70 = arith.constant 0 : index
    %c0_71 = arith.constant 0 : index
    %297 = vector.load %arg4[%c0_68, %c1_69, %c0_70, %c0_71] : memref<2x2x4x64xf32, #tpu.memory_space<vmem>>, vector<1x1x4x64xf32>
    %298 = vector.shape_cast %297 : vector<1x1x4x64xf32> to vector<4x64xf32>
    %c0_72 = arith.constant 0 : index
    %c1_73 = arith.constant 1 : index
    %c0_74 = arith.constant 0 : index
    %c0_75 = arith.constant 0 : index
    %299 = vector.load %arg5[%c0_72, %c1_73, %c0_74, %c0_75] : memref<2x2x1x64xf32, #tpu.memory_space<vmem>>, vector<1x1x1x64xf32>
    %300 = vector.shape_cast %299 : vector<1x1x1x64xf32> to vector<1x64xf32>
    %c0_76 = arith.constant 0 : index
    %c1_77 = arith.constant 1 : index
    %c0_78 = arith.constant 0 : index
    %c0_79 = arith.constant 0 : index
    %301 = vector.load %arg6[%c0_76, %c1_77, %c0_78, %c0_79] : memref<2x2x64x34xf32, #tpu.memory_space<vmem>>, vector<1x1x64x34xf32>
    %302 = vector.shape_cast %301 : vector<1x1x64x34xf32> to vector<64x34xf32>
    %c0_80 = arith.constant 0 : index
    %c1_81 = arith.constant 1 : index
    %c0_82 = arith.constant 0 : index
    %c0_83 = arith.constant 0 : index
    %303 = vector.load %arg7[%c0_80, %c1_81, %c0_82, %c0_83] : memref<2x2x2x64xf32, #tpu.memory_space<vmem>>, vector<1x1x2x64xf32>
    %304 = vector.shape_cast %303 : vector<1x1x2x64xf32> to vector<2x64xf32>
    %c0_84 = arith.constant 0 : index
    %c1_85 = arith.constant 1 : index
    %c0_86 = arith.constant 0 : index
    %c0_87 = arith.constant 0 : index
    %305 = vector.load %arg8[%c0_84, %c1_85, %c0_86, %c0_87] : memref<2x2x1x64xf32, #tpu.memory_space<vmem>>, vector<1x1x1x64xf32>
    %306 = vector.shape_cast %305 : vector<1x1x1x64xf32> to vector<1x64xf32>
    %c0_88 = arith.constant 0 : index
    %c1_89 = arith.constant 1 : index
    %c0_90 = arith.constant 0 : index
    %c0_91 = arith.constant 0 : index
    %307 = vector.load %arg9[%c0_88, %c1_89, %c0_90, %c0_91] : memref<2x2x16x64xf32, #tpu.memory_space<vmem>>, vector<1x1x16x64xf32>
    %308 = vector.shape_cast %307 : vector<1x1x16x64xf32> to vector<16x64xf32>
    %c0_92 = arith.constant 0 : index
    %c1_93 = arith.constant 1 : index
    %c0_94 = arith.constant 0 : index
    %c0_95 = arith.constant 0 : index
    %309 = vector.load %arg10[%c0_92, %c1_93, %c0_94, %c0_95] : memref<2x2x1x64xf32, #tpu.memory_space<vmem>>, vector<1x1x1x64xf32>
    %310 = vector.shape_cast %309 : vector<1x1x1x64xf32> to vector<1x64xf32>
    %c6 = arith.constant 6 : index
    %c0_96 = arith.constant 0 : index
    %311 = vector.load %arg14[%c6, %c0_96] : memref<14x64xf32, #tpu.memory_space<vmem>>, vector<8x64xf32>
    %312 = vector.extract_strided_slice %298 {offsets = [0, 0], sizes = [1, 64], strides = [1, 1]} : vector<4x64xf32> to vector<1x64xf32>
    %313 = vector.broadcast %312 : vector<1x64xf32> to vector<8x64xf32>
    %314 = arith.mulf %311, %313 : vector<8x64xf32>
    %315 = vector.broadcast %300 : vector<1x64xf32> to vector<8x64xf32>
    %316 = arith.addf %315, %314 : vector<8x64xf32>
    %c5 = arith.constant 5 : index
    %c0_97 = arith.constant 0 : index
    %317 = vector.load %arg14[%c5, %c0_97] : memref<14x64xf32, #tpu.memory_space<vmem>>, vector<8x64xf32>
    %318 = vector.extract_strided_slice %298 {offsets = [1, 0], sizes = [1, 64], strides = [1, 1]} : vector<4x64xf32> to vector<1x64xf32>
    %319 = vector.broadcast %318 : vector<1x64xf32> to vector<8x64xf32>
    %320 = arith.mulf %317, %319 : vector<8x64xf32>
    %321 = arith.addf %316, %320 : vector<8x64xf32>
    %c4 = arith.constant 4 : index
    %c0_98 = arith.constant 0 : index
    %322 = vector.load %arg14[%c4, %c0_98] : memref<14x64xf32, #tpu.memory_space<vmem>>, vector<8x64xf32>
    %323 = vector.extract_strided_slice %298 {offsets = [2, 0], sizes = [1, 64], strides = [1, 1]} : vector<4x64xf32> to vector<1x64xf32>
    %324 = vector.broadcast %323 : vector<1x64xf32> to vector<8x64xf32>
    %325 = arith.mulf %322, %324 : vector<8x64xf32>
    %326 = arith.addf %321, %325 : vector<8x64xf32>
    %c3_99 = arith.constant 3 : index
    %c0_100 = arith.constant 0 : index
    %327 = vector.load %arg14[%c3_99, %c0_100] : memref<14x64xf32, #tpu.memory_space<vmem>>, vector<8x64xf32>
    %328 = vector.extract_strided_slice %298 {offsets = [3, 0], sizes = [1, 64], strides = [1, 1]} : vector<4x64xf32> to vector<1x64xf32>
    %329 = vector.broadcast %328 : vector<1x64xf32> to vector<8x64xf32>
    %330 = arith.mulf %327, %329 : vector<8x64xf32>
    %331 = arith.addf %326, %330 : vector<8x64xf32>
    %332 = arith.negf %331 : vector<8x64xf32>
    %333 = math.exp %332 : vector<8x64xf32>
    %cst_101 = arith.constant 1.000000e+00 : f32
    %334 = vector.broadcast %cst_101 : f32 to vector<8x64xf32>
    %335 = arith.addf %334, %333 : vector<8x64xf32>
    %336 = arith.divf %334, %335 : vector<8x64xf32>
    %337 = arith.mulf %331, %336 : vector<8x64xf32>
    %cst_102 = arith.constant dense<0.000000e+00> : vector<8x34xf32>
    %338 = tpu.matmul %337, %302, %cst_102 {dimension_numbers = #tpu.dot_dimension_numbers<[1], [0], [0], [1], [0, 0, 1, 1], [], []>} : vector<8x64xf32>, vector<64x34xf32>, vector<8x34xf32> -> vector<8x34xf32>
    %339 = vector.extract_strided_slice %338 {offsets = [0, 0], sizes = [8, 2], strides = [1, 1]} : vector<8x34xf32> to vector<8x2xf32>
    %340 = vector.extract_strided_slice %338 {offsets = [0, 2], sizes = [8, 16], strides = [1, 1]} : vector<8x34xf32> to vector<8x16xf32>
    %341 = tpu.transpose %340, [1, 0] : vector<8x16xf32> -> vector<16x8xf32>
    %342 = vector.extract_strided_slice %338 {offsets = [0, 18], sizes = [8, 16], strides = [1, 1]} : vector<8x34xf32> to vector<8x16xf32>
    %343 = tpu.transpose %342, [1, 0] : vector<8x16xf32> -> vector<16x8xf32>
    %cst_103 = arith.constant dense<0.000000e+00> : vector<8x64xf32>
    %344 = tpu.matmul %339, %304, %cst_103 {dimension_numbers = #tpu.dot_dimension_numbers<[1], [0], [0], [1], [0, 0, 1, 1], [], []>} : vector<8x2xf32>, vector<2x64xf32>, vector<8x64xf32> -> vector<8x64xf32>
    %345 = vector.broadcast %306 : vector<1x64xf32> to vector<8x64xf32>
    %346 = arith.addf %344, %345 : vector<8x64xf32>
    %cst_104 = arith.constant 0.000000e+00 : f32
    %347 = vector.broadcast %cst_104 : f32 to vector<8x64xf32>
    %348 = arith.maximumf %346, %347 : vector<8x64xf32>
    %349 = vector.broadcast %cst_104 : f32 to vector<8x64xf32>
    %350 = arith.subf %346, %349 : vector<8x64xf32>
    %351 = arith.cmpf one, %350, %350 : vector<8x64xf32>
    %352 = vector.broadcast %cst_104 : f32 to vector<8x64xf32>
    %353 = arith.addf %346, %352 : vector<8x64xf32>
    %354 = math.absf %350 : vector<8x64xf32>
    %cst_105 = arith.constant 0.000000e+00 : f32
    %355 = vector.broadcast %cst_105 : f32 to vector<8x64xf32>
    %356 = arith.subf %355, %354 : vector<8x64xf32>
    %357 = math.exp %356 : vector<8x64xf32>
    %358 = math.log1p %357 : vector<8x64xf32>
    %359 = arith.addf %348, %358 : vector<8x64xf32>
    %360 = arith.select %351, %353, %359 : vector<8x64xi1>, vector<8x64xf32>
    %361 = math.exp %308 : vector<16x64xf32>
    %cst_106 = arith.constant 0.000000e+00 : f32
    %362 = vector.broadcast %cst_106 : f32 to vector<16x64xf32>
    %363 = arith.subf %362, %361 : vector<16x64xf32>
    %cst_107 = arith.constant 0.000000e+00 : f32
    %364 = vector.broadcast %cst_107 : f32 to vector<16x64xf32>
    %cst_108 = arith.constant 0.000000e+00 : f32
    %365 = vector.broadcast %cst_108 : f32 to vector<8x64xf32>
    %366 = vector.extract_strided_slice %360 {offsets = [7, 0], sizes = [1, 64], strides = [1, 1]} : vector<8x64xf32> to vector<1x64xf32>
    %367 = vector.extract_strided_slice %337 {offsets = [7, 0], sizes = [1, 64], strides = [1, 1]} : vector<8x64xf32> to vector<1x64xf32>
    %368 = vector.extract_strided_slice %341 {offsets = [0, 7], sizes = [16, 1], strides = [1, 1]} : vector<16x8xf32> to vector<16x1xf32>
    %369 = vector.extract_strided_slice %343 {offsets = [0, 7], sizes = [16, 1], strides = [1, 1]} : vector<16x8xf32> to vector<16x1xf32>
    %370 = vector.broadcast %366 : vector<1x64xf32> to vector<16x64xf32>
    %371 = arith.mulf %370, %363 : vector<16x64xf32>
    %372 = math.exp %371 : vector<16x64xf32>
    %373 = arith.mulf %372, %364 : vector<16x64xf32>
    %374 = arith.mulf %366, %367 : vector<1x64xf32>
    %375 = vector.broadcast %374 : vector<1x64xf32> to vector<16x64xf32>
    %376 = vector.broadcast %368 : vector<16x1xf32> to vector<16x64xf32>
    %377 = arith.mulf %375, %376 : vector<16x64xf32>
    %378 = arith.addf %373, %377 : vector<16x64xf32>
    %379 = vector.broadcast %369 : vector<16x1xf32> to vector<16x64xf32>
    %380 = arith.mulf %379, %378 : vector<16x64xf32>
    %cst_109 = arith.constant dense<0.000000e+00> : vector<64xf32>
    %381 = vector.multi_reduction <add>, %380, %cst_109 [0] : vector<16x64xf32> to vector<64xf32>
    %382 = vector.shape_cast %381 : vector<64xf32> to vector<1x64xf32>
    %383 = arith.mulf %310, %367 : vector<1x64xf32>
    %384 = arith.addf %382, %383 : vector<1x64xf32>
    %c7_i32_110 = arith.constant 7 : i32
    %385 = vector.broadcast %c7_i32_110 : i32 to vector<8x64xi32>
    %386 = arith.cmpi eq, %0, %385 : vector<8x64xi32>
    %387 = vector.shape_cast %384 : vector<1x64xf32> to vector<1x64xf32>
    %388 = vector.broadcast %387 : vector<1x64xf32> to vector<8x64xf32>
    %389 = arith.select %386, %388, %365 : vector<8x64xi1>, vector<8x64xf32>
    %390 = vector.extract_strided_slice %360 {offsets = [6, 0], sizes = [1, 64], strides = [1, 1]} : vector<8x64xf32> to vector<1x64xf32>
    %391 = vector.extract_strided_slice %337 {offsets = [6, 0], sizes = [1, 64], strides = [1, 1]} : vector<8x64xf32> to vector<1x64xf32>
    %392 = vector.extract_strided_slice %341 {offsets = [0, 6], sizes = [16, 1], strides = [1, 1]} : vector<16x8xf32> to vector<16x1xf32>
    %393 = vector.extract_strided_slice %343 {offsets = [0, 6], sizes = [16, 1], strides = [1, 1]} : vector<16x8xf32> to vector<16x1xf32>
    %394 = vector.broadcast %390 : vector<1x64xf32> to vector<16x64xf32>
    %395 = arith.mulf %394, %363 : vector<16x64xf32>
    %396 = math.exp %395 : vector<16x64xf32>
    %397 = arith.mulf %396, %378 : vector<16x64xf32>
    %398 = arith.mulf %390, %391 : vector<1x64xf32>
    %399 = vector.broadcast %398 : vector<1x64xf32> to vector<16x64xf32>
    %400 = vector.broadcast %392 : vector<16x1xf32> to vector<16x64xf32>
    %401 = arith.mulf %399, %400 : vector<16x64xf32>
    %402 = arith.addf %397, %401 : vector<16x64xf32>
    %403 = vector.broadcast %393 : vector<16x1xf32> to vector<16x64xf32>
    %404 = arith.mulf %403, %402 : vector<16x64xf32>
    %cst_111 = arith.constant dense<0.000000e+00> : vector<64xf32>
    %405 = vector.multi_reduction <add>, %404, %cst_111 [0] : vector<16x64xf32> to vector<64xf32>
    %406 = vector.shape_cast %405 : vector<64xf32> to vector<1x64xf32>
    %407 = arith.mulf %310, %391 : vector<1x64xf32>
    %408 = arith.addf %406, %407 : vector<1x64xf32>
    %c6_i32_112 = arith.constant 6 : i32
    %409 = vector.broadcast %c6_i32_112 : i32 to vector<8x64xi32>
    %410 = arith.cmpi eq, %0, %409 : vector<8x64xi32>
    %411 = vector.shape_cast %408 : vector<1x64xf32> to vector<1x64xf32>
    %412 = vector.broadcast %411 : vector<1x64xf32> to vector<8x64xf32>
    %413 = arith.select %410, %412, %389 : vector<8x64xi1>, vector<8x64xf32>
    %414 = vector.extract_strided_slice %360 {offsets = [5, 0], sizes = [1, 64], strides = [1, 1]} : vector<8x64xf32> to vector<1x64xf32>
    %415 = vector.extract_strided_slice %337 {offsets = [5, 0], sizes = [1, 64], strides = [1, 1]} : vector<8x64xf32> to vector<1x64xf32>
    %416 = vector.extract_strided_slice %341 {offsets = [0, 5], sizes = [16, 1], strides = [1, 1]} : vector<16x8xf32> to vector<16x1xf32>
    %417 = vector.extract_strided_slice %343 {offsets = [0, 5], sizes = [16, 1], strides = [1, 1]} : vector<16x8xf32> to vector<16x1xf32>
    %418 = vector.broadcast %414 : vector<1x64xf32> to vector<16x64xf32>
    %419 = arith.mulf %418, %363 : vector<16x64xf32>
    %420 = math.exp %419 : vector<16x64xf32>
    %421 = arith.mulf %420, %402 : vector<16x64xf32>
    %422 = arith.mulf %414, %415 : vector<1x64xf32>
    %423 = vector.broadcast %422 : vector<1x64xf32> to vector<16x64xf32>
    %424 = vector.broadcast %416 : vector<16x1xf32> to vector<16x64xf32>
    %425 = arith.mulf %423, %424 : vector<16x64xf32>
    %426 = arith.addf %421, %425 : vector<16x64xf32>
    %427 = vector.broadcast %417 : vector<16x1xf32> to vector<16x64xf32>
    %428 = arith.mulf %427, %426 : vector<16x64xf32>
    %cst_113 = arith.constant dense<0.000000e+00> : vector<64xf32>
    %429 = vector.multi_reduction <add>, %428, %cst_113 [0] : vector<16x64xf32> to vector<64xf32>
    %430 = vector.shape_cast %429 : vector<64xf32> to vector<1x64xf32>
    %431 = arith.mulf %310, %415 : vector<1x64xf32>
    %432 = arith.addf %430, %431 : vector<1x64xf32>
    %c5_i32_114 = arith.constant 5 : i32
    %433 = vector.broadcast %c5_i32_114 : i32 to vector<8x64xi32>
    %434 = arith.cmpi eq, %0, %433 : vector<8x64xi32>
    %435 = vector.shape_cast %432 : vector<1x64xf32> to vector<1x64xf32>
    %436 = vector.broadcast %435 : vector<1x64xf32> to vector<8x64xf32>
    %437 = arith.select %434, %436, %413 : vector<8x64xi1>, vector<8x64xf32>
    %438 = vector.extract_strided_slice %360 {offsets = [4, 0], sizes = [1, 64], strides = [1, 1]} : vector<8x64xf32> to vector<1x64xf32>
    %439 = vector.extract_strided_slice %337 {offsets = [4, 0], sizes = [1, 64], strides = [1, 1]} : vector<8x64xf32> to vector<1x64xf32>
    %440 = vector.extract_strided_slice %341 {offsets = [0, 4], sizes = [16, 1], strides = [1, 1]} : vector<16x8xf32> to vector<16x1xf32>
    %441 = vector.extract_strided_slice %343 {offsets = [0, 4], sizes = [16, 1], strides = [1, 1]} : vector<16x8xf32> to vector<16x1xf32>
    %442 = vector.broadcast %438 : vector<1x64xf32> to vector<16x64xf32>
    %443 = arith.mulf %442, %363 : vector<16x64xf32>
    %444 = math.exp %443 : vector<16x64xf32>
    %445 = arith.mulf %444, %426 : vector<16x64xf32>
    %446 = arith.mulf %438, %439 : vector<1x64xf32>
    %447 = vector.broadcast %446 : vector<1x64xf32> to vector<16x64xf32>
    %448 = vector.broadcast %440 : vector<16x1xf32> to vector<16x64xf32>
    %449 = arith.mulf %447, %448 : vector<16x64xf32>
    %450 = arith.addf %445, %449 : vector<16x64xf32>
    %451 = vector.broadcast %441 : vector<16x1xf32> to vector<16x64xf32>
    %452 = arith.mulf %451, %450 : vector<16x64xf32>
    %cst_115 = arith.constant dense<0.000000e+00> : vector<64xf32>
    %453 = vector.multi_reduction <add>, %452, %cst_115 [0] : vector<16x64xf32> to vector<64xf32>
    %454 = vector.shape_cast %453 : vector<64xf32> to vector<1x64xf32>
    %455 = arith.mulf %310, %439 : vector<1x64xf32>
    %456 = arith.addf %454, %455 : vector<1x64xf32>
    %c4_i32_116 = arith.constant 4 : i32
    %457 = vector.broadcast %c4_i32_116 : i32 to vector<8x64xi32>
    %458 = arith.cmpi eq, %0, %457 : vector<8x64xi32>
    %459 = vector.shape_cast %456 : vector<1x64xf32> to vector<1x64xf32>
    %460 = vector.broadcast %459 : vector<1x64xf32> to vector<8x64xf32>
    %461 = arith.select %458, %460, %437 : vector<8x64xi1>, vector<8x64xf32>
    %462 = vector.extract_strided_slice %360 {offsets = [3, 0], sizes = [1, 64], strides = [1, 1]} : vector<8x64xf32> to vector<1x64xf32>
    %463 = vector.extract_strided_slice %337 {offsets = [3, 0], sizes = [1, 64], strides = [1, 1]} : vector<8x64xf32> to vector<1x64xf32>
    %464 = vector.extract_strided_slice %341 {offsets = [0, 3], sizes = [16, 1], strides = [1, 1]} : vector<16x8xf32> to vector<16x1xf32>
    %465 = vector.extract_strided_slice %343 {offsets = [0, 3], sizes = [16, 1], strides = [1, 1]} : vector<16x8xf32> to vector<16x1xf32>
    %466 = vector.broadcast %462 : vector<1x64xf32> to vector<16x64xf32>
    %467 = arith.mulf %466, %363 : vector<16x64xf32>
    %468 = math.exp %467 : vector<16x64xf32>
    %469 = arith.mulf %468, %450 : vector<16x64xf32>
    %470 = arith.mulf %462, %463 : vector<1x64xf32>
    %471 = vector.broadcast %470 : vector<1x64xf32> to vector<16x64xf32>
    %472 = vector.broadcast %464 : vector<16x1xf32> to vector<16x64xf32>
    %473 = arith.mulf %471, %472 : vector<16x64xf32>
    %474 = arith.addf %469, %473 : vector<16x64xf32>
    %475 = vector.broadcast %465 : vector<16x1xf32> to vector<16x64xf32>
    %476 = arith.mulf %475, %474 : vector<16x64xf32>
    %cst_117 = arith.constant dense<0.000000e+00> : vector<64xf32>
    %477 = vector.multi_reduction <add>, %476, %cst_117 [0] : vector<16x64xf32> to vector<64xf32>
    %478 = vector.shape_cast %477 : vector<64xf32> to vector<1x64xf32>
    %479 = arith.mulf %310, %463 : vector<1x64xf32>
    %480 = arith.addf %478, %479 : vector<1x64xf32>
    %c3_i32_118 = arith.constant 3 : i32
    %481 = vector.broadcast %c3_i32_118 : i32 to vector<8x64xi32>
    %482 = arith.cmpi eq, %0, %481 : vector<8x64xi32>
    %483 = vector.shape_cast %480 : vector<1x64xf32> to vector<1x64xf32>
    %484 = vector.broadcast %483 : vector<1x64xf32> to vector<8x64xf32>
    %485 = arith.select %482, %484, %461 : vector<8x64xi1>, vector<8x64xf32>
    %486 = vector.extract_strided_slice %360 {offsets = [2, 0], sizes = [1, 64], strides = [1, 1]} : vector<8x64xf32> to vector<1x64xf32>
    %487 = vector.extract_strided_slice %337 {offsets = [2, 0], sizes = [1, 64], strides = [1, 1]} : vector<8x64xf32> to vector<1x64xf32>
    %488 = vector.extract_strided_slice %341 {offsets = [0, 2], sizes = [16, 1], strides = [1, 1]} : vector<16x8xf32> to vector<16x1xf32>
    %489 = vector.extract_strided_slice %343 {offsets = [0, 2], sizes = [16, 1], strides = [1, 1]} : vector<16x8xf32> to vector<16x1xf32>
    %490 = vector.broadcast %486 : vector<1x64xf32> to vector<16x64xf32>
    %491 = arith.mulf %490, %363 : vector<16x64xf32>
    %492 = math.exp %491 : vector<16x64xf32>
    %493 = arith.mulf %492, %474 : vector<16x64xf32>
    %494 = arith.mulf %486, %487 : vector<1x64xf32>
    %495 = vector.broadcast %494 : vector<1x64xf32> to vector<16x64xf32>
    %496 = vector.broadcast %488 : vector<16x1xf32> to vector<16x64xf32>
    %497 = arith.mulf %495, %496 : vector<16x64xf32>
    %498 = arith.addf %493, %497 : vector<16x64xf32>
    %499 = vector.broadcast %489 : vector<16x1xf32> to vector<16x64xf32>
    %500 = arith.mulf %499, %498 : vector<16x64xf32>
    %cst_119 = arith.constant dense<0.000000e+00> : vector<64xf32>
    %501 = vector.multi_reduction <add>, %500, %cst_119 [0] : vector<16x64xf32> to vector<64xf32>
    %502 = vector.shape_cast %501 : vector<64xf32> to vector<1x64xf32>
    %503 = arith.mulf %310, %487 : vector<1x64xf32>
    %504 = arith.addf %502, %503 : vector<1x64xf32>
    %c2_i32_120 = arith.constant 2 : i32
    %505 = vector.broadcast %c2_i32_120 : i32 to vector<8x64xi32>
    %506 = arith.cmpi eq, %0, %505 : vector<8x64xi32>
    %507 = vector.shape_cast %504 : vector<1x64xf32> to vector<1x64xf32>
    %508 = vector.broadcast %507 : vector<1x64xf32> to vector<8x64xf32>
    %509 = arith.select %506, %508, %485 : vector<8x64xi1>, vector<8x64xf32>
    %510 = vector.extract_strided_slice %360 {offsets = [1, 0], sizes = [1, 64], strides = [1, 1]} : vector<8x64xf32> to vector<1x64xf32>
    %511 = vector.extract_strided_slice %337 {offsets = [1, 0], sizes = [1, 64], strides = [1, 1]} : vector<8x64xf32> to vector<1x64xf32>
    %512 = vector.extract_strided_slice %341 {offsets = [0, 1], sizes = [16, 1], strides = [1, 1]} : vector<16x8xf32> to vector<16x1xf32>
    %513 = vector.extract_strided_slice %343 {offsets = [0, 1], sizes = [16, 1], strides = [1, 1]} : vector<16x8xf32> to vector<16x1xf32>
    %514 = vector.broadcast %510 : vector<1x64xf32> to vector<16x64xf32>
    %515 = arith.mulf %514, %363 : vector<16x64xf32>
    %516 = math.exp %515 : vector<16x64xf32>
    %517 = arith.mulf %516, %498 : vector<16x64xf32>
    %518 = arith.mulf %510, %511 : vector<1x64xf32>
    %519 = vector.broadcast %518 : vector<1x64xf32> to vector<16x64xf32>
    %520 = vector.broadcast %512 : vector<16x1xf32> to vector<16x64xf32>
    %521 = arith.mulf %519, %520 : vector<16x64xf32>
    %522 = arith.addf %517, %521 : vector<16x64xf32>
    %523 = vector.broadcast %513 : vector<16x1xf32> to vector<16x64xf32>
    %524 = arith.mulf %523, %522 : vector<16x64xf32>
    %cst_121 = arith.constant dense<0.000000e+00> : vector<64xf32>
    %525 = vector.multi_reduction <add>, %524, %cst_121 [0] : vector<16x64xf32> to vector<64xf32>
    %526 = vector.shape_cast %525 : vector<64xf32> to vector<1x64xf32>
    %527 = arith.mulf %310, %511 : vector<1x64xf32>
    %528 = arith.addf %526, %527 : vector<1x64xf32>
    %c1_i32_122 = arith.constant 1 : i32
    %529 = vector.broadcast %c1_i32_122 : i32 to vector<8x64xi32>
    %530 = arith.cmpi eq, %0, %529 : vector<8x64xi32>
    %531 = vector.shape_cast %528 : vector<1x64xf32> to vector<1x64xf32>
    %532 = vector.broadcast %531 : vector<1x64xf32> to vector<8x64xf32>
    %533 = arith.select %530, %532, %509 : vector<8x64xi1>, vector<8x64xf32>
    %534 = vector.extract_strided_slice %360 {offsets = [0, 0], sizes = [1, 64], strides = [1, 1]} : vector<8x64xf32> to vector<1x64xf32>
    %535 = vector.extract_strided_slice %337 {offsets = [0, 0], sizes = [1, 64], strides = [1, 1]} : vector<8x64xf32> to vector<1x64xf32>
    %536 = vector.extract_strided_slice %341 {offsets = [0, 0], sizes = [16, 1], strides = [1, 1]} : vector<16x8xf32> to vector<16x1xf32>
    %537 = vector.extract_strided_slice %343 {offsets = [0, 0], sizes = [16, 1], strides = [1, 1]} : vector<16x8xf32> to vector<16x1xf32>
    %538 = vector.broadcast %534 : vector<1x64xf32> to vector<16x64xf32>
    %539 = arith.mulf %538, %363 : vector<16x64xf32>
    %540 = math.exp %539 : vector<16x64xf32>
    %541 = arith.mulf %540, %522 : vector<16x64xf32>
    %542 = arith.mulf %534, %535 : vector<1x64xf32>
    %543 = vector.broadcast %542 : vector<1x64xf32> to vector<16x64xf32>
    %544 = vector.broadcast %536 : vector<16x1xf32> to vector<16x64xf32>
    %545 = arith.mulf %543, %544 : vector<16x64xf32>
    %546 = arith.addf %541, %545 : vector<16x64xf32>
    %547 = vector.broadcast %537 : vector<16x1xf32> to vector<16x64xf32>
    %548 = arith.mulf %547, %546 : vector<16x64xf32>
    %cst_123 = arith.constant dense<0.000000e+00> : vector<64xf32>
    %549 = vector.multi_reduction <add>, %548, %cst_123 [0] : vector<16x64xf32> to vector<64xf32>
    %550 = vector.shape_cast %549 : vector<64xf32> to vector<1x64xf32>
    %551 = arith.mulf %310, %535 : vector<1x64xf32>
    %552 = arith.addf %550, %551 : vector<1x64xf32>
    %c0_i32_124 = arith.constant 0 : i32
    %553 = vector.broadcast %c0_i32_124 : i32 to vector<8x64xi32>
    %554 = arith.cmpi eq, %0, %553 : vector<8x64xi32>
    %555 = vector.shape_cast %552 : vector<1x64xf32> to vector<1x64xf32>
    %556 = vector.broadcast %555 : vector<1x64xf32> to vector<8x64xf32>
    %557 = arith.select %554, %556, %533 : vector<8x64xi1>, vector<8x64xf32>
    %558 = arith.negf %24 : vector<8x64xf32>
    %559 = math.exp %558 : vector<8x64xf32>
    %cst_125 = arith.constant 1.000000e+00 : f32
    %560 = vector.broadcast %cst_125 : f32 to vector<8x64xf32>
    %561 = arith.addf %560, %559 : vector<8x64xf32>
    %562 = arith.divf %560, %561 : vector<8x64xf32>
    %563 = arith.mulf %24, %562 : vector<8x64xf32>
    %564 = arith.mulf %557, %563 : vector<8x64xf32>
    %565 = arith.addf %296, %564 : vector<8x64xf32>
    %c0_126 = arith.constant 0 : index
    %c0_127 = arith.constant 0 : index
    %c0_128 = arith.constant 0 : index
    %566 = vector.load %arg11[%c0_126, %c0_127, %c0_128] : memref<2x64x32xf32, #tpu.memory_space<vmem>>, vector<1x64x32xf32>
    %567 = vector.shape_cast %566 : vector<1x64x32xf32> to vector<64x32xf32>
    %cst_129 = arith.constant dense<0.000000e+00> : vector<8x32xf32>
    %568 = tpu.matmul %565, %567, %cst_129 {dimension_numbers = #tpu.dot_dimension_numbers<[1], [0], [0], [1], [0, 0, 1, 1], [], []>} : vector<8x64xf32>, vector<64x32xf32>, vector<8x32xf32> -> vector<8x32xf32>
    %569 = arith.addf %568, %6 : vector<8x32xf32>
    %c1_130 = arith.constant 1 : index
    %c0_131 = arith.constant 0 : index
    %c0_132 = arith.constant 0 : index
    %570 = vector.load %arg2[%c1_130, %c0_131, %c0_132] : memref<2x1x32xf32, #tpu.memory_space<vmem>>, vector<1x1x32xf32>
    %571 = vector.shape_cast %570 : vector<1x1x32xf32> to vector<1x32xf32>
    %572 = arith.mulf %569, %569 : vector<8x32xf32>
    %cst_133 = arith.constant dense<0.000000e+00> : vector<8xf32>
    %573 = vector.multi_reduction <add>, %572, %cst_133 [1] : vector<8x32xf32> to vector<8xf32>
    %574 = vector.shape_cast %573 : vector<8xf32> to vector<8x1xf32>
    %cst_134 = arith.constant 3.200000e+01 : f32
    %575 = vector.broadcast %cst_134 : f32 to vector<8x1xf32>
    %576 = arith.divf %574, %575 : vector<8x1xf32>
    %cst_135 = arith.constant 9.99999974E-6 : f32
    %577 = vector.broadcast %cst_135 : f32 to vector<8x1xf32>
    %578 = arith.addf %576, %577 : vector<8x1xf32>
    %579 = math.rsqrt %578 : vector<8x1xf32>
    %580 = vector.broadcast %579 : vector<8x1xf32> to vector<8x32xf32>
    %581 = arith.mulf %569, %580 : vector<8x32xf32>
    %582 = vector.broadcast %571 : vector<1x32xf32> to vector<8x32xf32>
    %583 = arith.mulf %581, %582 : vector<8x32xf32>
    %c1_136 = arith.constant 1 : index
    %c0_137 = arith.constant 0 : index
    %c0_138 = arith.constant 0 : index
    %584 = vector.load %arg3[%c1_136, %c0_137, %c0_138] : memref<2x32x128xf32, #tpu.memory_space<vmem>>, vector<1x32x128xf32>
    %585 = vector.shape_cast %584 : vector<1x32x128xf32> to vector<32x128xf32>
    %cst_139 = arith.constant dense<0.000000e+00> : vector<8x128xf32>
    %586 = tpu.matmul %583, %585, %cst_139 {dimension_numbers = #tpu.dot_dimension_numbers<[1], [0], [0], [1], [0, 0, 1, 1], [], []>} : vector<8x32xf32>, vector<32x128xf32>, vector<8x128xf32> -> vector<8x128xf32>
    %587 = vector.extract_strided_slice %586 {offsets = [0, 64], sizes = [8, 64], strides = [1, 1]} : vector<8x128xf32> to vector<8x64xf32>
    %588 = vector.extract_strided_slice %586 {offsets = [0, 0], sizes = [8, 64], strides = [1, 1]} : vector<8x128xf32> to vector<8x64xf32>
    %c3_140 = arith.constant 3 : index
    %c0_141 = arith.constant 0 : index
    %589 = vector.load %arg14[%c3_140, %c0_141] : memref<14x64xf32, #tpu.memory_space<vmem>>, vector<8x64xf32>
    tpu.vector_store %arg14[%c3_140, %c0_141], %588 {strides = array<i32>} : memref<14x64xf32, #tpu.memory_space<vmem>>, vector<8x64xf32>,
    %cst_142 = arith.constant 0.000000e+00 : f32
    %590 = vector.broadcast %cst_142 : f32 to vector<8x64xf32>
    %c1_143 = arith.constant 1 : index
    %c0_144 = arith.constant 0 : index
    %c0_145 = arith.constant 0 : index
    %c0_146 = arith.constant 0 : index
    %591 = vector.load %arg4[%c1_143, %c0_144, %c0_145, %c0_146] : memref<2x2x4x64xf32, #tpu.memory_space<vmem>>, vector<1x1x4x64xf32>
    %592 = vector.shape_cast %591 : vector<1x1x4x64xf32> to vector<4x64xf32>
    %c1_147 = arith.constant 1 : index
    %c0_148 = arith.constant 0 : index
    %c0_149 = arith.constant 0 : index
    %c0_150 = arith.constant 0 : index
    %593 = vector.load %arg5[%c1_147, %c0_148, %c0_149, %c0_150] : memref<2x2x1x64xf32, #tpu.memory_space<vmem>>, vector<1x1x1x64xf32>
    %594 = vector.shape_cast %593 : vector<1x1x1x64xf32> to vector<1x64xf32>
    %c1_151 = arith.constant 1 : index
    %c0_152 = arith.constant 0 : index
    %c0_153 = arith.constant 0 : index
    %c0_154 = arith.constant 0 : index
    %595 = vector.load %arg6[%c1_151, %c0_152, %c0_153, %c0_154] : memref<2x2x64x34xf32, #tpu.memory_space<vmem>>, vector<1x1x64x34xf32>
    %596 = vector.shape_cast %595 : vector<1x1x64x34xf32> to vector<64x34xf32>
    %c1_155 = arith.constant 1 : index
    %c0_156 = arith.constant 0 : index
    %c0_157 = arith.constant 0 : index
    %c0_158 = arith.constant 0 : index
    %597 = vector.load %arg7[%c1_155, %c0_156, %c0_157, %c0_158] : memref<2x2x2x64xf32, #tpu.memory_space<vmem>>, vector<1x1x2x64xf32>
    %598 = vector.shape_cast %597 : vector<1x1x2x64xf32> to vector<2x64xf32>
    %c1_159 = arith.constant 1 : index
    %c0_160 = arith.constant 0 : index
    %c0_161 = arith.constant 0 : index
    %c0_162 = arith.constant 0 : index
    %599 = vector.load %arg8[%c1_159, %c0_160, %c0_161, %c0_162] : memref<2x2x1x64xf32, #tpu.memory_space<vmem>>, vector<1x1x1x64xf32>
    %600 = vector.shape_cast %599 : vector<1x1x1x64xf32> to vector<1x64xf32>
    %c1_163 = arith.constant 1 : index
    %c0_164 = arith.constant 0 : index
    %c0_165 = arith.constant 0 : index
    %c0_166 = arith.constant 0 : index
    %601 = vector.load %arg9[%c1_163, %c0_164, %c0_165, %c0_166] : memref<2x2x16x64xf32, #tpu.memory_space<vmem>>, vector<1x1x16x64xf32>
    %602 = vector.shape_cast %601 : vector<1x1x16x64xf32> to vector<16x64xf32>
    %c1_167 = arith.constant 1 : index
    %c0_168 = arith.constant 0 : index
    %c0_169 = arith.constant 0 : index
    %c0_170 = arith.constant 0 : index
    %603 = vector.load %arg10[%c1_167, %c0_168, %c0_169, %c0_170] : memref<2x2x1x64xf32, #tpu.memory_space<vmem>>, vector<1x1x1x64xf32>
    %604 = vector.shape_cast %603 : vector<1x1x1x64xf32> to vector<1x64xf32>
    %c0_171 = arith.constant 0 : index
    %c0_172 = arith.constant 0 : index
    %605 = vector.load %arg14[%c0_171, %c0_172] : memref<14x64xf32, #tpu.memory_space<vmem>>, vector<8x64xf32>
    %606 = vector.extract_strided_slice %592 {offsets = [0, 0], sizes = [1, 64], strides = [1, 1]} : vector<4x64xf32> to vector<1x64xf32>
    %607 = vector.broadcast %606 : vector<1x64xf32> to vector<8x64xf32>
    %608 = arith.mulf %605, %607 : vector<8x64xf32>
    %609 = vector.broadcast %594 : vector<1x64xf32> to vector<8x64xf32>
    %610 = arith.addf %609, %608 : vector<8x64xf32>
    %c1_173 = arith.constant 1 : index
    %c0_174 = arith.constant 0 : index
    %611 = vector.load %arg14[%c1_173, %c0_174] : memref<14x64xf32, #tpu.memory_space<vmem>>, vector<8x64xf32>
    %612 = vector.extract_strided_slice %592 {offsets = [1, 0], sizes = [1, 64], strides = [1, 1]} : vector<4x64xf32> to vector<1x64xf32>
    %613 = vector.broadcast %612 : vector<1x64xf32> to vector<8x64xf32>
    %614 = arith.mulf %611, %613 : vector<8x64xf32>
    %615 = arith.addf %610, %614 : vector<8x64xf32>
    %c2_175 = arith.constant 2 : index
    %c0_176 = arith.constant 0 : index
    %616 = vector.load %arg14[%c2_175, %c0_176] : memref<14x64xf32, #tpu.memory_space<vmem>>, vector<8x64xf32>
    %617 = vector.extract_strided_slice %592 {offsets = [2, 0], sizes = [1, 64], strides = [1, 1]} : vector<4x64xf32> to vector<1x64xf32>
    %618 = vector.broadcast %617 : vector<1x64xf32> to vector<8x64xf32>
    %619 = arith.mulf %616, %618 : vector<8x64xf32>
    %620 = arith.addf %615, %619 : vector<8x64xf32>
    %c3_177 = arith.constant 3 : index
    %c0_178 = arith.constant 0 : index
    %621 = vector.load %arg14[%c3_177, %c0_178] : memref<14x64xf32, #tpu.memory_space<vmem>>, vector<8x64xf32>
    %622 = vector.extract_strided_slice %592 {offsets = [3, 0], sizes = [1, 64], strides = [1, 1]} : vector<4x64xf32> to vector<1x64xf32>
    %623 = vector.broadcast %622 : vector<1x64xf32> to vector<8x64xf32>
    %624 = arith.mulf %621, %623 : vector<8x64xf32>
    %625 = arith.addf %620, %624 : vector<8x64xf32>
    %626 = arith.negf %625 : vector<8x64xf32>
    %627 = math.exp %626 : vector<8x64xf32>
    %cst_179 = arith.constant 1.000000e+00 : f32
    %628 = vector.broadcast %cst_179 : f32 to vector<8x64xf32>
    %629 = arith.addf %628, %627 : vector<8x64xf32>
    %630 = arith.divf %628, %629 : vector<8x64xf32>
    %631 = arith.mulf %625, %630 : vector<8x64xf32>
    %cst_180 = arith.constant dense<0.000000e+00> : vector<8x34xf32>
    %632 = tpu.matmul %631, %596, %cst_180 {dimension_numbers = #tpu.dot_dimension_numbers<[1], [0], [0], [1], [0, 0, 1, 1], [], []>} : vector<8x64xf32>, vector<64x34xf32>, vector<8x34xf32> -> vector<8x34xf32>
    %633 = vector.extract_strided_slice %632 {offsets = [0, 0], sizes = [8, 2], strides = [1, 1]} : vector<8x34xf32> to vector<8x2xf32>
    %634 = vector.extract_strided_slice %632 {offsets = [0, 2], sizes = [8, 16], strides = [1, 1]} : vector<8x34xf32> to vector<8x16xf32>
    %635 = tpu.transpose %634, [1, 0] : vector<8x16xf32> -> vector<16x8xf32>
    %636 = vector.extract_strided_slice %632 {offsets = [0, 18], sizes = [8, 16], strides = [1, 1]} : vector<8x34xf32> to vector<8x16xf32>
    %637 = tpu.transpose %636, [1, 0] : vector<8x16xf32> -> vector<16x8xf32>
    %cst_181 = arith.constant dense<0.000000e+00> : vector<8x64xf32>
    %638 = tpu.matmul %633, %598, %cst_181 {dimension_numbers = #tpu.dot_dimension_numbers<[1], [0], [0], [1], [0, 0, 1, 1], [], []>} : vector<8x2xf32>, vector<2x64xf32>, vector<8x64xf32> -> vector<8x64xf32>
    %639 = vector.broadcast %600 : vector<1x64xf32> to vector<8x64xf32>
    %640 = arith.addf %638, %639 : vector<8x64xf32>
    %cst_182 = arith.constant 0.000000e+00 : f32
    %641 = vector.broadcast %cst_182 : f32 to vector<8x64xf32>
    %642 = arith.maximumf %640, %641 : vector<8x64xf32>
    %643 = vector.broadcast %cst_182 : f32 to vector<8x64xf32>
    %644 = arith.subf %640, %643 : vector<8x64xf32>
    %645 = arith.cmpf one, %644, %644 : vector<8x64xf32>
    %646 = vector.broadcast %cst_182 : f32 to vector<8x64xf32>
    %647 = arith.addf %640, %646 : vector<8x64xf32>
    %648 = math.absf %644 : vector<8x64xf32>
    %cst_183 = arith.constant 0.000000e+00 : f32
    %649 = vector.broadcast %cst_183 : f32 to vector<8x64xf32>
    %650 = arith.subf %649, %648 : vector<8x64xf32>
    %651 = math.exp %650 : vector<8x64xf32>
    %652 = math.log1p %651 : vector<8x64xf32>
    %653 = arith.addf %642, %652 : vector<8x64xf32>
    %654 = arith.select %645, %647, %653 : vector<8x64xi1>, vector<8x64xf32>
    %655 = math.exp %602 : vector<16x64xf32>
    %cst_184 = arith.constant 0.000000e+00 : f32
    %656 = vector.broadcast %cst_184 : f32 to vector<16x64xf32>
    %657 = arith.subf %656, %655 : vector<16x64xf32>
    %cst_185 = arith.constant 0.000000e+00 : f32
    %658 = vector.broadcast %cst_185 : f32 to vector<16x64xf32>
    %cst_186 = arith.constant 0.000000e+00 : f32
    %659 = vector.broadcast %cst_186 : f32 to vector<8x64xf32>
    %660 = vector.extract_strided_slice %654 {offsets = [0, 0], sizes = [1, 64], strides = [1, 1]} : vector<8x64xf32> to vector<1x64xf32>
    %661 = vector.extract_strided_slice %631 {offsets = [0, 0], sizes = [1, 64], strides = [1, 1]} : vector<8x64xf32> to vector<1x64xf32>
    %662 = vector.extract_strided_slice %635 {offsets = [0, 0], sizes = [16, 1], strides = [1, 1]} : vector<16x8xf32> to vector<16x1xf32>
    %663 = vector.extract_strided_slice %637 {offsets = [0, 0], sizes = [16, 1], strides = [1, 1]} : vector<16x8xf32> to vector<16x1xf32>
    %664 = vector.broadcast %660 : vector<1x64xf32> to vector<16x64xf32>
    %665 = arith.mulf %664, %657 : vector<16x64xf32>
    %666 = math.exp %665 : vector<16x64xf32>
    %667 = arith.mulf %666, %658 : vector<16x64xf32>
    %668 = arith.mulf %660, %661 : vector<1x64xf32>
    %669 = vector.broadcast %668 : vector<1x64xf32> to vector<16x64xf32>
    %670 = vector.broadcast %662 : vector<16x1xf32> to vector<16x64xf32>
    %671 = arith.mulf %669, %670 : vector<16x64xf32>
    %672 = arith.addf %667, %671 : vector<16x64xf32>
    %673 = vector.broadcast %663 : vector<16x1xf32> to vector<16x64xf32>
    %674 = arith.mulf %673, %672 : vector<16x64xf32>
    %cst_187 = arith.constant dense<0.000000e+00> : vector<64xf32>
    %675 = vector.multi_reduction <add>, %674, %cst_187 [0] : vector<16x64xf32> to vector<64xf32>
    %676 = vector.shape_cast %675 : vector<64xf32> to vector<1x64xf32>
    %677 = arith.mulf %604, %661 : vector<1x64xf32>
    %678 = arith.addf %676, %677 : vector<1x64xf32>
    %c0_i32_188 = arith.constant 0 : i32
    %679 = vector.broadcast %c0_i32_188 : i32 to vector<8x64xi32>
    %680 = arith.cmpi eq, %0, %679 : vector<8x64xi32>
    %681 = vector.shape_cast %678 : vector<1x64xf32> to vector<1x64xf32>
    %682 = vector.broadcast %681 : vector<1x64xf32> to vector<8x64xf32>
    %683 = arith.select %680, %682, %659 : vector<8x64xi1>, vector<8x64xf32>
    %684 = vector.extract_strided_slice %654 {offsets = [1, 0], sizes = [1, 64], strides = [1, 1]} : vector<8x64xf32> to vector<1x64xf32>
    %685 = vector.extract_strided_slice %631 {offsets = [1, 0], sizes = [1, 64], strides = [1, 1]} : vector<8x64xf32> to vector<1x64xf32>
    %686 = vector.extract_strided_slice %635 {offsets = [0, 1], sizes = [16, 1], strides = [1, 1]} : vector<16x8xf32> to vector<16x1xf32>
    %687 = vector.extract_strided_slice %637 {offsets = [0, 1], sizes = [16, 1], strides = [1, 1]} : vector<16x8xf32> to vector<16x1xf32>
    %688 = vector.broadcast %684 : vector<1x64xf32> to vector<16x64xf32>
    %689 = arith.mulf %688, %657 : vector<16x64xf32>
    %690 = math.exp %689 : vector<16x64xf32>
    %691 = arith.mulf %690, %672 : vector<16x64xf32>
    %692 = arith.mulf %684, %685 : vector<1x64xf32>
    %693 = vector.broadcast %692 : vector<1x64xf32> to vector<16x64xf32>
    %694 = vector.broadcast %686 : vector<16x1xf32> to vector<16x64xf32>
    %695 = arith.mulf %693, %694 : vector<16x64xf32>
    %696 = arith.addf %691, %695 : vector<16x64xf32>
    %697 = vector.broadcast %687 : vector<16x1xf32> to vector<16x64xf32>
    %698 = arith.mulf %697, %696 : vector<16x64xf32>
    %cst_189 = arith.constant dense<0.000000e+00> : vector<64xf32>
    %699 = vector.multi_reduction <add>, %698, %cst_189 [0] : vector<16x64xf32> to vector<64xf32>
    %700 = vector.shape_cast %699 : vector<64xf32> to vector<1x64xf32>
    %701 = arith.mulf %604, %685 : vector<1x64xf32>
    %702 = arith.addf %700, %701 : vector<1x64xf32>
    %c1_i32_190 = arith.constant 1 : i32
    %703 = vector.broadcast %c1_i32_190 : i32 to vector<8x64xi32>
    %704 = arith.cmpi eq, %0, %703 : vector<8x64xi32>
    %705 = vector.shape_cast %702 : vector<1x64xf32> to vector<1x64xf32>
    %706 = vector.broadcast %705 : vector<1x64xf32> to vector<8x64xf32>
    %707 = arith.select %704, %706, %683 : vector<8x64xi1>, vector<8x64xf32>
    %708 = vector.extract_strided_slice %654 {offsets = [2, 0], sizes = [1, 64], strides = [1, 1]} : vector<8x64xf32> to vector<1x64xf32>
    %709 = vector.extract_strided_slice %631 {offsets = [2, 0], sizes = [1, 64], strides = [1, 1]} : vector<8x64xf32> to vector<1x64xf32>
    %710 = vector.extract_strided_slice %635 {offsets = [0, 2], sizes = [16, 1], strides = [1, 1]} : vector<16x8xf32> to vector<16x1xf32>
    %711 = vector.extract_strided_slice %637 {offsets = [0, 2], sizes = [16, 1], strides = [1, 1]} : vector<16x8xf32> to vector<16x1xf32>
    %712 = vector.broadcast %708 : vector<1x64xf32> to vector<16x64xf32>
    %713 = arith.mulf %712, %657 : vector<16x64xf32>
    %714 = math.exp %713 : vector<16x64xf32>
    %715 = arith.mulf %714, %696 : vector<16x64xf32>
    %716 = arith.mulf %708, %709 : vector<1x64xf32>
    %717 = vector.broadcast %716 : vector<1x64xf32> to vector<16x64xf32>
    %718 = vector.broadcast %710 : vector<16x1xf32> to vector<16x64xf32>
    %719 = arith.mulf %717, %718 : vector<16x64xf32>
    %720 = arith.addf %715, %719 : vector<16x64xf32>
    %721 = vector.broadcast %711 : vector<16x1xf32> to vector<16x64xf32>
    %722 = arith.mulf %721, %720 : vector<16x64xf32>
    %cst_191 = arith.constant dense<0.000000e+00> : vector<64xf32>
    %723 = vector.multi_reduction <add>, %722, %cst_191 [0] : vector<16x64xf32> to vector<64xf32>
    %724 = vector.shape_cast %723 : vector<64xf32> to vector<1x64xf32>
    %725 = arith.mulf %604, %709 : vector<1x64xf32>
    %726 = arith.addf %724, %725 : vector<1x64xf32>
    %c2_i32_192 = arith.constant 2 : i32
    %727 = vector.broadcast %c2_i32_192 : i32 to vector<8x64xi32>
    %728 = arith.cmpi eq, %0, %727 : vector<8x64xi32>
    %729 = vector.shape_cast %726 : vector<1x64xf32> to vector<1x64xf32>
    %730 = vector.broadcast %729 : vector<1x64xf32> to vector<8x64xf32>
    %731 = arith.select %728, %730, %707 : vector<8x64xi1>, vector<8x64xf32>
    %732 = vector.extract_strided_slice %654 {offsets = [3, 0], sizes = [1, 64], strides = [1, 1]} : vector<8x64xf32> to vector<1x64xf32>
    %733 = vector.extract_strided_slice %631 {offsets = [3, 0], sizes = [1, 64], strides = [1, 1]} : vector<8x64xf32> to vector<1x64xf32>
    %734 = vector.extract_strided_slice %635 {offsets = [0, 3], sizes = [16, 1], strides = [1, 1]} : vector<16x8xf32> to vector<16x1xf32>
    %735 = vector.extract_strided_slice %637 {offsets = [0, 3], sizes = [16, 1], strides = [1, 1]} : vector<16x8xf32> to vector<16x1xf32>
    %736 = vector.broadcast %732 : vector<1x64xf32> to vector<16x64xf32>
    %737 = arith.mulf %736, %657 : vector<16x64xf32>
    %738 = math.exp %737 : vector<16x64xf32>
    %739 = arith.mulf %738, %720 : vector<16x64xf32>
    %740 = arith.mulf %732, %733 : vector<1x64xf32>
    %741 = vector.broadcast %740 : vector<1x64xf32> to vector<16x64xf32>
    %742 = vector.broadcast %734 : vector<16x1xf32> to vector<16x64xf32>
    %743 = arith.mulf %741, %742 : vector<16x64xf32>
    %744 = arith.addf %739, %743 : vector<16x64xf32>
    %745 = vector.broadcast %735 : vector<16x1xf32> to vector<16x64xf32>
    %746 = arith.mulf %745, %744 : vector<16x64xf32>
    %cst_193 = arith.constant dense<0.000000e+00> : vector<64xf32>
    %747 = vector.multi_reduction <add>, %746, %cst_193 [0] : vector<16x64xf32> to vector<64xf32>
    %748 = vector.shape_cast %747 : vector<64xf32> to vector<1x64xf32>
    %749 = arith.mulf %604, %733 : vector<1x64xf32>
    %750 = arith.addf %748, %749 : vector<1x64xf32>
    %c3_i32_194 = arith.constant 3 : i32
    %751 = vector.broadcast %c3_i32_194 : i32 to vector<8x64xi32>
    %752 = arith.cmpi eq, %0, %751 : vector<8x64xi32>
    %753 = vector.shape_cast %750 : vector<1x64xf32> to vector<1x64xf32>
    %754 = vector.broadcast %753 : vector<1x64xf32> to vector<8x64xf32>
    %755 = arith.select %752, %754, %731 : vector<8x64xi1>, vector<8x64xf32>
    %756 = vector.extract_strided_slice %654 {offsets = [4, 0], sizes = [1, 64], strides = [1, 1]} : vector<8x64xf32> to vector<1x64xf32>
    %757 = vector.extract_strided_slice %631 {offsets = [4, 0], sizes = [1, 64], strides = [1, 1]} : vector<8x64xf32> to vector<1x64xf32>
    %758 = vector.extract_strided_slice %635 {offsets = [0, 4], sizes = [16, 1], strides = [1, 1]} : vector<16x8xf32> to vector<16x1xf32>
    %759 = vector.extract_strided_slice %637 {offsets = [0, 4], sizes = [16, 1], strides = [1, 1]} : vector<16x8xf32> to vector<16x1xf32>
    %760 = vector.broadcast %756 : vector<1x64xf32> to vector<16x64xf32>
    %761 = arith.mulf %760, %657 : vector<16x64xf32>
    %762 = math.exp %761 : vector<16x64xf32>
    %763 = arith.mulf %762, %744 : vector<16x64xf32>
    %764 = arith.mulf %756, %757 : vector<1x64xf32>
    %765 = vector.broadcast %764 : vector<1x64xf32> to vector<16x64xf32>
    %766 = vector.broadcast %758 : vector<16x1xf32> to vector<16x64xf32>
    %767 = arith.mulf %765, %766 : vector<16x64xf32>
    %768 = arith.addf %763, %767 : vector<16x64xf32>
    %769 = vector.broadcast %759 : vector<16x1xf32> to vector<16x64xf32>
    %770 = arith.mulf %769, %768 : vector<16x64xf32>
    %cst_195 = arith.constant dense<0.000000e+00> : vector<64xf32>
    %771 = vector.multi_reduction <add>, %770, %cst_195 [0] : vector<16x64xf32> to vector<64xf32>
    %772 = vector.shape_cast %771 : vector<64xf32> to vector<1x64xf32>
    %773 = arith.mulf %604, %757 : vector<1x64xf32>
    %774 = arith.addf %772, %773 : vector<1x64xf32>
    %c4_i32_196 = arith.constant 4 : i32
    %775 = vector.broadcast %c4_i32_196 : i32 to vector<8x64xi32>
    %776 = arith.cmpi eq, %0, %775 : vector<8x64xi32>
    %777 = vector.shape_cast %774 : vector<1x64xf32> to vector<1x64xf32>
    %778 = vector.broadcast %777 : vector<1x64xf32> to vector<8x64xf32>
    %779 = arith.select %776, %778, %755 : vector<8x64xi1>, vector<8x64xf32>
    %780 = vector.extract_strided_slice %654 {offsets = [5, 0], sizes = [1, 64], strides = [1, 1]} : vector<8x64xf32> to vector<1x64xf32>
    %781 = vector.extract_strided_slice %631 {offsets = [5, 0], sizes = [1, 64], strides = [1, 1]} : vector<8x64xf32> to vector<1x64xf32>
    %782 = vector.extract_strided_slice %635 {offsets = [0, 5], sizes = [16, 1], strides = [1, 1]} : vector<16x8xf32> to vector<16x1xf32>
    %783 = vector.extract_strided_slice %637 {offsets = [0, 5], sizes = [16, 1], strides = [1, 1]} : vector<16x8xf32> to vector<16x1xf32>
    %784 = vector.broadcast %780 : vector<1x64xf32> to vector<16x64xf32>
    %785 = arith.mulf %784, %657 : vector<16x64xf32>
    %786 = math.exp %785 : vector<16x64xf32>
    %787 = arith.mulf %786, %768 : vector<16x64xf32>
    %788 = arith.mulf %780, %781 : vector<1x64xf32>
    %789 = vector.broadcast %788 : vector<1x64xf32> to vector<16x64xf32>
    %790 = vector.broadcast %782 : vector<16x1xf32> to vector<16x64xf32>
    %791 = arith.mulf %789, %790 : vector<16x64xf32>
    %792 = arith.addf %787, %791 : vector<16x64xf32>
    %793 = vector.broadcast %783 : vector<16x1xf32> to vector<16x64xf32>
    %794 = arith.mulf %793, %792 : vector<16x64xf32>
    %cst_197 = arith.constant dense<0.000000e+00> : vector<64xf32>
    %795 = vector.multi_reduction <add>, %794, %cst_197 [0] : vector<16x64xf32> to vector<64xf32>
    %796 = vector.shape_cast %795 : vector<64xf32> to vector<1x64xf32>
    %797 = arith.mulf %604, %781 : vector<1x64xf32>
    %798 = arith.addf %796, %797 : vector<1x64xf32>
    %c5_i32_198 = arith.constant 5 : i32
    %799 = vector.broadcast %c5_i32_198 : i32 to vector<8x64xi32>
    %800 = arith.cmpi eq, %0, %799 : vector<8x64xi32>
    %801 = vector.shape_cast %798 : vector<1x64xf32> to vector<1x64xf32>
    %802 = vector.broadcast %801 : vector<1x64xf32> to vector<8x64xf32>
    %803 = arith.select %800, %802, %779 : vector<8x64xi1>, vector<8x64xf32>
    %804 = vector.extract_strided_slice %654 {offsets = [6, 0], sizes = [1, 64], strides = [1, 1]} : vector<8x64xf32> to vector<1x64xf32>
    %805 = vector.extract_strided_slice %631 {offsets = [6, 0], sizes = [1, 64], strides = [1, 1]} : vector<8x64xf32> to vector<1x64xf32>
    %806 = vector.extract_strided_slice %635 {offsets = [0, 6], sizes = [16, 1], strides = [1, 1]} : vector<16x8xf32> to vector<16x1xf32>
    %807 = vector.extract_strided_slice %637 {offsets = [0, 6], sizes = [16, 1], strides = [1, 1]} : vector<16x8xf32> to vector<16x1xf32>
    %808 = vector.broadcast %804 : vector<1x64xf32> to vector<16x64xf32>
    %809 = arith.mulf %808, %657 : vector<16x64xf32>
    %810 = math.exp %809 : vector<16x64xf32>
    %811 = arith.mulf %810, %792 : vector<16x64xf32>
    %812 = arith.mulf %804, %805 : vector<1x64xf32>
    %813 = vector.broadcast %812 : vector<1x64xf32> to vector<16x64xf32>
    %814 = vector.broadcast %806 : vector<16x1xf32> to vector<16x64xf32>
    %815 = arith.mulf %813, %814 : vector<16x64xf32>
    %816 = arith.addf %811, %815 : vector<16x64xf32>
    %817 = vector.broadcast %807 : vector<16x1xf32> to vector<16x64xf32>
    %818 = arith.mulf %817, %816 : vector<16x64xf32>
    %cst_199 = arith.constant dense<0.000000e+00> : vector<64xf32>
    %819 = vector.multi_reduction <add>, %818, %cst_199 [0] : vector<16x64xf32> to vector<64xf32>
    %820 = vector.shape_cast %819 : vector<64xf32> to vector<1x64xf32>
    %821 = arith.mulf %604, %805 : vector<1x64xf32>
    %822 = arith.addf %820, %821 : vector<1x64xf32>
    %c6_i32_200 = arith.constant 6 : i32
    %823 = vector.broadcast %c6_i32_200 : i32 to vector<8x64xi32>
    %824 = arith.cmpi eq, %0, %823 : vector<8x64xi32>
    %825 = vector.shape_cast %822 : vector<1x64xf32> to vector<1x64xf32>
    %826 = vector.broadcast %825 : vector<1x64xf32> to vector<8x64xf32>
    %827 = arith.select %824, %826, %803 : vector<8x64xi1>, vector<8x64xf32>
    %828 = vector.extract_strided_slice %654 {offsets = [7, 0], sizes = [1, 64], strides = [1, 1]} : vector<8x64xf32> to vector<1x64xf32>
    %829 = vector.extract_strided_slice %631 {offsets = [7, 0], sizes = [1, 64], strides = [1, 1]} : vector<8x64xf32> to vector<1x64xf32>
    %830 = vector.extract_strided_slice %635 {offsets = [0, 7], sizes = [16, 1], strides = [1, 1]} : vector<16x8xf32> to vector<16x1xf32>
    %831 = vector.extract_strided_slice %637 {offsets = [0, 7], sizes = [16, 1], strides = [1, 1]} : vector<16x8xf32> to vector<16x1xf32>
    %832 = vector.broadcast %828 : vector<1x64xf32> to vector<16x64xf32>
    %833 = arith.mulf %832, %657 : vector<16x64xf32>
    %834 = math.exp %833 : vector<16x64xf32>
    %835 = arith.mulf %834, %816 : vector<16x64xf32>
    %836 = arith.mulf %828, %829 : vector<1x64xf32>
    %837 = vector.broadcast %836 : vector<1x64xf32> to vector<16x64xf32>
    %838 = vector.broadcast %830 : vector<16x1xf32> to vector<16x64xf32>
    %839 = arith.mulf %837, %838 : vector<16x64xf32>
    %840 = arith.addf %835, %839 : vector<16x64xf32>
    %841 = vector.broadcast %831 : vector<16x1xf32> to vector<16x64xf32>
    %842 = arith.mulf %841, %840 : vector<16x64xf32>
    %cst_201 = arith.constant dense<0.000000e+00> : vector<64xf32>
    %843 = vector.multi_reduction <add>, %842, %cst_201 [0] : vector<16x64xf32> to vector<64xf32>
    %844 = vector.shape_cast %843 : vector<64xf32> to vector<1x64xf32>
    %845 = arith.mulf %604, %829 : vector<1x64xf32>
    %846 = arith.addf %844, %845 : vector<1x64xf32>
    %c7_i32_202 = arith.constant 7 : i32
    %847 = vector.broadcast %c7_i32_202 : i32 to vector<8x64xi32>
    %848 = arith.cmpi eq, %0, %847 : vector<8x64xi32>
    %849 = vector.shape_cast %846 : vector<1x64xf32> to vector<1x64xf32>
    %850 = vector.broadcast %849 : vector<1x64xf32> to vector<8x64xf32>
    %851 = arith.select %848, %850, %827 : vector<8x64xi1>, vector<8x64xf32>
    %852 = arith.negf %587 : vector<8x64xf32>
    %853 = math.exp %852 : vector<8x64xf32>
    %cst_203 = arith.constant 1.000000e+00 : f32
    %854 = vector.broadcast %cst_203 : f32 to vector<8x64xf32>
    %855 = arith.addf %854, %853 : vector<8x64xf32>
    %856 = arith.divf %854, %855 : vector<8x64xf32>
    %857 = arith.mulf %587, %856 : vector<8x64xf32>
    %858 = arith.mulf %851, %857 : vector<8x64xf32>
    %859 = arith.addf %590, %858 : vector<8x64xf32>
    %c1_204 = arith.constant 1 : index
    %c1_205 = arith.constant 1 : index
    %c0_206 = arith.constant 0 : index
    %c0_207 = arith.constant 0 : index
    %860 = vector.load %arg4[%c1_204, %c1_205, %c0_206, %c0_207] : memref<2x2x4x64xf32, #tpu.memory_space<vmem>>, vector<1x1x4x64xf32>
    %861 = vector.shape_cast %860 : vector<1x1x4x64xf32> to vector<4x64xf32>
    %c1_208 = arith.constant 1 : index
    %c1_209 = arith.constant 1 : index
    %c0_210 = arith.constant 0 : index
    %c0_211 = arith.constant 0 : index
    %862 = vector.load %arg5[%c1_208, %c1_209, %c0_210, %c0_211] : memref<2x2x1x64xf32, #tpu.memory_space<vmem>>, vector<1x1x1x64xf32>
    %863 = vector.shape_cast %862 : vector<1x1x1x64xf32> to vector<1x64xf32>
    %c1_212 = arith.constant 1 : index
    %c1_213 = arith.constant 1 : index
    %c0_214 = arith.constant 0 : index
    %c0_215 = arith.constant 0 : index
    %864 = vector.load %arg6[%c1_212, %c1_213, %c0_214, %c0_215] : memref<2x2x64x34xf32, #tpu.memory_space<vmem>>, vector<1x1x64x34xf32>
    %865 = vector.shape_cast %864 : vector<1x1x64x34xf32> to vector<64x34xf32>
    %c1_216 = arith.constant 1 : index
    %c1_217 = arith.constant 1 : index
    %c0_218 = arith.constant 0 : index
    %c0_219 = arith.constant 0 : index
    %866 = vector.load %arg7[%c1_216, %c1_217, %c0_218, %c0_219] : memref<2x2x2x64xf32, #tpu.memory_space<vmem>>, vector<1x1x2x64xf32>
    %867 = vector.shape_cast %866 : vector<1x1x2x64xf32> to vector<2x64xf32>
    %c1_220 = arith.constant 1 : index
    %c1_221 = arith.constant 1 : index
    %c0_222 = arith.constant 0 : index
    %c0_223 = arith.constant 0 : index
    %868 = vector.load %arg8[%c1_220, %c1_221, %c0_222, %c0_223] : memref<2x2x1x64xf32, #tpu.memory_space<vmem>>, vector<1x1x1x64xf32>
    %869 = vector.shape_cast %868 : vector<1x1x1x64xf32> to vector<1x64xf32>
    %c1_224 = arith.constant 1 : index
    %c1_225 = arith.constant 1 : index
    %c0_226 = arith.constant 0 : index
    %c0_227 = arith.constant 0 : index
    %870 = vector.load %arg9[%c1_224, %c1_225, %c0_226, %c0_227] : memref<2x2x16x64xf32, #tpu.memory_space<vmem>>, vector<1x1x16x64xf32>
    %871 = vector.shape_cast %870 : vector<1x1x16x64xf32> to vector<16x64xf32>
    %c1_228 = arith.constant 1 : index
    %c1_229 = arith.constant 1 : index
    %c0_230 = arith.constant 0 : index
    %c0_231 = arith.constant 0 : index
    %872 = vector.load %arg10[%c1_228, %c1_229, %c0_230, %c0_231] : memref<2x2x1x64xf32, #tpu.memory_space<vmem>>, vector<1x1x1x64xf32>
    %873 = vector.shape_cast %872 : vector<1x1x1x64xf32> to vector<1x64xf32>
    %c6_232 = arith.constant 6 : index
    %c0_233 = arith.constant 0 : index
    %874 = vector.load %arg14[%c6_232, %c0_233] : memref<14x64xf32, #tpu.memory_space<vmem>>, vector<8x64xf32>
    %875 = vector.extract_strided_slice %861 {offsets = [0, 0], sizes = [1, 64], strides = [1, 1]} : vector<4x64xf32> to vector<1x64xf32>
    %876 = vector.broadcast %875 : vector<1x64xf32> to vector<8x64xf32>
    %877 = arith.mulf %874, %876 : vector<8x64xf32>
    %878 = vector.broadcast %863 : vector<1x64xf32> to vector<8x64xf32>
    %879 = arith.addf %878, %877 : vector<8x64xf32>
    %c5_234 = arith.constant 5 : index
    %c0_235 = arith.constant 0 : index
    %880 = vector.load %arg14[%c5_234, %c0_235] : memref<14x64xf32, #tpu.memory_space<vmem>>, vector<8x64xf32>
    %881 = vector.extract_strided_slice %861 {offsets = [1, 0], sizes = [1, 64], strides = [1, 1]} : vector<4x64xf32> to vector<1x64xf32>
    %882 = vector.broadcast %881 : vector<1x64xf32> to vector<8x64xf32>
    %883 = arith.mulf %880, %882 : vector<8x64xf32>
    %884 = arith.addf %879, %883 : vector<8x64xf32>
    %c4_236 = arith.constant 4 : index
    %c0_237 = arith.constant 0 : index
    %885 = vector.load %arg14[%c4_236, %c0_237] : memref<14x64xf32, #tpu.memory_space<vmem>>, vector<8x64xf32>
    %886 = vector.extract_strided_slice %861 {offsets = [2, 0], sizes = [1, 64], strides = [1, 1]} : vector<4x64xf32> to vector<1x64xf32>
    %887 = vector.broadcast %886 : vector<1x64xf32> to vector<8x64xf32>
    %888 = arith.mulf %885, %887 : vector<8x64xf32>
    %889 = arith.addf %884, %888 : vector<8x64xf32>
    %c3_238 = arith.constant 3 : index
    %c0_239 = arith.constant 0 : index
    %890 = vector.load %arg14[%c3_238, %c0_239] : memref<14x64xf32, #tpu.memory_space<vmem>>, vector<8x64xf32>
    %891 = vector.extract_strided_slice %861 {offsets = [3, 0], sizes = [1, 64], strides = [1, 1]} : vector<4x64xf32> to vector<1x64xf32>
    %892 = vector.broadcast %891 : vector<1x64xf32> to vector<8x64xf32>
    %893 = arith.mulf %890, %892 : vector<8x64xf32>
    %894 = arith.addf %889, %893 : vector<8x64xf32>
    %895 = arith.negf %894 : vector<8x64xf32>
    %896 = math.exp %895 : vector<8x64xf32>
    %cst_240 = arith.constant 1.000000e+00 : f32
    %897 = vector.broadcast %cst_240 : f32 to vector<8x64xf32>
    %898 = arith.addf %897, %896 : vector<8x64xf32>
    %899 = arith.divf %897, %898 : vector<8x64xf32>
    %900 = arith.mulf %894, %899 : vector<8x64xf32>
    %cst_241 = arith.constant dense<0.000000e+00> : vector<8x34xf32>
    %901 = tpu.matmul %900, %865, %cst_241 {dimension_numbers = #tpu.dot_dimension_numbers<[1], [0], [0], [1], [0, 0, 1, 1], [], []>} : vector<8x64xf32>, vector<64x34xf32>, vector<8x34xf32> -> vector<8x34xf32>
    %902 = vector.extract_strided_slice %901 {offsets = [0, 0], sizes = [8, 2], strides = [1, 1]} : vector<8x34xf32> to vector<8x2xf32>
    %903 = vector.extract_strided_slice %901 {offsets = [0, 2], sizes = [8, 16], strides = [1, 1]} : vector<8x34xf32> to vector<8x16xf32>
    %904 = tpu.transpose %903, [1, 0] : vector<8x16xf32> -> vector<16x8xf32>
    %905 = vector.extract_strided_slice %901 {offsets = [0, 18], sizes = [8, 16], strides = [1, 1]} : vector<8x34xf32> to vector<8x16xf32>
    %906 = tpu.transpose %905, [1, 0] : vector<8x16xf32> -> vector<16x8xf32>
    %cst_242 = arith.constant dense<0.000000e+00> : vector<8x64xf32>
    %907 = tpu.matmul %902, %867, %cst_242 {dimension_numbers = #tpu.dot_dimension_numbers<[1], [0], [0], [1], [0, 0, 1, 1], [], []>} : vector<8x2xf32>, vector<2x64xf32>, vector<8x64xf32> -> vector<8x64xf32>
    %908 = vector.broadcast %869 : vector<1x64xf32> to vector<8x64xf32>
    %909 = arith.addf %907, %908 : vector<8x64xf32>
    %cst_243 = arith.constant 0.000000e+00 : f32
    %910 = vector.broadcast %cst_243 : f32 to vector<8x64xf32>
    %911 = arith.maximumf %909, %910 : vector<8x64xf32>
    %912 = vector.broadcast %cst_243 : f32 to vector<8x64xf32>
    %913 = arith.subf %909, %912 : vector<8x64xf32>
    %914 = arith.cmpf one, %913, %913 : vector<8x64xf32>
    %915 = vector.broadcast %cst_243 : f32 to vector<8x64xf32>
    %916 = arith.addf %909, %915 : vector<8x64xf32>
    %917 = math.absf %913 : vector<8x64xf32>
    %cst_244 = arith.constant 0.000000e+00 : f32
    %918 = vector.broadcast %cst_244 : f32 to vector<8x64xf32>
    %919 = arith.subf %918, %917 : vector<8x64xf32>
    %920 = math.exp %919 : vector<8x64xf32>
    %921 = math.log1p %920 : vector<8x64xf32>
    %922 = arith.addf %911, %921 : vector<8x64xf32>
    %923 = arith.select %914, %916, %922 : vector<8x64xi1>, vector<8x64xf32>
    %924 = math.exp %871 : vector<16x64xf32>
    %cst_245 = arith.constant 0.000000e+00 : f32
    %925 = vector.broadcast %cst_245 : f32 to vector<16x64xf32>
    %926 = arith.subf %925, %924 : vector<16x64xf32>
    %cst_246 = arith.constant 0.000000e+00 : f32
    %927 = vector.broadcast %cst_246 : f32 to vector<16x64xf32>
    %cst_247 = arith.constant 0.000000e+00 : f32
    %928 = vector.broadcast %cst_247 : f32 to vector<8x64xf32>
    %929 = vector.extract_strided_slice %923 {offsets = [7, 0], sizes = [1, 64], strides = [1, 1]} : vector<8x64xf32> to vector<1x64xf32>
    %930 = vector.extract_strided_slice %900 {offsets = [7, 0], sizes = [1, 64], strides = [1, 1]} : vector<8x64xf32> to vector<1x64xf32>
    %931 = vector.extract_strided_slice %904 {offsets = [0, 7], sizes = [16, 1], strides = [1, 1]} : vector<16x8xf32> to vector<16x1xf32>
    %932 = vector.extract_strided_slice %906 {offsets = [0, 7], sizes = [16, 1], strides = [1, 1]} : vector<16x8xf32> to vector<16x1xf32>
    %933 = vector.broadcast %929 : vector<1x64xf32> to vector<16x64xf32>
    %934 = arith.mulf %933, %926 : vector<16x64xf32>
    %935 = math.exp %934 : vector<16x64xf32>
    %936 = arith.mulf %935, %927 : vector<16x64xf32>
    %937 = arith.mulf %929, %930 : vector<1x64xf32>
    %938 = vector.broadcast %937 : vector<1x64xf32> to vector<16x64xf32>
    %939 = vector.broadcast %931 : vector<16x1xf32> to vector<16x64xf32>
    %940 = arith.mulf %938, %939 : vector<16x64xf32>
    %941 = arith.addf %936, %940 : vector<16x64xf32>
    %942 = vector.broadcast %932 : vector<16x1xf32> to vector<16x64xf32>
    %943 = arith.mulf %942, %941 : vector<16x64xf32>
    %cst_248 = arith.constant dense<0.000000e+00> : vector<64xf32>
    %944 = vector.multi_reduction <add>, %943, %cst_248 [0] : vector<16x64xf32> to vector<64xf32>
    %945 = vector.shape_cast %944 : vector<64xf32> to vector<1x64xf32>
    %946 = arith.mulf %873, %930 : vector<1x64xf32>
    %947 = arith.addf %945, %946 : vector<1x64xf32>
    %c7_i32_249 = arith.constant 7 : i32
    %948 = vector.broadcast %c7_i32_249 : i32 to vector<8x64xi32>
    %949 = arith.cmpi eq, %0, %948 : vector<8x64xi32>
    %950 = vector.shape_cast %947 : vector<1x64xf32> to vector<1x64xf32>
    %951 = vector.broadcast %950 : vector<1x64xf32> to vector<8x64xf32>
    %952 = arith.select %949, %951, %928 : vector<8x64xi1>, vector<8x64xf32>
    %953 = vector.extract_strided_slice %923 {offsets = [6, 0], sizes = [1, 64], strides = [1, 1]} : vector<8x64xf32> to vector<1x64xf32>
    %954 = vector.extract_strided_slice %900 {offsets = [6, 0], sizes = [1, 64], strides = [1, 1]} : vector<8x64xf32> to vector<1x64xf32>
    %955 = vector.extract_strided_slice %904 {offsets = [0, 6], sizes = [16, 1], strides = [1, 1]} : vector<16x8xf32> to vector<16x1xf32>
    %956 = vector.extract_strided_slice %906 {offsets = [0, 6], sizes = [16, 1], strides = [1, 1]} : vector<16x8xf32> to vector<16x1xf32>
    %957 = vector.broadcast %953 : vector<1x64xf32> to vector<16x64xf32>
    %958 = arith.mulf %957, %926 : vector<16x64xf32>
    %959 = math.exp %958 : vector<16x64xf32>
    %960 = arith.mulf %959, %941 : vector<16x64xf32>
    %961 = arith.mulf %953, %954 : vector<1x64xf32>
    %962 = vector.broadcast %961 : vector<1x64xf32> to vector<16x64xf32>
    %963 = vector.broadcast %955 : vector<16x1xf32> to vector<16x64xf32>
    %964 = arith.mulf %962, %963 : vector<16x64xf32>
    %965 = arith.addf %960, %964 : vector<16x64xf32>
    %966 = vector.broadcast %956 : vector<16x1xf32> to vector<16x64xf32>
    %967 = arith.mulf %966, %965 : vector<16x64xf32>
    %cst_250 = arith.constant dense<0.000000e+00> : vector<64xf32>
    %968 = vector.multi_reduction <add>, %967, %cst_250 [0] : vector<16x64xf32> to vector<64xf32>
    %969 = vector.shape_cast %968 : vector<64xf32> to vector<1x64xf32>
    %970 = arith.mulf %873, %954 : vector<1x64xf32>
    %971 = arith.addf %969, %970 : vector<1x64xf32>
    %c6_i32_251 = arith.constant 6 : i32
    %972 = vector.broadcast %c6_i32_251 : i32 to vector<8x64xi32>
    %973 = arith.cmpi eq, %0, %972 : vector<8x64xi32>
    %974 = vector.shape_cast %971 : vector<1x64xf32> to vector<1x64xf32>
    %975 = vector.broadcast %974 : vector<1x64xf32> to vector<8x64xf32>
    %976 = arith.select %973, %975, %952 : vector<8x64xi1>, vector<8x64xf32>
    %977 = vector.extract_strided_slice %923 {offsets = [5, 0], sizes = [1, 64], strides = [1, 1]} : vector<8x64xf32> to vector<1x64xf32>
    %978 = vector.extract_strided_slice %900 {offsets = [5, 0], sizes = [1, 64], strides = [1, 1]} : vector<8x64xf32> to vector<1x64xf32>
    %979 = vector.extract_strided_slice %904 {offsets = [0, 5], sizes = [16, 1], strides = [1, 1]} : vector<16x8xf32> to vector<16x1xf32>
    %980 = vector.extract_strided_slice %906 {offsets = [0, 5], sizes = [16, 1], strides = [1, 1]} : vector<16x8xf32> to vector<16x1xf32>
    %981 = vector.broadcast %977 : vector<1x64xf32> to vector<16x64xf32>
    %982 = arith.mulf %981, %926 : vector<16x64xf32>
    %983 = math.exp %982 : vector<16x64xf32>
    %984 = arith.mulf %983, %965 : vector<16x64xf32>
    %985 = arith.mulf %977, %978 : vector<1x64xf32>
    %986 = vector.broadcast %985 : vector<1x64xf32> to vector<16x64xf32>
    %987 = vector.broadcast %979 : vector<16x1xf32> to vector<16x64xf32>
    %988 = arith.mulf %986, %987 : vector<16x64xf32>
    %989 = arith.addf %984, %988 : vector<16x64xf32>
    %990 = vector.broadcast %980 : vector<16x1xf32> to vector<16x64xf32>
    %991 = arith.mulf %990, %989 : vector<16x64xf32>
    %cst_252 = arith.constant dense<0.000000e+00> : vector<64xf32>
    %992 = vector.multi_reduction <add>, %991, %cst_252 [0] : vector<16x64xf32> to vector<64xf32>
    %993 = vector.shape_cast %992 : vector<64xf32> to vector<1x64xf32>
    %994 = arith.mulf %873, %978 : vector<1x64xf32>
    %995 = arith.addf %993, %994 : vector<1x64xf32>
    %c5_i32_253 = arith.constant 5 : i32
    %996 = vector.broadcast %c5_i32_253 : i32 to vector<8x64xi32>
    %997 = arith.cmpi eq, %0, %996 : vector<8x64xi32>
    %998 = vector.shape_cast %995 : vector<1x64xf32> to vector<1x64xf32>
    %999 = vector.broadcast %998 : vector<1x64xf32> to vector<8x64xf32>
    %1000 = arith.select %997, %999, %976 : vector<8x64xi1>, vector<8x64xf32>
    %1001 = vector.extract_strided_slice %923 {offsets = [4, 0], sizes = [1, 64], strides = [1, 1]} : vector<8x64xf32> to vector<1x64xf32>
    %1002 = vector.extract_strided_slice %900 {offsets = [4, 0], sizes = [1, 64], strides = [1, 1]} : vector<8x64xf32> to vector<1x64xf32>
    %1003 = vector.extract_strided_slice %904 {offsets = [0, 4], sizes = [16, 1], strides = [1, 1]} : vector<16x8xf32> to vector<16x1xf32>
    %1004 = vector.extract_strided_slice %906 {offsets = [0, 4], sizes = [16, 1], strides = [1, 1]} : vector<16x8xf32> to vector<16x1xf32>
    %1005 = vector.broadcast %1001 : vector<1x64xf32> to vector<16x64xf32>
    %1006 = arith.mulf %1005, %926 : vector<16x64xf32>
    %1007 = math.exp %1006 : vector<16x64xf32>
    %1008 = arith.mulf %1007, %989 : vector<16x64xf32>
    %1009 = arith.mulf %1001, %1002 : vector<1x64xf32>
    %1010 = vector.broadcast %1009 : vector<1x64xf32> to vector<16x64xf32>
    %1011 = vector.broadcast %1003 : vector<16x1xf32> to vector<16x64xf32>
    %1012 = arith.mulf %1010, %1011 : vector<16x64xf32>
    %1013 = arith.addf %1008, %1012 : vector<16x64xf32>
    %1014 = vector.broadcast %1004 : vector<16x1xf32> to vector<16x64xf32>
    %1015 = arith.mulf %1014, %1013 : vector<16x64xf32>
    %cst_254 = arith.constant dense<0.000000e+00> : vector<64xf32>
    %1016 = vector.multi_reduction <add>, %1015, %cst_254 [0] : vector<16x64xf32> to vector<64xf32>
    %1017 = vector.shape_cast %1016 : vector<64xf32> to vector<1x64xf32>
    %1018 = arith.mulf %873, %1002 : vector<1x64xf32>
    %1019 = arith.addf %1017, %1018 : vector<1x64xf32>
    %c4_i32_255 = arith.constant 4 : i32
    %1020 = vector.broadcast %c4_i32_255 : i32 to vector<8x64xi32>
    %1021 = arith.cmpi eq, %0, %1020 : vector<8x64xi32>
    %1022 = vector.shape_cast %1019 : vector<1x64xf32> to vector<1x64xf32>
    %1023 = vector.broadcast %1022 : vector<1x64xf32> to vector<8x64xf32>
    %1024 = arith.select %1021, %1023, %1000 : vector<8x64xi1>, vector<8x64xf32>
    %1025 = vector.extract_strided_slice %923 {offsets = [3, 0], sizes = [1, 64], strides = [1, 1]} : vector<8x64xf32> to vector<1x64xf32>
    %1026 = vector.extract_strided_slice %900 {offsets = [3, 0], sizes = [1, 64], strides = [1, 1]} : vector<8x64xf32> to vector<1x64xf32>
    %1027 = vector.extract_strided_slice %904 {offsets = [0, 3], sizes = [16, 1], strides = [1, 1]} : vector<16x8xf32> to vector<16x1xf32>
    %1028 = vector.extract_strided_slice %906 {offsets = [0, 3], sizes = [16, 1], strides = [1, 1]} : vector<16x8xf32> to vector<16x1xf32>
    %1029 = vector.broadcast %1025 : vector<1x64xf32> to vector<16x64xf32>
    %1030 = arith.mulf %1029, %926 : vector<16x64xf32>
    %1031 = math.exp %1030 : vector<16x64xf32>
    %1032 = arith.mulf %1031, %1013 : vector<16x64xf32>
    %1033 = arith.mulf %1025, %1026 : vector<1x64xf32>
    %1034 = vector.broadcast %1033 : vector<1x64xf32> to vector<16x64xf32>
    %1035 = vector.broadcast %1027 : vector<16x1xf32> to vector<16x64xf32>
    %1036 = arith.mulf %1034, %1035 : vector<16x64xf32>
    %1037 = arith.addf %1032, %1036 : vector<16x64xf32>
    %1038 = vector.broadcast %1028 : vector<16x1xf32> to vector<16x64xf32>
    %1039 = arith.mulf %1038, %1037 : vector<16x64xf32>
    %cst_256 = arith.constant dense<0.000000e+00> : vector<64xf32>
    %1040 = vector.multi_reduction <add>, %1039, %cst_256 [0] : vector<16x64xf32> to vector<64xf32>
    %1041 = vector.shape_cast %1040 : vector<64xf32> to vector<1x64xf32>
    %1042 = arith.mulf %873, %1026 : vector<1x64xf32>
    %1043 = arith.addf %1041, %1042 : vector<1x64xf32>
    %c3_i32_257 = arith.constant 3 : i32
    %1044 = vector.broadcast %c3_i32_257 : i32 to vector<8x64xi32>
    %1045 = arith.cmpi eq, %0, %1044 : vector<8x64xi32>
    %1046 = vector.shape_cast %1043 : vector<1x64xf32> to vector<1x64xf32>
    %1047 = vector.broadcast %1046 : vector<1x64xf32> to vector<8x64xf32>
    %1048 = arith.select %1045, %1047, %1024 : vector<8x64xi1>, vector<8x64xf32>
    %1049 = vector.extract_strided_slice %923 {offsets = [2, 0], sizes = [1, 64], strides = [1, 1]} : vector<8x64xf32> to vector<1x64xf32>
    %1050 = vector.extract_strided_slice %900 {offsets = [2, 0], sizes = [1, 64], strides = [1, 1]} : vector<8x64xf32> to vector<1x64xf32>
    %1051 = vector.extract_strided_slice %904 {offsets = [0, 2], sizes = [16, 1], strides = [1, 1]} : vector<16x8xf32> to vector<16x1xf32>
    %1052 = vector.extract_strided_slice %906 {offsets = [0, 2], sizes = [16, 1], strides = [1, 1]} : vector<16x8xf32> to vector<16x1xf32>
    %1053 = vector.broadcast %1049 : vector<1x64xf32> to vector<16x64xf32>
    %1054 = arith.mulf %1053, %926 : vector<16x64xf32>
    %1055 = math.exp %1054 : vector<16x64xf32>
    %1056 = arith.mulf %1055, %1037 : vector<16x64xf32>
    %1057 = arith.mulf %1049, %1050 : vector<1x64xf32>
    %1058 = vector.broadcast %1057 : vector<1x64xf32> to vector<16x64xf32>
    %1059 = vector.broadcast %1051 : vector<16x1xf32> to vector<16x64xf32>
    %1060 = arith.mulf %1058, %1059 : vector<16x64xf32>
    %1061 = arith.addf %1056, %1060 : vector<16x64xf32>
    %1062 = vector.broadcast %1052 : vector<16x1xf32> to vector<16x64xf32>
    %1063 = arith.mulf %1062, %1061 : vector<16x64xf32>
    %cst_258 = arith.constant dense<0.000000e+00> : vector<64xf32>
    %1064 = vector.multi_reduction <add>, %1063, %cst_258 [0] : vector<16x64xf32> to vector<64xf32>
    %1065 = vector.shape_cast %1064 : vector<64xf32> to vector<1x64xf32>
    %1066 = arith.mulf %873, %1050 : vector<1x64xf32>
    %1067 = arith.addf %1065, %1066 : vector<1x64xf32>
    %c2_i32_259 = arith.constant 2 : i32
    %1068 = vector.broadcast %c2_i32_259 : i32 to vector<8x64xi32>
    %1069 = arith.cmpi eq, %0, %1068 : vector<8x64xi32>
    %1070 = vector.shape_cast %1067 : vector<1x64xf32> to vector<1x64xf32>
    %1071 = vector.broadcast %1070 : vector<1x64xf32> to vector<8x64xf32>
    %1072 = arith.select %1069, %1071, %1048 : vector<8x64xi1>, vector<8x64xf32>
    %1073 = vector.extract_strided_slice %923 {offsets = [1, 0], sizes = [1, 64], strides = [1, 1]} : vector<8x64xf32> to vector<1x64xf32>
    %1074 = vector.extract_strided_slice %900 {offsets = [1, 0], sizes = [1, 64], strides = [1, 1]} : vector<8x64xf32> to vector<1x64xf32>
    %1075 = vector.extract_strided_slice %904 {offsets = [0, 1], sizes = [16, 1], strides = [1, 1]} : vector<16x8xf32> to vector<16x1xf32>
    %1076 = vector.extract_strided_slice %906 {offsets = [0, 1], sizes = [16, 1], strides = [1, 1]} : vector<16x8xf32> to vector<16x1xf32>
    %1077 = vector.broadcast %1073 : vector<1x64xf32> to vector<16x64xf32>
    %1078 = arith.mulf %1077, %926 : vector<16x64xf32>
    %1079 = math.exp %1078 : vector<16x64xf32>
    %1080 = arith.mulf %1079, %1061 : vector<16x64xf32>
    %1081 = arith.mulf %1073, %1074 : vector<1x64xf32>
    %1082 = vector.broadcast %1081 : vector<1x64xf32> to vector<16x64xf32>
    %1083 = vector.broadcast %1075 : vector<16x1xf32> to vector<16x64xf32>
    %1084 = arith.mulf %1082, %1083 : vector<16x64xf32>
    %1085 = arith.addf %1080, %1084 : vector<16x64xf32>
    %1086 = vector.broadcast %1076 : vector<16x1xf32> to vector<16x64xf32>
    %1087 = arith.mulf %1086, %1085 : vector<16x64xf32>
    %cst_260 = arith.constant dense<0.000000e+00> : vector<64xf32>
    %1088 = vector.multi_reduction <add>, %1087, %cst_260 [0] : vector<16x64xf32> to vector<64xf32>
    %1089 = vector.shape_cast %1088 : vector<64xf32> to vector<1x64xf32>
    %1090 = arith.mulf %873, %1074 : vector<1x64xf32>
    %1091 = arith.addf %1089, %1090 : vector<1x64xf32>
    %c1_i32_261 = arith.constant 1 : i32
    %1092 = vector.broadcast %c1_i32_261 : i32 to vector<8x64xi32>
    %1093 = arith.cmpi eq, %0, %1092 : vector<8x64xi32>
    %1094 = vector.shape_cast %1091 : vector<1x64xf32> to vector<1x64xf32>
    %1095 = vector.broadcast %1094 : vector<1x64xf32> to vector<8x64xf32>
    %1096 = arith.select %1093, %1095, %1072 : vector<8x64xi1>, vector<8x64xf32>
    %1097 = vector.extract_strided_slice %923 {offsets = [0, 0], sizes = [1, 64], strides = [1, 1]} : vector<8x64xf32> to vector<1x64xf32>
    %1098 = vector.extract_strided_slice %900 {offsets = [0, 0], sizes = [1, 64], strides = [1, 1]} : vector<8x64xf32> to vector<1x64xf32>
    %1099 = vector.extract_strided_slice %904 {offsets = [0, 0], sizes = [16, 1], strides = [1, 1]} : vector<16x8xf32> to vector<16x1xf32>
    %1100 = vector.extract_strided_slice %906 {offsets = [0, 0], sizes = [16, 1], strides = [1, 1]} : vector<16x8xf32> to vector<16x1xf32>
    %1101 = vector.broadcast %1097 : vector<1x64xf32> to vector<16x64xf32>
    %1102 = arith.mulf %1101, %926 : vector<16x64xf32>
    %1103 = math.exp %1102 : vector<16x64xf32>
    %1104 = arith.mulf %1103, %1085 : vector<16x64xf32>
    %1105 = arith.mulf %1097, %1098 : vector<1x64xf32>
    %1106 = vector.broadcast %1105 : vector<1x64xf32> to vector<16x64xf32>
    %1107 = vector.broadcast %1099 : vector<16x1xf32> to vector<16x64xf32>
    %1108 = arith.mulf %1106, %1107 : vector<16x64xf32>
    %1109 = arith.addf %1104, %1108 : vector<16x64xf32>
    %1110 = vector.broadcast %1100 : vector<16x1xf32> to vector<16x64xf32>
    %1111 = arith.mulf %1110, %1109 : vector<16x64xf32>
    %cst_262 = arith.constant dense<0.000000e+00> : vector<64xf32>
    %1112 = vector.multi_reduction <add>, %1111, %cst_262 [0] : vector<16x64xf32> to vector<64xf32>
    %1113 = vector.shape_cast %1112 : vector<64xf32> to vector<1x64xf32>
    %1114 = arith.mulf %873, %1098 : vector<1x64xf32>
    %1115 = arith.addf %1113, %1114 : vector<1x64xf32>
    %c0_i32_263 = arith.constant 0 : i32
    %1116 = vector.broadcast %c0_i32_263 : i32 to vector<8x64xi32>
    %1117 = arith.cmpi eq, %0, %1116 : vector<8x64xi32>
    %1118 = vector.shape_cast %1115 : vector<1x64xf32> to vector<1x64xf32>
    %1119 = vector.broadcast %1118 : vector<1x64xf32> to vector<8x64xf32>
    %1120 = arith.select %1117, %1119, %1096 : vector<8x64xi1>, vector<8x64xf32>
    %1121 = arith.negf %587 : vector<8x64xf32>
    %1122 = math.exp %1121 : vector<8x64xf32>
    %cst_264 = arith.constant 1.000000e+00 : f32
    %1123 = vector.broadcast %cst_264 : f32 to vector<8x64xf32>
    %1124 = arith.addf %1123, %1122 : vector<8x64xf32>
    %1125 = arith.divf %1123, %1124 : vector<8x64xf32>
    %1126 = arith.mulf %587, %1125 : vector<8x64xf32>
    %1127 = arith.mulf %1120, %1126 : vector<8x64xf32>
    %1128 = arith.addf %859, %1127 : vector<8x64xf32>
    %c1_265 = arith.constant 1 : index
    %c0_266 = arith.constant 0 : index
    %c0_267 = arith.constant 0 : index
    %1129 = vector.load %arg11[%c1_265, %c0_266, %c0_267] : memref<2x64x32xf32, #tpu.memory_space<vmem>>, vector<1x64x32xf32>
    %1130 = vector.shape_cast %1129 : vector<1x64x32xf32> to vector<64x32xf32>
    %cst_268 = arith.constant dense<0.000000e+00> : vector<8x32xf32>
    %1131 = tpu.matmul %1128, %1130, %cst_268 {dimension_numbers = #tpu.dot_dimension_numbers<[1], [0], [0], [1], [0, 0, 1, 1], [], []>} : vector<8x64xf32>, vector<64x32xf32>, vector<8x32xf32> -> vector<8x32xf32>
    %1132 = arith.addf %1131, %569 : vector<8x32xf32>
    %c0_269 = arith.constant 0 : index
    %c0_270 = arith.constant 0 : index
    %1133 = vector.load %arg12[%c0_269, %c0_270] : memref<1x32xf32, #tpu.memory_space<vmem>>, vector<1x32xf32>
    %1134 = arith.mulf %1132, %1132 : vector<8x32xf32>
    %cst_271 = arith.constant dense<0.000000e+00> : vector<8xf32>
    %1135 = vector.multi_reduction <add>, %1134, %cst_271 [1] : vector<8x32xf32> to vector<8xf32>
    %1136 = vector.shape_cast %1135 : vector<8xf32> to vector<8x1xf32>
    %cst_272 = arith.constant 3.200000e+01 : f32
    %1137 = vector.broadcast %cst_272 : f32 to vector<8x1xf32>
    %1138 = arith.divf %1136, %1137 : vector<8x1xf32>
    %cst_273 = arith.constant 9.99999974E-6 : f32
    %1139 = vector.broadcast %cst_273 : f32 to vector<8x1xf32>
    %1140 = arith.addf %1138, %1139 : vector<8x1xf32>
    %1141 = math.rsqrt %1140 : vector<8x1xf32>
    %1142 = vector.broadcast %1141 : vector<8x1xf32> to vector<8x32xf32>
    %1143 = arith.mulf %1132, %1142 : vector<8x32xf32>
    %1144 = vector.broadcast %1133 : vector<1x32xf32> to vector<8x32xf32>
    %1145 = arith.mulf %1143, %1144 : vector<8x32xf32>
    %c0_274 = arith.constant 0 : index
    %c0_275 = arith.constant 0 : index
    %c0_276 = arith.constant 0 : index
    %1146 = vector.load %arg13[%c0_274, %c0_275, %c0_276] : memref<1x8x32xf32, #tpu.memory_space<vmem>>, vector<1x8x32xf32>
    %1147 = vector.shape_cast %1146 : vector<1x8x32xf32> to vector<8x32xf32>
    %1148 = vector.shape_cast %1145 : vector<8x32xf32> to vector<1x8x32xf32>
    tpu.vector_store %arg13[%c0_274, %c0_275, %c0_276], %1148 {strides = array<i32>} : memref<1x8x32xf32, #tpu.memory_space<vmem>>, vector<1x8x32xf32>,
    return
  }
  func.func @transform_0(%arg0: i32) -> (i32, i32, i32) {
    %c0_i32 = arith.constant 0 : i32
    %c0_i32_0 = arith.constant 0 : i32
    %c0_i32_1 = arith.constant 0 : i32
    return %arg0, %c0_i32, %c0_i32_0 : i32, i32, i32
  }
  func.func @transform_1(%arg0: i32) -> (i32, i32, i32) {
    %c0_i32 = arith.constant 0 : i32
    %c0_i32_0 = arith.constant 0 : i32
    %c0_i32_1 = arith.constant 0 : i32
    %c0_i32_2 = arith.constant 0 : i32
    return %c0_i32, %c0_i32_0, %c0_i32_1 : i32, i32, i32
  }
  func.func @transform_2(%arg0: i32) -> (i32, i32, i32) {
    %c0_i32 = arith.constant 0 : i32
    %c0_i32_0 = arith.constant 0 : i32
    %c0_i32_1 = arith.constant 0 : i32
    %c0_i32_2 = arith.constant 0 : i32
    return %c0_i32, %c0_i32_0, %c0_i32_1 : i32, i32, i32
  }
  func.func @transform_3(%arg0: i32) -> (i32, i32, i32, i32) {
    %c0_i32 = arith.constant 0 : i32
    %c0_i32_0 = arith.constant 0 : i32
    %c0_i32_1 = arith.constant 0 : i32
    %c0_i32_2 = arith.constant 0 : i32
    %c0_i32_3 = arith.constant 0 : i32
    return %c0_i32, %c0_i32_0, %c0_i32_1, %c0_i32_2 : i32, i32, i32, i32
  }
  func.func @transform_4(%arg0: i32) -> (i32, i32, i32, i32) {
    %c0_i32 = arith.constant 0 : i32
    %c0_i32_0 = arith.constant 0 : i32
    %c0_i32_1 = arith.constant 0 : i32
    %c0_i32_2 = arith.constant 0 : i32
    %c0_i32_3 = arith.constant 0 : i32
    return %c0_i32, %c0_i32_0, %c0_i32_1, %c0_i32_2 : i32, i32, i32, i32
  }
  func.func @transform_5(%arg0: i32) -> (i32, i32, i32, i32) {
    %c0_i32 = arith.constant 0 : i32
    %c0_i32_0 = arith.constant 0 : i32
    %c0_i32_1 = arith.constant 0 : i32
    %c0_i32_2 = arith.constant 0 : i32
    %c0_i32_3 = arith.constant 0 : i32
    return %c0_i32, %c0_i32_0, %c0_i32_1, %c0_i32_2 : i32, i32, i32, i32
  }
  func.func @transform_6(%arg0: i32) -> (i32, i32, i32, i32) {
    %c0_i32 = arith.constant 0 : i32
    %c0_i32_0 = arith.constant 0 : i32
    %c0_i32_1 = arith.constant 0 : i32
    %c0_i32_2 = arith.constant 0 : i32
    %c0_i32_3 = arith.constant 0 : i32
    return %c0_i32, %c0_i32_0, %c0_i32_1, %c0_i32_2 : i32, i32, i32, i32
  }
  func.func @transform_7(%arg0: i32) -> (i32, i32, i32, i32) {
    %c0_i32 = arith.constant 0 : i32
    %c0_i32_0 = arith.constant 0 : i32
    %c0_i32_1 = arith.constant 0 : i32
    %c0_i32_2 = arith.constant 0 : i32
    %c0_i32_3 = arith.constant 0 : i32
    return %c0_i32, %c0_i32_0, %c0_i32_1, %c0_i32_2 : i32, i32, i32, i32
  }
  func.func @transform_8(%arg0: i32) -> (i32, i32, i32, i32) {
    %c0_i32 = arith.constant 0 : i32
    %c0_i32_0 = arith.constant 0 : i32
    %c0_i32_1 = arith.constant 0 : i32
    %c0_i32_2 = arith.constant 0 : i32
    %c0_i32_3 = arith.constant 0 : i32
    return %c0_i32, %c0_i32_0, %c0_i32_1, %c0_i32_2 : i32, i32, i32, i32
  }
  func.func @transform_9(%arg0: i32) -> (i32, i32, i32, i32) {
    %c0_i32 = arith.constant 0 : i32
    %c0_i32_0 = arith.constant 0 : i32
    %c0_i32_1 = arith.constant 0 : i32
    %c0_i32_2 = arith.constant 0 : i32
    %c0_i32_3 = arith.constant 0 : i32
    return %c0_i32, %c0_i32_0, %c0_i32_1, %c0_i32_2 : i32, i32, i32, i32
  }
  func.func @transform_10(%arg0: i32) -> (i32, i32, i32) {
    %c0_i32 = arith.constant 0 : i32
    %c0_i32_0 = arith.constant 0 : i32
    %c0_i32_1 = arith.constant 0 : i32
    %c0_i32_2 = arith.constant 0 : i32
    return %c0_i32, %c0_i32_0, %c0_i32_1 : i32, i32, i32
  }
  func.func @transform_11(%arg0: i32) -> (i32, i32) {
    %c0_i32 = arith.constant 0 : i32
    %c0_i32_0 = arith.constant 0 : i32
    %c0_i32_1 = arith.constant 0 : i32
    return %c0_i32, %c0_i32_0 : i32, i32
  }
  func.func @transform_12(%arg0: i32) -> (i32, i32, i32) {
    %c0_i32 = arith.constant 0 : i32
    %c0_i32_0 = arith.constant 0 : i32
    %c0_i32_1 = arith.constant 0 : i32
    return %arg0, %c0_i32, %c0_i32_0 : i32, i32, i32
  }
}

</mosaic_0001>

<llo_original>
// kernel: dna_embedding_caduceus_forward.1
$region0: #{dna_embedding_caduceus_forward.1}
  #allocation0 [shape = 'u32[]', space=smem, size = 0x4, offset = 0x4, fixed_abs, tag = 'smem constant byte address 0x4 - core index']
  #allocation1 [shape = 'u32[144,128]{1,0:T(1,128)}', space=vmem, size = 0x12000, scoped, tag = 'internal scratch']
  #allocation2 [shape = 'f32[14,64]{1,0:T(8,128)}', space=vmem, size = 0x2000, scoped, tag = 'scratch operand']
  %s0 = inlined_call_operand.vmem [shape: f32[2,8,32], index: 0, kind: input, shape index: {}]
  %s1 = inlined_call_operand.vmem [shape: f32[2,1,32], index: 1, kind: input, shape index: {}]
  %s2 = inlined_call_operand.vmem [shape: f32[2,32,128], index: 2, kind: input, shape index: {}]
  %s3 = inlined_call_operand.vmem [shape: f32[2,2,4,64], index: 3, kind: input, shape index: {}]
  %s4 = inlined_call_operand.vmem [shape: f32[2,2,1,64], index: 4, kind: input, shape index: {}]
  %s5 = inlined_call_operand.vmem [shape: f32[2,2,64,34], index: 5, kind: input, shape index: {}]
  %s6 = inlined_call_operand.vmem [shape: f32[2,2,2,64], index: 6, kind: input, shape index: {}]
  %s7 = inlined_call_operand.vmem [shape: f32[2,2,1,64], index: 7, kind: input, shape index: {}]
  %s8 = inlined_call_operand.vmem [shape: f32[2,2,16,64], index: 8, kind: input, shape index: {}]
  %s9 = inlined_call_operand.vmem [shape: f32[2,2,1,64], index: 9, kind: input, shape index: {}]
  %s10 = inlined_call_operand.vmem [shape: f32[2,64,32], index: 10, kind: input, shape index: {}]
  %s11 = inlined_call_operand.vmem [shape: f32[1,32], index: 11, kind: input, shape index: {}]
  %s12 = inlined_call_operand.hbm [shape: f32[2,8,32], index: 12, kind: output, shape index: {}]
  %s13 = sld [smem:[#allocation0]]
  $region81: #{dna_embedding_caduceus_forward.1} parent=0
    _
  %s15 = ssub.s32 1, %s13
  %s16 = scalar_select 0, %s15, %s13
  $region1: #{dna_embedding_caduceus_forward.1} parent=0
    #allocation3 [shape = 'u8[8192]{0}', space=vmem, size = 0x2000, scoped, tag = 'output window, operand 0']
    #allocation4 [shape = 's32[2]{0}', space=sflag, size = 0x8, scoped, tag = 'scoped memory for dna_embedding_caduceus_forward.1']
    %17 = vsyncpa [#allocation4], 0
    %s18 = scalar_lea.sflag [#allocation4], 1
    %19 = vsyncpa %s18, 0
    loop: start=0, step=1, limit=4
    $region2: #{dna_embedding_caduceus_forward.1} parent=1 // loop_pre_header
      _
    $region3: #{dna_embedding_caduceus_forward.1} parent=1 // loop_header
      %s21 = sphi 0, %s25
      %p22 = scmp.ge.s32.totalorder %s21, 4
      %s31 = sphi 0, %s33
      %s34 = sphi 0, %s31
      %s35 = sphi 0, %s34
      %s51 = sphi 0, %s35
      %s55 = sphi 0, %s55
      %s57 = sphi 0, %s55
      %s58 = sphi 0, %s57
      %s72 = sphi 0, %s58
      %s76 = sphi 0, %s76
      %s78 = sphi 0, %s76
      %s79 = sphi 0, %s78
      %s93 = sphi 0, %s79
      %s97 = sphi 0, %s97
      %s99 = sphi 0, %s97
      %s100 = sphi 0, %s99
      %s114 = sphi 0, %s100
      %s118 = sphi 0, %s118
      %s120 = sphi 0, %s118
      %s121 = sphi 0, %s120
      %s135 = sphi 0, %s121
      %s139 = sphi 0, %s139
      %s141 = sphi 0, %s139
      %s142 = sphi 0, %s141
      %s156 = sphi 0, %s142
      %s160 = sphi 0, %s160
      %s162 = sphi 0, %s160
      %s163 = sphi 0, %s162
      %s177 = sphi 0, %s163
      %s181 = sphi 0, %s181
      %s183 = sphi 0, %s181
      %s184 = sphi 0, %s183
      %s198 = sphi 0, %s184
      %s202 = sphi 0, %s202
      %s204 = sphi 0, %s202
      %s205 = sphi 0, %s204
      %s219 = sphi 0, %s205
      %s223 = sphi 0, %s223
      %s225 = sphi 0, %s223
      %s226 = sphi 0, %s225
      %s240 = sphi 0, %s226
      %s244 = sphi 0, %s244
      %s246 = sphi 0, %s244
      %s247 = sphi 0, %s246
      %s261 = sphi 0, %s247
      %s265 = sphi 0, %s265
      %s267 = sphi 0, %s265
      %s268 = sphi 0, %s267
      %s282 = sphi 0, %s268
      %s288 = sphi 0, %s290
      %s291 = sphi 0, %s288
      %s292 = sphi 0, %s291
      %s308 = sphi 0, %s292
    $region4: #{dna_embedding_caduceus_forward.1} parent=1 // loop_header_branch
      %24 = sbr.rel (%p22) target = $region8
    $region5: #{dna_embedding_caduceus_forward.1} parent=1 // loop_body
      %s26 = ssub.s32 %s21, 1
      %s27 = ssub.s32 %s21, 2
      %s28 = sadd.s32 %s21, 1
      %s29 = ssub.s32 %s21, %s28
      %p30 = scmp.eq.s32.totalorder %s29, 0
      %s32 = sadd.s32 %s31, 1
      %s33 = scalar_select %p30, %s31, %s32
      %p36 = pneg %p30
      %p37 = scmp.eq.s32.totalorder %s21, 1
      %p38 = por %p36, %p37
      %p39 = scmp.ne.s32.totalorder %s31, %s34
      %p40 = scmp.eq.s32.totalorder %s21, 0
      %p41 = por %p39, %p40
      %p42 = scmp.ne.s32.totalorder %s31, %s34
      %p43 = scmp.eq.s32.totalorder %s26, 1
      %p44 = por %p42, %p43
      %p45 = scmp.ne.s32.totalorder %s34, %s35
      %p46 = scmp.eq.s32.totalorder %s26, 0
      %p47 = por %p45, %p46
      %p48 = scmp.ne.s32.totalorder %s34, %s35
      %p49 = scmp.eq.s32.totalorder %s27, 1
      %p50 = por %p48, %p49
      %p52 = scmp.ne.s32.totalorder %s35, %s51
      %p53 = scmp.eq.s32.totalorder %s27, 0
      %p54 = por %p52, %p53
      %s56 = sadd.s32 %s55, 1
      %p59 = scmp.eq.s32.totalorder %s21, 1
      %p60 = scmp.ne.s32.totalorder %s55, %s57
      %p61 = scmp.eq.s32.totalorder %s21, 0
      %p62 = por %p60, %p61
      %p63 = scmp.ne.s32.totalorder %s55, %s57
      %p64 = scmp.eq.s32.totalorder %s26, 1
      %p65 = por %p63, %p64
      %p66 = scmp.ne.s32.totalorder %s57, %s58
      %p67 = scmp.eq.s32.totalorder %s26, 0
      %p68 = por %p66, %p67
      %p69 = scmp.ne.s32.totalorder %s57, %s58
      %p70 = scmp.eq.s32.totalorder %s27, 1
      %p71 = por %p69, %p70
      %p73 = scmp.ne.s32.totalorder %s58, %s72
      %p74 = scmp.eq.s32.totalorder %s27, 0
      %p75 = por %p73, %p74
      %s77 = sadd.s32 %s76, 1
      %p80 = scmp.eq.s32.totalorder %s21, 1
      %p81 = scmp.ne.s32.totalorder %s76, %s78
      %p82 = scmp.eq.s32.totalorder %s21, 0
      %p83 = por %p81, %p82
      %p84 = scmp.ne.s32.totalorder %s76, %s78
      %p85 = scmp.eq.s32.totalorder %s26, 1
      %p86 = por %p84, %p85
      %p87 = scmp.ne.s32.totalorder %s78, %s79
      %p88 = scmp.eq.s32.totalorder %s26, 0
      %p89 = por %p87, %p88
      %p90 = scmp.ne.s32.totalorder %s78, %s79
      %p91 = scmp.eq.s32.totalorder %s27, 1
      %p92 = por %p90, %p91
      %p94 = scmp.ne.s32.totalorder %s79, %s93
      %p95 = scmp.eq.s32.totalorder %s27, 0
      %p96 = por %p94, %p95
      %s98 = sadd.s32 %s97, 1
      %p101 = scmp.eq.s32.totalorder %s21, 1
      %p102 = scmp.ne.s32.totalorder %s97, %s99
      %p103 = scmp.eq.s32.totalorder %s21, 0
      %p104 = por %p102, %p103
      %p105 = scmp.ne.s32.totalorder %s97, %s99
      %p106 = scmp.eq.s32.totalorder %s26, 1
      %p107 = por %p105, %p106
      %p108 = scmp.ne.s32.totalorder %s99, %s100
      %p109 = scmp.eq.s32.totalorder %s26, 0
      %p110 = por %p108, %p109
      %p111 = scmp.ne.s32.totalorder %s99, %s100
      %p112 = scmp.eq.s32.totalorder %s27, 1
      %p113 = por %p111, %p112
      %p115 = scmp.ne.s32.totalorder %s100, %s114
      %p116 = scmp.eq.s32.totalorder %s27, 0
      %p117 = por %p115, %p116
      %s119 = sadd.s32 %s118, 1
      %p122 = scmp.eq.s32.totalorder %s21, 1
      %p123 = scmp.ne.s32.totalorder %s118, %s120
      %p124 = scmp.eq.s32.totalorder %s21, 0
      %p125 = por %p123, %p124
      %p126 = scmp.ne.s32.totalorder %s118, %s120
      %p127 = scmp.eq.s32.totalorder %s26, 1
      %p128 = por %p126, %p127
      %p129 = scmp.ne.s32.totalorder %s120, %s121
      %p130 = scmp.eq.s32.totalorder %s26, 0
      %p131 = por %p129, %p130
      %p132 = scmp.ne.s32.totalorder %s120, %s121
      %p133 = scmp.eq.s32.totalorder %s27, 1
      %p134 = por %p132, %p133
      %p136 = scmp.ne.s32.totalorder %s121, %s135
      %p137 = scmp.eq.s32.totalorder %s27, 0
      %p138 = por %p136, %p137
      %s140 = sadd.s32 %s139, 1
      %p143 = scmp.eq.s32.totalorder %s21, 1
      %p144 = scmp.ne.s32.totalorder %s139, %s141
      %p145 = scmp.eq.s32.totalorder %s21, 0
      %p146 = por %p144, %p145
      %p147 = scmp.ne.s32.totalorder %s139, %s141
      %p148 = scmp.eq.s32.totalorder %s26, 1
      %p149 = por %p147, %p148
      %p150 = scmp.ne.s32.totalorder %s141, %s142
      %p151 = scmp.eq.s32.totalorder %s26, 0
      %p152 = por %p150, %p151
      %p153 = scmp.ne.s32.totalorder %s141, %s142
      %p154 = scmp.eq.s32.totalorder %s27, 1
      %p155 = por %p153, %p154
      %p157 = scmp.ne.s32.totalorder %s142, %s156
      %p158 = scmp.eq.s32.totalorder %s27, 0
      %p159 = por %p157, %p158
      %s161 = sadd.s32 %s160, 1
      %p164 = scmp.eq.s32.totalorder %s21, 1
      %p165 = scmp.ne.s32.totalorder %s160, %s162
      %p166 = scmp.eq.s32.totalorder %s21, 0
      %p167 = por %p165, %p166
      %p168 = scmp.ne.s32.totalorder %s160, %s162
      %p169 = scmp.eq.s32.totalorder %s26, 1
      %p170 = por %p168, %p169
      %p171 = scmp.ne.s32.totalorder %s162, %s163
      %p172 = scmp.eq.s32.totalorder %s26, 0
      %p173 = por %p171, %p172
      %p174 = scmp.ne.s32.totalorder %s162, %s163
      %p175 = scmp.eq.s32.totalorder %s27, 1
      %p176 = por %p174, %p175
      %p178 = scmp.ne.s32.totalorder %s163, %s177
      %p179 = scmp.eq.s32.totalorder %s27, 0
      %p180 = por %p178, %p179
      %s182 = sadd.s32 %s181, 1
      %p185 = scmp.eq.s32.totalorder %s21, 1
      %p186 = scmp.ne.s32.totalorder %s181, %s183
      %p187 = scmp.eq.s32.totalorder %s21, 0
      %p188 = por %p186, %p187
      %p189 = scmp.ne.s32.totalorder %s181, %s183
      %p190 = scmp.eq.s32.totalorder %s26, 1
      %p191 = por %p189, %p190
      %p192 = scmp.ne.s32.totalorder %s183, %s184
      %p193 = scmp.eq.s32.totalorder %s26, 0
      %p194 = por %p192, %p193
      %p195 = scmp.ne.s32.totalorder %s183, %s184
      %p196 = scmp.eq.s32.totalorder %s27, 1
      %p197 = por %p195, %p196
      %p199 = scmp.ne.s32.totalorder %s184, %s198
      %p200 = scmp.eq.s32.totalorder %s27, 0
      %p201 = por %p199, %p200
      %s203 = sadd.s32 %s202, 1
      %p206 = scmp.eq.s32.totalorder %s21, 1
      %p207 = scmp.ne.s32.totalorder %s202, %s204
      %p208 = scmp.eq.s32.totalorder %s21, 0
      %p209 = por %p207, %p208
      %p210 = scmp.ne.s32.totalorder %s202, %s204
      %p211 = scmp.eq.s32.totalorder %s26, 1
      %p212 = por %p210, %p211
      %p213 = scmp.ne.s32.totalorder %s204, %s205
      %p214 = scmp.eq.s32.totalorder %s26, 0
      %p215 = por %p213, %p214
      %p216 = scmp.ne.s32.totalorder %s204, %s205
      %p217 = scmp.eq.s32.totalorder %s27, 1
      %p218 = por %p216, %p217
      %p220 = scmp.ne.s32.totalorder %s205, %s219
      %p221 = scmp.eq.s32.totalorder %s27, 0
      %p222 = por %p220, %p221
      %s224 = sadd.s32 %s223, 1
      %p227 = scmp.eq.s32.totalorder %s21, 1
      %p228 = scmp.ne.s32.totalorder %s223, %s225
      %p229 = scmp.eq.s32.totalorder %s21, 0
      %p230 = por %p228, %p229
      %p231 = scmp.ne.s32.totalorder %s223, %s225
      %p232 = scmp.eq.s32.totalorder %s26, 1
      %p233 = por %p231, %p232
      %p234 = scmp.ne.s32.totalorder %s225, %s226
      %p235 = scmp.eq.s32.totalorder %s26, 0
      %p236 = por %p234, %p235
      %p237 = scmp.ne.s32.totalorder %s225, %s226
      %p238 = scmp.eq.s32.totalorder %s27, 1
      %p239 = por %p237, %p238
      %p241 = scmp.ne.s32.totalorder %s226, %s240
      %p242 = scmp.eq.s32.totalorder %s27, 0
      %p243 = por %p241, %p242
      %s245 = sadd.s32 %s244, 1
      %p248 = scmp.eq.s32.totalorder %s21, 1
      %p249 = scmp.ne.s32.totalorder %s244, %s246
      %p250 = scmp.eq.s32.totalorder %s21, 0
      %p251 = por %p249, %p250
      %p252 = scmp.ne.s32.totalorder %s244, %s246
      %p253 = scmp.eq.s32.totalorder %s26, 1
      %p254 = por %p252, %p253
      %p255 = scmp.ne.s32.totalorder %s246, %s247
      %p256 = scmp.eq.s32.totalorder %s26, 0
      %p257 = por %p255, %p256
      %p258 = scmp.ne.s32.totalorder %s246, %s247
      %p259 = scmp.eq.s32.totalorder %s27, 1
      %p260 = por %p258, %p259
      %p262 = scmp.ne.s32.totalorder %s247, %s261
      %p263 = scmp.eq.s32.totalorder %s27, 0
      %p264 = por %p262, %p263
      %s266 = sadd.s32 %s265, 1
      %p269 = scmp.eq.s32.totalorder %s21, 1
      %p270 = scmp.ne.s32.totalorder %s265, %s267
      %p271 = scmp.eq.s32.totalorder %s21, 0
      %p272 = por %p270, %p271
      %p273 = scmp.ne.s32.totalorder %s265, %s267
      %p274 = scmp.eq.s32.totalorder %s26, 1
      %p275 = por %p273, %p274
      %p276 = scmp.ne.s32.totalorder %s267, %s268
      %p277 = scmp.eq.s32.totalorder %s26, 0
      %p278 = por %p276, %p277
      %p279 = scmp.ne.s32.totalorder %s267, %s268
      %p280 = scmp.eq.s32.totalorder %s27, 1
      %p281 = por %p279, %p280
      %p283 = scmp.ne.s32.totalorder %s268, %s282
      %p284 = scmp.eq.s32.totalorder %s27, 0
      %p285 = por %p283, %p284
      %s286 = ssub.s32 %s21, %s28
      %p287 = scmp.eq.s32.totalorder %s286, 0
      %s289 = sadd.s32 %s288, 1
      %s290 = scalar_select %p287, %s288, %s289
      %p293 = pneg %p287
      %p294 = scmp.eq.s32.totalorder %s21, 1
      %p295 = por %p293, %p294
      %p296 = scmp.ne.s32.totalorder %s288, %s291
      %p297 = scmp.eq.s32.totalorder %s21, 0
      %p298 = por %p296, %p297
      %p299 = scmp.ne.s32.totalorder %s288, %s291
      %p300 = scmp.eq.s32.totalorder %s26, 1
      %p301 = por %p299, %p300
      %p302 = scmp.ne.s32.totalorder %s291, %s292
      %p303 = scmp.eq.s32.totalorder %s26, 0
      %p304 = por %p302, %p303
      %p305 = scmp.ne.s32.totalorder %s291, %s292
      %p306 = scmp.eq.s32.totalorder %s27, 1
      %p307 = por %p305, %p306
      %p309 = scmp.ne.s32.totalorder %s292, %s308
      %p310 = scmp.eq.s32.totalorder %s27, 0
      %p311 = por %p309, %p310
      %p312 = scmp.le.s32.totalorder 1, %s21
      %p313 = scmp.lt.s32.totalorder %s21, 3
      %p314 = pnand %p312, %p313
      %p315 = pneg %p314
      // Predicated region
      $region9: #{dna_embedding_caduceus_forward.1} parent=5 // pred_check
        _
      $region10: #{dna_embedding_caduceus_forward.1} parent=5 // pred_check_branch
        %317 = sbr.rel (%p314) target = $region12
      $region11: #{dna_embedding_caduceus_forward.1} parent=5 // pred_region
        %s318 = ssub.s32 %s21, 1
        // Predicated region
        $region13: #{dna_embedding_caduceus_forward.1} parent=11 // pred_check
          %p319 = pneg %p68
        $region14: #{dna_embedding_caduceus_forward.1} parent=11 // pred_check_branch
          %321 = sbr.rel (%p319) target = $region16
        $region15: #{dna_embedding_caduceus_forward.1} parent=11 // pred_region
          _
        $region16: #{dna_embedding_caduceus_forward.1} parent=11 // pred_fallthru
          _
        // Predicated region
        $region17: #{dna_embedding_caduceus_forward.1} parent=11 // pred_check
          %p322 = pneg %p89
        $region18: #{dna_embedding_caduceus_forward.1} parent=11 // pred_check_branch
          %324 = sbr.rel (%p322) target = $region20
        $region19: #{dna_embedding_caduceus_forward.1} parent=11 // pred_region
          _
        $region20: #{dna_embedding_caduceus_forward.1} parent=11 // pred_fallthru
          _
        // Predicated region
        $region21: #{dna_embedding_caduceus_forward.1} parent=11 // pred_check
          %p325 = pneg %p110
        $region22: #{dna_embedding_caduceus_forward.1} parent=11 // pred_check_branch
          %327 = sbr.rel (%p325) target = $region24
        $region23: #{dna_embedding_caduceus_forward.1} parent=11 // pred_region
          _
        $region24: #{dna_embedding_caduceus_forward.1} parent=11 // pred_fallthru
          _
        // Predicated region
        $region25: #{dna_embedding_caduceus_forward.1} parent=11 // pred_check
          %p328 = pneg %p131
        $region26: #{dna_embedding_caduceus_forward.1} parent=11 // pred_check_branch
          %330 = sbr.rel (%p328) target = $region28
        $region27: #{dna_embedding_caduceus_forward.1} parent=11 // pred_region
          _
        $region28: #{dna_embedding_caduceus_forward.1} parent=11 // pred_fallthru
          _
        // Predicated region
        $region29: #{dna_embedding_caduceus_forward.1} parent=11 // pred_check
          %p331 = pneg %p152
        $region30: #{dna_embedding_caduceus_forward.1} parent=11 // pred_check_branch
          %333 = sbr.rel (%p331) target = $region32
        $region31: #{dna_embedding_caduceus_forward.1} parent=11 // pred_region
          _
        $region32: #{dna_embedding_caduceus_forward.1} parent=11 // pred_fallthru
          _
        // Predicated region
        $region33: #{dna_embedding_caduceus_forward.1} parent=11 // pred_check
          %p334 = pneg %p173
        $region34: #{dna_embedding_caduceus_forward.1} parent=11 // pred_check_branch
          %336 = sbr.rel (%p334) target = $region36
        $region35: #{dna_embedding_caduceus_forward.1} parent=11 // pred_region
          _
        $region36: #{dna_embedding_caduceus_forward.1} parent=11 // pred_fallthru
          _
        // Predicated region
        $region37: #{dna_embedding_caduceus_forward.1} parent=11 // pred_check
          %p337 = pneg %p194
        $region38: #{dna_embedding_caduceus_forward.1} parent=11 // pred_check_branch
          %339 = sbr.rel (%p337) target = $region40
        $region39: #{dna_embedding_caduceus_forward.1} parent=11 // pred_region
          _
        $region40: #{dna_embedding_caduceus_forward.1} parent=11 // pred_fallthru
          _
        // Predicated region
        $region41: #{dna_embedding_caduceus_forward.1} parent=11 // pred_check
          %p340 = pneg %p215
        $region42: #{dna_embedding_caduceus_forward.1} parent=11 // pred_check_branch
          %342 = sbr.rel (%p340) target = $region44
        $region43: #{dna_embedding_caduceus_forward.1} parent=11 // pred_region
          _
        $region44: #{dna_embedding_caduceus_forward.1} parent=11 // pred_fallthru
          _
        // Predicated region
        $region45: #{dna_embedding_caduceus_forward.1} parent=11 // pred_check
          %p343 = pneg %p236
        $region46: #{dna_embedding_caduceus_forward.1} parent=11 // pred_check_branch
          %345 = sbr.rel (%p343) target = $region48
        $region47: #{dna_embedding_caduceus_forward.1} parent=11 // pred_region
          _
        $region48: #{dna_embedding_caduceus_forward.1} parent=11 // pred_fallthru
          _
        // Predicated region
        $region49: #{dna_embedding_caduceus_forward.1} parent=11 // pred_check
          %p346 = pneg %p257
        $region50: #{dna_embedding_caduceus_forward.1} parent=11 // pred_check_branch
          %348 = sbr.rel (%p346) target = $region52
        $region51: #{dna_embedding_caduceus_forward.1} parent=11 // pred_region
          _
        $region52: #{dna_embedding_caduceus_forward.1} parent=11 // pred_fallthru
          _
        // Predicated region
        $region53: #{dna_embedding_caduceus_forward.1} parent=11 // pred_check
          %p349 = pneg %p278
        $region54: #{dna_embedding_caduceus_forward.1} parent=11 // pred_check_branch
          %351 = sbr.rel (%p349) target = $region56
        $region55: #{dna_embedding_caduceus_forward.1} parent=11 // pred_region
          _
        $region56: #{dna_embedding_caduceus_forward.1} parent=11 // pred_fallthru
          _
      $region12: #{dna_embedding_caduceus_forward.1} parent=5 // pred_fallthru
        _
      %p352 = scmp.lt.s32.totalorder %s21, 2
      // Predicated region
      $region57: #{dna_embedding_caduceus_forward.1} parent=5 // pred_check
        %p353 = pneg %p352
      $region58: #{dna_embedding_caduceus_forward.1} parent=5 // pred_check_branch
        %355 = sbr.rel (%p353) target = $region60
      $region59: #{dna_embedding_caduceus_forward.1} parent=5 // pred_region
        // Predicated region
        $region61: #{dna_embedding_caduceus_forward.1} parent=59 // pred_check
          %p356 = pneg %p41
        $region62: #{dna_embedding_caduceus_forward.1} parent=59 // pred_check_branch
          %358 = sbr.rel (%p356) target = $region64
        $region63: #{dna_embedding_caduceus_forward.1} parent=59 // pred_region
          %p359 = scmp.lt.s32.totalorder %s21, 1
          %s360 = scalar_select %p359, %s21, 1
          %s361 = smul.addr %s360, 8
          %s362 = scalar_lea.vmem %s0, %s361
        $region64: #{dna_embedding_caduceus_forward.1} parent=59 // pred_fallthru
          _
      $region60: #{dna_embedding_caduceus_forward.1} parent=5 // pred_fallthru
        _
      %p363 = scmp.le.s32.totalorder 1, %s21
      %p364 = scmp.lt.s32.totalorder %s21, 3
      %p365 = pnand %p363, %p364
      %p366 = pneg %p365
      // Predicated region
      $region65: #{dna_embedding_caduceus_forward.1} parent=5 // pred_check
        _
      $region66: #{dna_embedding_caduceus_forward.1} parent=5 // pred_check_branch
        %368 = sbr.rel (%p365) target = $region68
      $region67: #{dna_embedding_caduceus_forward.1} parent=5 // pred_region
        %s369 = ssub.s32 %s21, 1
        %p370 = scmp.lt.s32.totalorder %s26, 1
        %s371 = scalar_select %p370, %s26, 1
        %s372 = smul.addr %s371, 8
        %s373 = scalar_lea.vmem %s0, %s372
        %p374 = pneg %p47
        %p375 = pneg %p44
        %p376 = pneg %p68
        %p377 = pneg %p65
        %p378 = pneg %p89
        %p379 = pneg %p86
        %p380 = pneg %p110
        %p381 = pneg %p107
        %p382 = pneg %p131
        %p383 = pneg %p128
        %p384 = pneg %p152
        %p385 = pneg %p149
        %p386 = pneg %p173
        %p387 = pneg %p170
        %p388 = pneg %p194
        %p389 = pneg %p191
        %p390 = pneg %p215
        %p391 = pneg %p212
        %p392 = pneg %p236
        %p393 = pneg %p233
        %p394 = pneg %p257
        %p395 = pneg %p254
        %p396 = pneg %p278
        %p397 = pneg %p275
        %p398 = pneg %p304
        %p399 = pneg %p301
        %s400 = sand.u32 %s291, 1
        %s401 = scalar_lea.sflag [#allocation4], %s400
        %s402 = sand.u32 %s291, 1
        %s403 = smul.addr %s402, 8
        %s404 = scalar_lea.vmem [#allocation3], %s403
        %p405 = scmp.lt.s32.totalorder %s26, 1
        %s406 = scalar_select %p405, %s26, 1
        %s407 = smul.addr %s406, 8
        %s408 = scalar_lea.vmem %s0, %s407
        %v409 = vlaneseq
        %v410 = vshrl.u32 %v409, 7
        %vm411 = vcmask 523264
        %412 = vst.msk [vmem:[#allocation2] sm:$0xff] %vm411, 0.0
        %vm413 = vcmask 521216
        %414 = vst.msk [vmem:[#allocation2 + $0x8] sm:$0x3f] %vm413, 0.0
        %v415 = vld [vmem:[%s408] sm:$0xff]
        %v416 = vadd.f32 %v415, 0.0
        %v417 = vld [vmem:[%s1] sm:$0x1]
        %v418 = vmul.f32 %v416, %v416
        %vm419 = vcmask 261120
        %v420 = vsel %vm419, %v418, 0.0
        %421 = vadd.xlane.f32.xlu0 %v420
        %v422 = vpop.xlane.xlu0 %421
        %v423 = vrcp.pop 32.0
        %v424 = vmul.f32 %v422, %v423
        %v425 = vadd.f32 %v424, 1e-05
        %v426 = vrsqrt.pop %v425
        %v427 = vmul.f32 %v416, %v426
        %v429 = vlaneseq
        %v430 = vshrl.u32 %v429, 7
        %v431 = vsub.s32 0, %v430
        %v432 = vrot.slane %v417, %v431
        %v434 = vmul.f32 %v427, %v432
        %v435 = vld [vmem:[%s2] sm:$0xff]
        %v436 = vld [vmem:[%s2 + $0x8] sm:$0xff]
        %v437 = vld [vmem:[%s2 + $0x10] sm:$0xff]
        %v438 = vld [vmem:[%s2 + $0x18] sm:$0xff]
        %v440 = vsel %vm419, %v434, 0
        %442 = vmatprep.subr.mxu0 0.0
        %443 = vmatpush1.msra.mxu0 %v435
        %444 = vmatprep.subr.mxu0 0.0
        %445 = vmatpush1.msra.mxu0 %v436
        %446 = vmatprep.subr.mxu0 0.0
        %447 = vmatpush1.msra.mxu0 %v437
        %448 = vmatprep.subr.mxu0 0.0
        %449 = vmatpush1.msra.mxu0 %v438
        %450 = vmatprep.subr.mxu0 0.0
        %451 = vmatpush1.msra.mxu0 0.0
        %452 = vmatprep.subr.mxu0 0.0
        %453 = vmatpush1.msra.mxu0 0.0
        %454 = vmatprep.subr.mxu0 0.0
        %455 = vmatpush1.msra.mxu0 0.0
        %456 = vmatprep.subr.mxu0 0.0
        %457 = vmatpush1.msra.mxu0 0.0
        %458 = vmatprep.subr.mxu0 0.0
        %459 = vmatpush1.msra.mxu0 0.0
        %460 = vmatprep.subr.mxu0 0.0
        %461 = vmatpush1.msra.mxu0 0.0
        %462 = vmatprep.subr.mxu0 0.0
        %463 = vmatpush1.msra.mxu0 0.0
        %464 = vmatprep.subr.mxu0 0.0
        %465 = vmatpush1.msra.mxu0 0.0
        %466 = vmatprep.subr.mxu0 0.0
        %467 = vmatpush1.msra.mxu0 0.0
        %468 = vmatprep.subr.mxu0 0.0
        %469 = vmatpush1.msra.mxu0 0.0
        %470 = vmatprep.subr.mxu0 0.0
        %471 = vmatpush1.msra.mxu0 0.0
        %472 = vmatprep.subr.mxu0 0.0
        %473 = vmatpush1.msra.mxu0 0.0
        %474 = vmatprep.subr.mxu0 0.0
        %475 = vmatpush1.msra.mxu0 0.0
        %476 = vmatprep.subr.mxu0 0.0
        %477 = vmatpush1.msra.mxu0 0.0
        %478 = vmatprep.subr.mxu0 0.0
        %479 = vmatpush1.msra.mxu0 0.0
        %480 = vmatprep.subr.mxu0 0.0
        %481 = vmatpush1.msra.mxu0 0.0
        %482 = vmatprep.subr.mxu0 0.0
        %483 = vmatpush1.msra.mxu0 0.0
        %484 = vmatprep.subr.mxu0 0.0
        %485 = vmatpush1.msra.mxu0 0.0
        %486 = vmatprep.subr.mxu0 0.0
        %487 = vmatpush1.msra.mxu0 0.0
        %488 = vmatprep.subr.mxu0 0.0
        %489 = vmatpush1.msra.mxu0 0.0
        %490 = vmatprep.subr.mxu0 0.0
        %491 = vmatpush1.msra.mxu0 0.0
        %492 = vmatprep.subr.mxu0 0.0
        %493 = vmatpush1.msra.mxu0 0.0
        %494 = vmatprep.subr.mxu0 0.0
        %495 = vmatpush1.msra.mxu0 0.0
        %496 = vmatprep.subr.mxu0 0.0
        %497 = vmatpush1.msra.mxu0 0.0
        %498 = vmatprep.subr.mxu0 0.0
        %499 = vmatpush1.msra.mxu0 0.0
        %500 = vmatprep.subr.mxu0 0.0
        %501 = vmatpush1.msra.mxu0 0.0
        %502 = vmatprep.subr.mxu0 0.0
        %503 = vmatpush1.msra.mxu0 0.0
        %504 = vmatprep.subr.mxu0 0.0
        %505 = vmatpush1.msra.mxu0 0.0
        %506 = vmatprep.mubr.f32.mxu0 0.0
        %507 = vmatmul.mubr.f32.gmra.mrb[0].mxu0 %v440
        %v508 = vpop.f32.mrb[0].mxu0
        %v509 = vadd.f32 0.0, %v508
        %v510 = vpop.f32.mrb[0].mxu0
        %511 = vdwg.mxu0
        %512 = vst.msk [vmem:[#allocation2 + $0x3] sm:$0xff] %vm411, %v509
        %v513 = vld [vmem:[%s3] sm:$0xf]
        %v514 = vld [vmem:[%s4] sm:$0x1]
        %v515 = vld [vmem:[%s5] sm:$0xff]
        %v516 = vld [vmem:[%s5 + $0x8] sm:$0xff]
        %v517 = vld [vmem:[%s5 + $0x10] sm:$0xff]
        %v518 = vld [vmem:[%s5 + $0x18] sm:$0xff]
        %v519 = vld [vmem:[%s5 + $0x20] sm:$0xff]
        %v520 = vld [vmem:[%s5 + $0x28] sm:$0xff]
        %v521 = vld [vmem:[%s5 + $0x30] sm:$0xff]
        %v522 = vld [vmem:[%s5 + $0x38] sm:$0xff]
        %v523 = vld [vmem:[%s6] sm:$0x3]
        %v524 = vld [vmem:[%s7] sm:$0x1]
        %v525 = vld [vmem:[%s8] sm:$0xff]
        %v526 = vld [vmem:[%s8 + $0x8] sm:$0xff]
        %v527 = vld [vmem:[%s9] sm:$0x1]
        %v528 = vld [vmem:[#allocation2] sm:$0xff]
        %v529 = vlaneseq
        %v530 = vshrl.u32 %v529, 7
        %v531 = vsub.s32 0, %v530
        %v532 = vrot.slane %v513, %v531
        %v533 = vmul.f32 %v528, %v532
        %v535 = vlaneseq
        %v536 = vshrl.u32 %v535, 7
        %v537 = vsub.s32 0, %v536
        %v538 = vrot.slane %v514, %v537
        %v540 = vadd.f32 %v538, %v533
        %v541 = vld [vmem:[#allocation2 + $0x1] sm:$0xff]
        %v542 = vlaneseq
        %v543 = vshrl.u32 %v542, 7
        %v544 = vsub.s32 1, %v543
        %v545 = vrot.slane %v513, %v544
        %v546 = vmul.f32 %v541, %v545
        %v547 = vadd.f32 %v540, %v546
        %v548 = vld [vmem:[#allocation2 + $0x2] sm:$0xff]
        %v549 = vlaneseq
        %v550 = vshrl.u32 %v549, 7
        %v551 = vsub.s32 2, %v550
        %v552 = vrot.slane %v513, %v551
        %v553 = vmul.f32 %v548, %v552
        %v554 = vadd.f32 %v547, %v553
        %v555 = vld [vmem:[#allocation2 + $0x3] sm:$0xff]
        %v556 = vlaneseq
        %v557 = vshrl.u32 %v556, 7
        %v558 = vsub.s32 3, %v557
        %v559 = vrot.slane %v513, %v558
        %v560 = vmul.f32 %v555, %v559
        %v561 = vadd.f32 %v554, %v560
        %v562 = vxor.u32 %v561, 2147483648
        %v563 = vmul.f32 %v562, 1.442695
        %v564 = vpow.pop %v563
        %v565 = vadd.f32 %v564, 1.0
        %v566 = vrcp.pop %v565
        %v567 = vmul.f32 1.0, %v566
        %v568 = vmul.f32 %v561, %v567
        %v570 = vsel %vm411, %v568, 0
        %572 = vmatprep.subr.mxu0 0.0
        %573 = vmatpush1.msra.mxu0 %v515
        %574 = vmatprep.subr.mxu0 0.0
        %575 = vmatpush1.msra.mxu0 %v516
        %576 = vmatprep.subr.mxu0 0.0
        %577 = vmatpush1.msra.mxu0 %v517
        %578 = vmatprep.subr.mxu0 0.0
        %579 = vmatpush1.msra.mxu0 %v518
        %580 = vmatprep.subr.mxu0 0.0
        %581 = vmatpush1.msra.mxu0 %v519
        %582 = vmatprep.subr.mxu0 0.0
        %583 = vmatpush1.msra.mxu0 %v520
        %584 = vmatprep.subr.mxu0 0.0
        %585 = vmatpush1.msra.mxu0 %v521
        %586 = vmatprep.subr.mxu0 0.0
        %587 = vmatpush1.msra.mxu0 %v522
        %588 = vmatprep.subr.mxu0 0.0
        %589 = vmatpush1.msra.mxu0 0.0
        %590 = vmatprep.subr.mxu0 0.0
        %591 = vmatpush1.msra.mxu0 0.0
        %592 = vmatprep.subr.mxu0 0.0
        %593 = vmatpush1.msra.mxu0 0.0
        %594 = vmatprep.subr.mxu0 0.0
        %595 = vmatpush1.msra.mxu0 0.0
        %596 = vmatprep.subr.mxu0 0.0
        %597 = vmatpush1.msra.mxu0 0.0
        %598 = vmatprep.subr.mxu0 0.0
        %599 = vmatpush1.msra.mxu0 0.0
        %600 = vmatprep.subr.mxu0 0.0
        %601 = vmatpush1.msra.mxu0 0.0
        %602 = vmatprep.subr.mxu0 0.0
        %603 = vmatpush1.msra.mxu0 0.0
        %604 = vmatprep.subr.mxu0 0.0
        %605 = vmatpush1.msra.mxu0 0.0
        %606 = vmatprep.subr.mxu0 0.0
        %607 = vmatpush1.msra.mxu0 0.0
        %608 = vmatprep.subr.mxu0 0.0
        %609 = vmatpush1.msra.mxu0 0.0
        %610 = vmatprep.subr.mxu0 0.0
        %611 = vmatpush1.msra.mxu0 0.0
        %612 = vmatprep.subr.mxu0 0.0
        %613 = vmatpush1.msra.mxu0 0.0
        %614 = vmatprep.subr.mxu0 0.0
        %615 = vmatpush1.msra.mxu0 0.0
        %616 = vmatprep.subr.mxu0 0.0
        %617 = vmatpush1.msra.mxu0 0.0
        %618 = vmatprep.subr.mxu0 0.0
        %619 = vmatpush1.msra.mxu0 0.0
        %620 = vmatprep.subr.mxu0 0.0
        %621 = vmatpush1.msra.mxu0 0.0
        %622 = vmatprep.subr.mxu0 0.0
        %623 = vmatpush1.msra.mxu0 0.0
        %624 = vmatprep.subr.mxu0 0.0
        %625 = vmatpush1.msra.mxu0 0.0
        %626 = vmatprep.subr.mxu0 0.0
        %627 = vmatpush1.msra.mxu0 0.0
        %628 = vmatprep.subr.mxu0 0.0
        %629 = vmatpush1.msra.mxu0 0.0
        %630 = vmatprep.subr.mxu0 0.0
        %631 = vmatpush1.msra.mxu0 0.0
        %632 = vmatprep.subr.mxu0 0.0
        %633 = vmatpush1.msra.mxu0 0.0
        %634 = vmatprep.subr.mxu0 0.0
        %635 = vmatpush1.msra.mxu0 0.0
        %636 = vmatprep.mubr.f32.mxu0 0.0
        %637 = vmatmul.mubr.f32.gmra.mrb[0].mxu0 %v570
        %v638 = vpop.f32.mrb[0].mxu0
        %v639 = vadd.f32 0.0, %v638
        %v640 = vpop.f32.mrb[0].mxu0
        %641 = vdwg.mxu0
        %643 = vrot.lane.b32.xlu0 %v639, 126
        %v644 = vpop.permute.xlu0 %643
        %646 = vxpose.xlu0.b32.start [1/16] %v644, 128
        %647 = vxpose.xlu0.b32.cont [2/16] 0.0, 128
        %648 = vxpose.xlu0.b32.cont [3/16] 0.0, 128
        %649 = vxpose.xlu0.b32.cont [4/16] 0.0, 128
        %650 = vxpose.xlu0.b32.cont [5/16] 0.0, 128
        %651 = vxpose.xlu0.b32.cont [6/16] 0.0, 128
        %652 = vxpose.xlu0.b32.cont [7/16] 0.0, 128
        %653 = vxpose.xlu0.b32.cont [8/16] 0.0, 128
        %654 = vxpose.xlu0.b32.cont [9/16] 0.0, 128
        %655 = vxpose.xlu0.b32.cont [10/16] 0.0, 128
        %656 = vxpose.xlu0.b32.cont [11/16] 0.0, 128
        %657 = vxpose.xlu0.b32.cont [12/16] 0.0, 128
        %658 = vxpose.xlu0.b32.cont [13/16] 0.0, 128
        %659 = vxpose.xlu0.b32.cont [14/16] 0.0, 128
        %660 = vxpose.xlu0.b32.cont [15/16] 0.0, 128
        %661 = vxpose.xlu0.b32.end [16/16] 0.0, 128
        %v662 = vpop.trf.xlu0
        %v663 = vpop.trf.xlu0
        %v664 = vpop.trf.xlu0
        %v665 = vpop.trf.xlu0
        %v666 = vpop.trf.xlu0
        %v667 = vpop.trf.xlu0
        %v668 = vpop.trf.xlu0
        %v669 = vpop.trf.xlu0
        %v670 = vpop.trf.xlu0
        %v671 = vpop.trf.xlu0
        %v672 = vpop.trf.xlu0
        %v673 = vpop.trf.xlu0
        %v674 = vpop.trf.xlu0
        %v675 = vpop.trf.xlu0
        %v676 = vpop.trf.xlu0
        %v677 = vpop.trf.xlu0
        %678 = vrot.lane.b32.xlu0 %v639, 110
        %v679 = vpop.permute.xlu0 %678
        %681 = vxpose.xlu0.b32.start [1/16] %v679, 128
        %682 = vxpose.xlu0.b32.cont [2/16] 0.0, 128
        %683 = vxpose.xlu0.b32.cont [3/16] 0.0, 128
        %684 = vxpose.xlu0.b32.cont [4/16] 0.0, 128
        %685 = vxpose.xlu0.b32.cont [5/16] 0.0, 128
        %686 = vxpose.xlu0.b32.cont [6/16] 0.0, 128
        %687 = vxpose.xlu0.b32.cont [7/16] 0.0, 128
        %688 = vxpose.xlu0.b32.cont [8/16] 0.0, 128
        %689 = vxpose.xlu0.b32.cont [9/16] 0.0, 128
        %690 = vxpose.xlu0.b32.cont [10/16] 0.0, 128
        %691 = vxpose.xlu0.b32.cont [11/16] 0.0, 128
        %692 = vxpose.xlu0.b32.cont [12/16] 0.0, 128
        %693 = vxpose.xlu0.b32.cont [13/16] 0.0, 128
        %694 = vxpose.xlu0.b32.cont [14/16] 0.0, 128
        %695 = vxpose.xlu0.b32.cont [15/16] 0.0, 128
        %696 = vxpose.xlu0.b32.end [16/16] 0.0, 128
        %v697 = vpop.trf.xlu0
        %v698 = vpop.trf.xlu0
        %v699 = vpop.trf.xlu0
        %v700 = vpop.trf.xlu0
        %v701 = vpop.trf.xlu0
        %v702 = vpop.trf.xlu0
        %v703 = vpop.trf.xlu0
        %v704 = vpop.trf.xlu0
        %v705 = vpop.trf.xlu0
        %v706 = vpop.trf.xlu0
        %v707 = vpop.trf.xlu0
        %v708 = vpop.trf.xlu0
        %v709 = vpop.trf.xlu0
        %v710 = vpop.trf.xlu0
        %v711 = vpop.trf.xlu0
        %v712 = vpop.trf.xlu0
        %v714 = vlaneseq
        %v715 = vshrl.u32 %v714, 7
        %v716 = vsub.s32 0, %v715
        %v717 = vrot.slane %v524, %v716
        %vm719 = vcmask 15360
        %v720 = vsel %vm719, %v639, 0
        %vm722 = vcmask 1041408
        %v724 = vsel %vm722, %v523, 0
        %726 = vmatprep.subr.mxu0 0.0
        %727 = vmatpush1.msra.mxu0 %v724
        %728 = vmatprep.subr.mxu0 0.0
        %729 = vmatpush1.msra.mxu0 0.0
        %730 = vmatprep.subr.mxu0 0.0
        %731 = vmatpush1.msra.mxu0 0.0
        %732 = vmatprep.subr.mxu0 0.0
        %733 = vmatpush1.msra.mxu0 0.0
        %734 = vmatprep.subr.mxu0 0.0
        %735 = vmatpush1.msra.mxu0 0.0
        %736 = vmatprep.subr.mxu0 0.0
        %737 = vmatpush1.msra.mxu0 0.0
        %738 = vmatprep.subr.mxu0 0.0
        %739 = vmatpush1.msra.mxu0 0.0
        %740 = vmatprep.subr.mxu0 0.0
        %741 = vmatpush1.msra.mxu0 0.0
        %742 = vmatprep.subr.mxu0 0.0
        %743 = vmatpush1.msra.mxu0 0.0
        %744 = vmatprep.subr.mxu0 0.0
        %745 = vmatpush1.msra.mxu0 0.0
        %746 = vmatprep.subr.mxu0 0.0
        %747 = vmatpush1.msra.mxu0 0.0
        %748 = vmatprep.subr.mxu0 0.0
        %749 = vmatpush1.msra.mxu0 0.0
        %750 = vmatprep.subr.mxu0 0.0
        %751 = vmatpush1.msra.mxu0 0.0
        %752 = vmatprep.subr.mxu0 0.0
        %753 = vmatpush1.msra.mxu0 0.0
        %754 = vmatprep.subr.mxu0 0.0
        %755 = vmatpush1.msra.mxu0 0.0
        %756 = vmatprep.subr.mxu0 0.0
        %757 = vmatpush1.msra.mxu0 0.0
        %758 = vmatprep.subr.mxu0 0.0
        %759 = vmatpush1.msra.mxu0 0.0
        %760 = vmatprep.subr.mxu0 0.0
        %761 = vmatpush1.msra.mxu0 0.0
        %762 = vmatprep.subr.mxu0 0.0
        %763 = vmatpush1.msra.mxu0 0.0
        %764 = vmatprep.subr.mxu0 0.0
        %765 = vmatpush1.msra.mxu0 0.0
        %766 = vmatprep.subr.mxu0 0.0
        %767 = vmatpush1.msra.mxu0 0.0
        %768 = vmatprep.subr.mxu0 0.0
        %769 = vmatpush1.msra.mxu0 0.0
        %770 = vmatprep.subr.mxu0 0.0
        %771 = vmatpush1.msra.mxu0 0.0
        %772 = vmatprep.subr.mxu0 0.0
        %773 = vmatpush1.msra.mxu0 0.0
        %774 = vmatprep.subr.mxu0 0.0
        %775 = vmatpush1.msra.mxu0 0.0
        %776 = vmatprep.subr.mxu0 0.0
        %777 = vmatpush1.msra.mxu0 0.0
        %778 = vmatprep.subr.mxu0 0.0
        %779 = vmatpush1.msra.mxu0 0.0
        %780 = vmatprep.subr.mxu0 0.0
        %781 = vmatpush1.msra.mxu0 0.0
        %782 = vmatprep.subr.mxu0 0.0
        %783 = vmatpush1.msra.mxu0 0.0
        %784 = vmatprep.subr.mxu0 0.0
        %785 = vmatpush1.msra.mxu0 0.0
        %786 = vmatprep.subr.mxu0 0.0
        %787 = vmatpush1.msra.mxu0 0.0
        %788 = vmatprep.subr.mxu0 0.0
        %789 = vmatpush1.msra.mxu0 0.0
        %790 = vmatprep.mubr.f32.mxu0 0.0
        %791 = vmatmul.mubr.f32.gmra.mrb[0].mxu0 %v720
        %v792 = vpop.f32.mrb[0].mxu0
        %v793 = vadd.f32 %v717, %v792
        %v794 = vpop.f32.mrb[0].mxu0
        %795 = vdwg.mxu0
        %v796 = vmax.f32 %v793, 0.0
        %vm797 = vcmp.ne.f32.partialorder %v793, %v793
        %v798 = vadd.f32 %v793, 0.0
        %v799 = vand.u32 2147483647, %v793
        %v800 = vsub.f32 0.0, %v799
        %v801 = vmul.f32 %v800, 1.442695
        %v802 = vpow.pop %v801
        %v803 = vadd.f32 %v802, 1.0
        %v804 = vlog2.pop %v803
        %v805 = vmul.f32 %v804, 0.6931472
        %v806 = vmul.f32 -0.5, %v802
        %v807 = vadd.f32 %v806, 1.0
        %v808 = vmul.f32 %v807, %v802
        %v809 = vand.u32 2147483647, %v802
        %vm810 = vcmp.lt.f32.partialorder %v809, 0.0004427343
        %v811 = vsel %vm810, %v808, %v805
        %v812 = vadd.f32 %v796, %v811
        %v813 = vsel %vm797, %v798, %v812
        %v814 = vmul.f32 %v525, 1.442695
        %v815 = vpow.pop %v814
        %v816 = vmul.f32 %v526, 1.442695
        %v817 = vpow.pop %v816
        %v818 = vsub.f32 0.0, %v815
        %v819 = vsub.f32 0.0, %v817
        %v820 = vlaneseq
        %v821 = vshrl.u32 %v820, 7
        %v822 = vsub.s32 0, %v821
        %v823 = vrot.slane %v813, %v822
        %v824 = vmul.f32 %v823, %v818
        %v825 = vmul.f32 %v823, %v819
        %v826 = vmul.f32 %v824, 1.442695
        %v827 = vpow.pop %v826
        %v828 = vmul.f32 %v825, 1.442695
        %v829 = vpow.pop %v828
        %v830 = vmul.f32 %v827, 0.0
        %v831 = vmul.f32 %v829, 0.0
        %v832 = vmul.f32 %v813, %v568
        %v833 = vlaneseq
        %v834 = vshrl.u32 %v833, 7
        %v835 = vsub.s32 0, %v834
        %v836 = vrot.slane %v832, %v835
        %838 = vset.pattern.permute.xlu0 0
        %839 = vperm.xlu0 %838, %v662
        %v840 = vpop.permute.xlu0 %839
        %843 = vset.pattern.permute.xlu0 0
        %844 = vperm.xlu0 %843, %v663
        %v845 = vpop.permute.xlu0 %844
        %v847 = vmul.f32 %v836, %v840
        %v848 = vmul.f32 %v836, %v845
        %v849 = vadd.f32 %v830, %v847
        %v850 = vadd.f32 %v831, %v848
        %852 = vset.pattern.permute.xlu0 0
        %853 = vperm.xlu0 %852, %v697
        %v854 = vpop.permute.xlu0 %853
        %857 = vset.pattern.permute.xlu0 0
        %858 = vperm.xlu0 %857, %v698
        %v859 = vpop.permute.xlu0 %858
        %v861 = vmul.f32 %v854, %v849
        %v862 = vmul.f32 %v859, %v850
        %v863 = vsel %vm411, %v861, 0.0
        %v864 = vsel %vm411, %v862, 0.0
        %v865 = vadd.f32 %v863, %v864
        %v866 = vrot.slane %v865, 4
        %v867 = vadd.f32 %v865, %v866
        %v868 = vrot.slane %v867, 2
        %v869 = vadd.f32 %v867, %v868
        %v870 = vrot.slane %v869, 1
        %v871 = vadd.f32 %v869, %v870
        %v872 = vmul.f32 %v527, %v568
        %v873 = vadd.f32 %v871, %v872
        %vm874 = vcmp.eq.s32.totalorder %v410, 0
        %v875 = vlaneseq
        %v876 = vshrl.u32 %v875, 7
        %v877 = vsub.s32 0, %v876
        %v878 = vrot.slane %v873, %v877
        %v879 = vsel %vm874, %v878, 0.0
        %v880 = vlaneseq
        %v881 = vshrl.u32 %v880, 7
        %v882 = vsub.s32 1, %v881
        %v883 = vrot.slane %v813, %v882
        %v884 = vmul.f32 %v883, %v818
        %v885 = vmul.f32 %v883, %v819
        %v886 = vmul.f32 %v884, 1.442695
        %v887 = vpow.pop %v886
        %v888 = vmul.f32 %v885, 1.442695
        %v889 = vpow.pop %v888
        %v890 = vmul.f32 %v887, %v849
        %v891 = vmul.f32 %v889, %v850
        %v892 = vlaneseq
        %v893 = vshrl.u32 %v892, 7
        %v894 = vsub.s32 1, %v893
        %v895 = vrot.slane %v832, %v894
        %896 = vset.pattern.permute.xlu0 1
        %897 = vperm.xlu0 %896, %v662
        %v898 = vpop.permute.xlu0 %897
        %900 = vset.pattern.permute.xlu0 1
        %901 = vperm.xlu0 %900, %v663
        %v902 = vpop.permute.xlu0 %901
        %v904 = vmul.f32 %v895, %v898
        %v905 = vmul.f32 %v895, %v902
        %v906 = vadd.f32 %v890, %v904
        %v907 = vadd.f32 %v891, %v905
        %908 = vset.pattern.permute.xlu0 1
        %909 = vperm.xlu0 %908, %v697
        %v910 = vpop.permute.xlu0 %909
        %912 = vset.pattern.permute.xlu0 1
        %913 = vperm.xlu0 %912, %v698
        %v914 = vpop.permute.xlu0 %913
        %v916 = vmul.f32 %v910, %v906
        %v917 = vmul.f32 %v914, %v907
        %v918 = vsel %vm411, %v916, 0.0
        %v919 = vsel %vm411, %v917, 0.0
        %v920 = vadd.f32 %v918, %v919
        %v921 = vrot.slane %v920, 4
        %v922 = vadd.f32 %v920, %v921
        %v923 = vrot.slane %v922, 2
        %v924 = vadd.f32 %v922, %v923
        %v925 = vrot.slane %v924, 1
        %v926 = vadd.f32 %v924, %v925
        %v928 = vunpack.c.l.s4 1966171168
        %v929 = vunpack.c.0.s8 %v928
        %v930 = vlaneseq
        %v931 = vshrl.u32 %v930, 7
        %v932 = vsub.s32 %v929, %v931
        %v933 = vrot.slane %v568, %v932
        %v934 = vcombine.high %v933, %v933
        %v936 = vunpack.c.l.s4 1966171168
        %v937 = vunpack.c.0.s8 %v936
        %v938 = vlaneseq
        %v939 = vshrl.u32 %v938, 7
        %v940 = vsub.s32 %v937, %v939
        %v941 = vrot.slane %v933, %v940
        %v943 = vunpack.c.l.s4 1966171168
        %v944 = vunpack.c.0.s8 %v943
        %v945 = vlaneseq
        %v946 = vshrl.u32 %v945, 7
        %v947 = vsub.s32 %v944, %v946
        %v948 = vrot.slane %v934, %v947
        %v950 = vmul.f32 %v527, %v948
        %v951 = vadd.f32 %v926, %v950
        %vm952 = vcmp.eq.s32.totalorder %v410, 1
        %v953 = vlaneseq
        %v954 = vshrl.u32 %v953, 7
        %v955 = vsub.s32 0, %v954
        %v956 = vrot.slane %v951, %v955
        %v957 = vsel %vm952, %v956, %v879
        %v958 = vlaneseq
        %v959 = vshrl.u32 %v958, 7
        %v960 = vsub.s32 2, %v959
        %v961 = vrot.slane %v813, %v960
        %v962 = vmul.f32 %v961, %v818
        %v963 = vmul.f32 %v961, %v819
        %v964 = vmul.f32 %v962, 1.442695
        %v965 = vpow.pop %v964
        %v966 = vmul.f32 %v963, 1.442695
        %v967 = vpow.pop %v966
        %v968 = vmul.f32 %v965, %v906
        %v969 = vmul.f32 %v967, %v907
        %v970 = vlaneseq
        %v971 = vshrl.u32 %v970, 7
        %v972 = vsub.s32 2, %v971
        %v973 = vrot.slane %v832, %v972
        %974 = vset.pattern.permute.xlu0 2
        %975 = vperm.xlu0 %974, %v662
        %v976 = vpop.permute.xlu0 %975
        %978 = vset.pattern.permute.xlu0 2
        %979 = vperm.xlu0 %978, %v663
        %v980 = vpop.permute.xlu0 %979
        %v982 = vmul.f32 %v973, %v976
        %v983 = vmul.f32 %v973, %v980
        %v984 = vadd.f32 %v968, %v982
        %v985 = vadd.f32 %v969, %v983
        %986 = vset.pattern.permute.xlu0 2
        %987 = vperm.xlu0 %986, %v697
        %v988 = vpop.permute.xlu0 %987
        %990 = vset.pattern.permute.xlu0 2
        %991 = vperm.xlu0 %990, %v698
        %v992 = vpop.permute.xlu0 %991
        %v994 = vmul.f32 %v988, %v984
        %v995 = vmul.f32 %v992, %v985
        %v996 = vsel %vm411, %v994, 0.0
        %v997 = vsel %vm411, %v995, 0.0
        %v998 = vadd.f32 %v996, %v997
        %v999 = vrot.slane %v998, 4
        %v1000 = vadd.f32 %v998, %v999
        %v1001 = vrot.slane %v1000, 2
        %v1002 = vadd.f32 %v1000, %v1001
        %v1003 = vrot.slane %v1002, 1
        %v1004 = vadd.f32 %v1002, %v1003
        %v1005 = vcombine.high %v941, %v941
        %v1007 = vmul.f32 %v527, %v1005
        %v1008 = vadd.f32 %v1004, %v1007
        %vm1009 = vcmp.eq.s32.totalorder %v410, 2
        %v1010 = vlaneseq
        %v1011 = vshrl.u32 %v1010, 7
        %v1012 = vsub.s32 0, %v1011
        %v1013 = vrot.slane %v1008, %v1012
        %v1014 = vsel %vm1009, %v1013, %v957
        %v1015 = vlaneseq
        %v1016 = vshrl.u32 %v1015, 7
        %v1017 = vsub.s32 3, %v1016
        %v1018 = vrot.slane %v813, %v1017
        %v1019 = vmul.f32 %v1018, %v818
        %v1020 = vmul.f32 %v1018, %v819
        %v1021 = vmul.f32 %v1019, 1.442695
        %v1022 = vpow.pop %v1021
        %v1023 = vmul.f32 %v1020, 1.442695
        %v1024 = vpow.pop %v1023
        %v1025 = vmul.f32 %v1022, %v984
        %v1026 = vmul.f32 %v1024, %v985
        %v1027 = vlaneseq
        %v1028 = vshrl.u32 %v1027, 7
        %v1029 = vsub.s32 3, %v1028
        %v1030 = vrot.slane %v832, %v1029
        %1031 = vset.pattern.permute.xlu0 3
        %1032 = vperm.xlu0 %1031, %v662
        %v1033 = vpop.permute.xlu0 %1032
        %1035 = vset.pattern.permute.xlu0 3
        %1036 = vperm.xlu0 %1035, %v663
        %v1037 = vpop.permute.xlu0 %1036
        %v1039 = vmul.f32 %v1030, %v1033
        %v1040 = vmul.f32 %v1030, %v1037
        %v1041 = vadd.f32 %v1025, %v1039
        %v1042 = vadd.f32 %v1026, %v1040
        %1043 = vset.pattern.permute.xlu0 3
        %1044 = vperm.xlu0 %1043, %v697
        %v1045 = vpop.permute.xlu0 %1044
        %1047 = vset.pattern.permute.xlu0 3
        %1048 = vperm.xlu0 %1047, %v698
        %v1049 = vpop.permute.xlu0 %1048
        %v1051 = vmul.f32 %v1045, %v1041
        %v1052 = vmul.f32 %v1049, %v1042
        %v1053 = vsel %vm411, %v1051, 0.0
        %v1054 = vsel %vm411, %v1052, 0.0
        %v1055 = vadd.f32 %v1053, %v1054
        %v1056 = vrot.slane %v1055, 4
        %v1057 = vadd.f32 %v1055, %v1056
        %v1058 = vrot.slane %v1057, 2
        %v1059 = vadd.f32 %v1057, %v1058
        %v1060 = vrot.slane %v1059, 1
        %v1061 = vadd.f32 %v1059, %v1060
        %v1062 = vcombine.high %v948, %v948
        %v1064 = vmul.f32 %v527, %v1062
        %v1065 = vadd.f32 %v1061, %v1064
        %vm1066 = vcmp.eq.s32.totalorder %v410, 3
        %v1067 = vlaneseq
        %v1068 = vshrl.u32 %v1067, 7
        %v1069 = vsub.s32 0, %v1068
        %v1070 = vrot.slane %v1065, %v1069
        %v1071 = vsel %vm1066, %v1070, %v1014
        %v1072 = vlaneseq
        %v1073 = vshrl.u32 %v1072, 7
        %v1074 = vsub.s32 4, %v1073
        %v1075 = vrot.slane %v813, %v1074
        %v1076 = vmul.f32 %v1075, %v818
        %v1077 = vmul.f32 %v1075, %v819
        %v1078 = vmul.f32 %v1076, 1.442695
        %v1079 = vpow.pop %v1078
        %v1080 = vmul.f32 %v1077, 1.442695
        %v1081 = vpow.pop %v1080
        %v1082 = vmul.f32 %v1079, %v1041
        %v1083 = vmul.f32 %v1081, %v1042
        %v1084 = vlaneseq
        %v1085 = vshrl.u32 %v1084, 7
        %v1086 = vsub.s32 4, %v1085
        %v1087 = vrot.slane %v832, %v1086
        %1088 = vset.pattern.permute.xlu0 4
        %1089 = vperm.xlu0 %1088, %v662
        %v1090 = vpop.permute.xlu0 %1089
        %1092 = vset.pattern.permute.xlu0 4
        %1093 = vperm.xlu0 %1092, %v663
        %v1094 = vpop.permute.xlu0 %1093
        %v1096 = vmul.f32 %v1087, %v1090
        %v1097 = vmul.f32 %v1087, %v1094
        %v1098 = vadd.f32 %v1082, %v1096
        %v1099 = vadd.f32 %v1083, %v1097
        %1100 = vset.pattern.permute.xlu0 4
        %1101 = vperm.xlu0 %1100, %v697
        %v1102 = vpop.permute.xlu0 %1101
        %1104 = vset.pattern.permute.xlu0 4
        %1105 = vperm.xlu0 %1104, %v698
        %v1106 = vpop.permute.xlu0 %1105
        %v1108 = vmul.f32 %v1102, %v1098
        %v1109 = vmul.f32 %v1106, %v1099
        %v1110 = vsel %vm411, %v1108, 0.0
        %v1111 = vsel %vm411, %v1109, 0.0
        %v1112 = vadd.f32 %v1110, %v1111
        %v1113 = vrot.slane %v1112, 4
        %v1114 = vadd.f32 %v1112, %v1113
        %v1115 = vrot.slane %v1114, 2
        %v1116 = vadd.f32 %v1114, %v1115
        %v1117 = vrot.slane %v1116, 1
        %v1118 = vadd.f32 %v1116, %v1117
        %v1119 = vcombine.high %v568, %v568
        %v1121 = vunpack.c.l.s4 1966171168
        %v1122 = vunpack.c.0.s8 %v1121
        %v1123 = vlaneseq
        %v1124 = vshrl.u32 %v1123, 7
        %v1125 = vsub.s32 %v1122, %v1124
        %v1126 = vrot.slane %v1119, %v1125
        %v1128 = vunpack.c.l.s4 1966171168
        %v1129 = vunpack.c.0.s8 %v1128
        %v1130 = vlaneseq
        %v1131 = vshrl.u32 %v1130, 7
        %v1132 = vsub.s32 %v1129, %v1131
        %v1133 = vrot.slane %v1126, %v1132
        %v1135 = vmul.f32 %v527, %v1133
        %v1136 = vadd.f32 %v1118, %v1135
        %vm1137 = vcmp.eq.s32.totalorder %v410, 4
        %v1138 = vlaneseq
        %v1139 = vshrl.u32 %v1138, 7
        %v1140 = vsub.s32 0, %v1139
        %v1141 = vrot.slane %v1136, %v1140
        %v1142 = vsel %vm1137, %v1141, %v1071
        %v1143 = vlaneseq
        %v1144 = vshrl.u32 %v1143, 7
        %v1145 = vsub.s32 5, %v1144
        %v1146 = vrot.slane %v813, %v1145
        %v1147 = vmul.f32 %v1146, %v818
        %v1148 = vmul.f32 %v1146, %v819
        %v1149 = vmul.f32 %v1147, 1.442695
        %v1150 = vpow.pop %v1149
        %v1151 = vmul.f32 %v1148, 1.442695
        %v1152 = vpow.pop %v1151
        %v1153 = vmul.f32 %v1150, %v1098
        %v1154 = vmul.f32 %v1152, %v1099
        %v1155 = vlaneseq
        %v1156 = vshrl.u32 %v1155, 7
        %v1157 = vsub.s32 5, %v1156
        %v1158 = vrot.slane %v832, %v1157
        %1159 = vset.pattern.permute.xlu0 5
        %1160 = vperm.xlu0 %1159, %v662
        %v1161 = vpop.permute.xlu0 %1160
        %1163 = vset.pattern.permute.xlu0 5
        %1164 = vperm.xlu0 %1163, %v663
        %v1165 = vpop.permute.xlu0 %1164
        %v1167 = vmul.f32 %v1158, %v1161
        %v1168 = vmul.f32 %v1158, %v1165
        %v1169 = vadd.f32 %v1153, %v1167
        %v1170 = vadd.f32 %v1154, %v1168
        %1171 = vset.pattern.permute.xlu0 5
        %1172 = vperm.xlu0 %1171, %v697
        %v1173 = vpop.permute.xlu0 %1172
        %1175 = vset.pattern.permute.xlu0 5
        %1176 = vperm.xlu0 %1175, %v698
        %v1177 = vpop.permute.xlu0 %1176
        %v1179 = vmul.f32 %v1173, %v1169
        %v1180 = vmul.f32 %v1177, %v1170
        %v1181 = vsel %vm411, %v1179, 0.0
        %v1182 = vsel %vm411, %v1180, 0.0
        %v1183 = vadd.f32 %v1181, %v1182
        %v1184 = vrot.slane %v1183, 4
        %v1185 = vadd.f32 %v1183, %v1184
        %v1186 = vrot.slane %v1185, 2
        %v1187 = vadd.f32 %v1185, %v1186
        %v1188 = vrot.slane %v1187, 1
        %v1189 = vadd.f32 %v1187, %v1188
        %v1190 = vcombine.high %v1126, %v1126
        %v1192 = vunpack.c.l.s4 1966171168
        %v1193 = vunpack.c.0.s8 %v1192
        %v1194 = vlaneseq
        %v1195 = vshrl.u32 %v1194, 7
        %v1196 = vsub.s32 %v1193, %v1195
        %v1197 = vrot.slane %v1190, %v1196
        %v1199 = vmul.f32 %v527, %v1197
        %v1200 = vadd.f32 %v1189, %v1199
        %vm1201 = vcmp.eq.s32.totalorder %v410, 5
        %v1202 = vlaneseq
        %v1203 = vshrl.u32 %v1202, 7
        %v1204 = vsub.s32 0, %v1203
        %v1205 = vrot.slane %v1200, %v1204
        %v1206 = vsel %vm1201, %v1205, %v1142
        %v1207 = vlaneseq
        %v1208 = vshrl.u32 %v1207, 7
        %v1209 = vsub.s32 6, %v1208
        %v1210 = vrot.slane %v813, %v1209
        %v1211 = vmul.f32 %v1210, %v818
        %v1212 = vmul.f32 %v1210, %v819
        %v1213 = vmul.f32 %v1211, 1.442695
        %v1214 = vpow.pop %v1213
        %v1215 = vmul.f32 %v1212, 1.442695
        %v1216 = vpow.pop %v1215
        %v1217 = vmul.f32 %v1214, %v1169
        %v1218 = vmul.f32 %v1216, %v1170
        %v1219 = vlaneseq
        %v1220 = vshrl.u32 %v1219, 7
        %v1221 = vsub.s32 6, %v1220
        %v1222 = vrot.slane %v832, %v1221
        %1223 = vset.pattern.permute.xlu0 6
        %1224 = vperm.xlu0 %1223, %v662
        %v1225 = vpop.permute.xlu0 %1224
        %1227 = vset.pattern.permute.xlu0 6
        %1228 = vperm.xlu0 %1227, %v663
        %v1229 = vpop.permute.xlu0 %1228
        %v1231 = vmul.f32 %v1222, %v1225
        %v1232 = vmul.f32 %v1222, %v1229
        %v1233 = vadd.f32 %v1217, %v1231
        %v1234 = vadd.f32 %v1218, %v1232
        %1235 = vset.pattern.permute.xlu0 6
        %1236 = vperm.xlu0 %1235, %v697
        %v1237 = vpop.permute.xlu0 %1236
        %1239 = vset.pattern.permute.xlu0 6
        %1240 = vperm.xlu0 %1239, %v698
        %v1241 = vpop.permute.xlu0 %1240
        %v1243 = vmul.f32 %v1237, %v1233
        %v1244 = vmul.f32 %v1241, %v1234
        %v1245 = vsel %vm411, %v1243, 0.0
        %v1246 = vsel %vm411, %v1244, 0.0
        %v1247 = vadd.f32 %v1245, %v1246
        %v1248 = vrot.slane %v1247, 4
        %v1249 = vadd.f32 %v1247, %v1248
        %v1250 = vrot.slane %v1249, 2
        %v1251 = vadd.f32 %v1249, %v1250
        %v1252 = vrot.slane %v1251, 1
        %v1253 = vadd.f32 %v1251, %v1252
        %v1254 = vcombine.high %v1133, %v1133
        %v1256 = vmul.f32 %v527, %v1254
        %v1257 = vadd.f32 %v1253, %v1256
        %vm1258 = vcmp.eq.s32.totalorder %v410, 6
        %v1259 = vlaneseq
        %v1260 = vshrl.u32 %v1259, 7
        %v1261 = vsub.s32 0, %v1260
        %v1262 = vrot.slane %v1257, %v1261
        %v1263 = vsel %vm1258, %v1262, %v1206
        %v1264 = vlaneseq
        %v1265 = vshrl.u32 %v1264, 7
        %v1266 = vsub.s32 7, %v1265
        %v1267 = vrot.slane %v813, %v1266
        %v1268 = vmul.f32 %v1267, %v818
        %v1269 = vmul.f32 %v1267, %v819
        %v1270 = vmul.f32 %v1268, 1.442695
        %v1271 = vpow.pop %v1270
        %v1272 = vmul.f32 %v1269, 1.442695
        %v1273 = vpow.pop %v1272
        %v1274 = vmul.f32 %v1271, %v1233
        %v1275 = vmul.f32 %v1273, %v1234
        %v1276 = vlaneseq
        %v1277 = vshrl.u32 %v1276, 7
        %v1278 = vsub.s32 7, %v1277
        %v1279 = vrot.slane %v832, %v1278
        %1280 = vset.pattern.permute.xlu0 7
        %1281 = vperm.xlu0 %1280, %v662
        %v1282 = vpop.permute.xlu0 %1281
        %1284 = vset.pattern.permute.xlu0 7
        %1285 = vperm.xlu0 %1284, %v663
        %v1286 = vpop.permute.xlu0 %1285
        %v1288 = vmul.f32 %v1279, %v1282
        %v1289 = vmul.f32 %v1279, %v1286
        %v1290 = vadd.f32 %v1274, %v1288
        %v1291 = vadd.f32 %v1275, %v1289
        %1292 = vset.pattern.permute.xlu0 7
        %1293 = vperm.xlu0 %1292, %v697
        %v1294 = vpop.permute.xlu0 %1293
        %1296 = vset.pattern.permute.xlu0 7
        %1297 = vperm.xlu0 %1296, %v698
        %v1298 = vpop.permute.xlu0 %1297
        %v1300 = vmul.f32 %v1294, %v1290
        %v1301 = vmul.f32 %v1298, %v1291
        %v1302 = vsel %vm411, %v1300, 0.0
        %v1303 = vsel %vm411, %v1301, 0.0
        %v1304 = vadd.f32 %v1302, %v1303
        %v1305 = vrot.slane %v1304, 4
        %v1306 = vadd.f32 %v1304, %v1305
        %v1307 = vrot.slane %v1306, 2
        %v1308 = vadd.f32 %v1306, %v1307
        %v1309 = vrot.slane %v1308, 1
        %v1310 = vadd.f32 %v1308, %v1309
        %v1311 = vcombine.high %v1197, %v1197
        %v1313 = vmul.f32 %v527, %v1311
        %v1314 = vadd.f32 %v1310, %v1313
        %vm1315 = vcmp.eq.s32.totalorder %v410, 7
        %v1316 = vlaneseq
        %v1317 = vshrl.u32 %v1316, 7
        %v1318 = vsub.s32 0, %v1317
        %v1319 = vrot.slane %v1314, %v1318
        %v1320 = vsel %vm1315, %v1319, %v1263
        %v1321 = vxor.u32 %v509, 2147483648
        %v1322 = vmul.f32 %v1321, 1.442695
        %v1323 = vpow.pop %v1322
        %v1324 = vadd.f32 %v1323, 1.0
        %v1325 = vrcp.pop %v1324
        %v1326 = vmul.f32 1.0, %v1325
        %v1327 = vmul.f32 %v509, %v1326
        %1329 = vrot.lane.b32.xlu0 %v1327, 64
        %v1330 = vpop.permute.xlu0 %1329
        %v1332 = vmul.f32 %v1320, %v1330
        %v1333 = vadd.f32 %v1332, 0.0
        %s1334 = scalar_lea.vmem %s3, 4
        %v1335 = vld [vmem:[%s1334] sm:$0xf]
        %s1336 = scalar_lea.vmem %s4, 1
        %v1337 = vld [vmem:[%s1336] sm:$0x1]
        %s1338 = scalar_lea.vmem %s5, 64
        %v1339 = vld [vmem:[%s1338] sm:$0xff]
        %v1340 = vld [vmem:[%s1338 + $0x8] sm:$0xff]
        %v1341 = vld [vmem:[%s1338 + $0x10] sm:$0xff]
        %v1342 = vld [vmem:[%s1338 + $0x18] sm:$0xff]
        %v1343 = vld [vmem:[%s1338 + $0x20] sm:$0xff]
        %v1344 = vld [vmem:[%s1338 + $0x28] sm:$0xff]
        %v1345 = vld [vmem:[%s1338 + $0x30] sm:$0xff]
        %v1346 = vld [vmem:[%s1338 + $0x38] sm:$0xff]
        %s1347 = scalar_lea.vmem %s6, 2
        %v1348 = vld [vmem:[%s1347] sm:$0x3]
        %s1349 = scalar_lea.vmem %s7, 1
        %v1350 = vld [vmem:[%s1349] sm:$0x1]
        %s1351 = scalar_lea.vmem %s8, 16
        %v1352 = vld [vmem:[%s1351] sm:$0xff]
        %v1353 = vld [vmem:[%s1351 + $0x8] sm:$0xff]
        %s1354 = scalar_lea.vmem %s9, 1
        %v1355 = vld [vmem:[%s1354] sm:$0x1]
        %v1356 = vld [vmem:[#allocation2 + $0x6] sm:$0xff]
        %v1357 = vlaneseq
        %v1358 = vshrl.u32 %v1357, 7
        %v1359 = vsub.s32 0, %v1358
        %v1360 = vrot.slane %v1335, %v1359
        %v1361 = vmul.f32 %v1356, %v1360
        %v1363 = vlaneseq
        %v1364 = vshrl.u32 %v1363, 7
        %v1365 = vsub.s32 0, %v1364
        %v1366 = vrot.slane %v1337, %v1365
        %v1368 = vadd.f32 %v1366, %v1361
        %v1369 = vld [vmem:[#allocation2 + $0x5] sm:$0xff]
        %v1370 = vlaneseq
        %v1371 = vshrl.u32 %v1370, 7
        %v1372 = vsub.s32 1, %v1371
        %v1373 = vrot.slane %v1335, %v1372
        %v1374 = vmul.f32 %v1369, %v1373
        %v1375 = vadd.f32 %v1368, %v1374
        %v1376 = vld [vmem:[#allocation2 + $0x4] sm:$0xff]
        %v1377 = vlaneseq
        %v1378 = vshrl.u32 %v1377, 7
        %v1379 = vsub.s32 2, %v1378
        %v1380 = vrot.slane %v1335, %v1379
        %v1381 = vmul.f32 %v1376, %v1380
        %v1382 = vadd.f32 %v1375, %v1381
        %v1383 = vlaneseq
        %v1384 = vshrl.u32 %v1383, 7
        %v1385 = vsub.s32 3, %v1384
        %v1386 = vrot.slane %v1335, %v1385
        %v1387 = vmul.f32 %v555, %v1386
        %v1388 = vadd.f32 %v1382, %v1387
        %v1389 = vxor.u32 %v1388, 2147483648
        %v1390 = vmul.f32 %v1389, 1.442695
        %v1391 = vpow.pop %v1390
        %v1392 = vadd.f32 %v1391, 1.0
        %v1393 = vrcp.pop %v1392
        %v1394 = vmul.f32 1.0, %v1393
        %v1395 = vmul.f32 %v1388, %v1394
        %v1397 = vsel %vm411, %v1395, 0
        %1399 = vmatprep.subr.mxu0 0.0
        %1400 = vmatpush1.msra.mxu0 %v1339
        %1401 = vmatprep.subr.mxu0 0.0
        %1402 = vmatpush1.msra.mxu0 %v1340
        %1403 = vmatprep.subr.mxu0 0.0
        %1404 = vmatpush1.msra.mxu0 %v1341
        %1405 = vmatprep.subr.mxu0 0.0
        %1406 = vmatpush1.msra.mxu0 %v1342
        %1407 = vmatprep.subr.mxu0 0.0
        %1408 = vmatpush1.msra.mxu0 %v1343
        %1409 = vmatprep.subr.mxu0 0.0
        %1410 = vmatpush1.msra.mxu0 %v1344
        %1411 = vmatprep.subr.mxu0 0.0
        %1412 = vmatpush1.msra.mxu0 %v1345
        %1413 = vmatprep.subr.mxu0 0.0
        %1414 = vmatpush1.msra.mxu0 %v1346
        %1415 = vmatprep.subr.mxu0 0.0
        %1416 = vmatpush1.msra.mxu0 0.0
        %1417 = vmatprep.subr.mxu0 0.0
        %1418 = vmatpush1.msra.mxu0 0.0
        %1419 = vmatprep.subr.mxu0 0.0
        %1420 = vmatpush1.msra.mxu0 0.0
        %1421 = vmatprep.subr.mxu0 0.0
        %1422 = vmatpush1.msra.mxu0 0.0
        %1423 = vmatprep.subr.mxu0 0.0
        %1424 = vmatpush1.msra.mxu0 0.0
        %1425 = vmatprep.subr.mxu0 0.0
        %1426 = vmatpush1.msra.mxu0 0.0
        %1427 = vmatprep.subr.mxu0 0.0
        %1428 = vmatpush1.msra.mxu0 0.0
        %1429 = vmatprep.subr.mxu0 0.0
        %1430 = vmatpush1.msra.mxu0 0.0
        %1431 = vmatprep.subr.mxu0 0.0
        %1432 = vmatpush1.msra.mxu0 0.0
        %1433 = vmatprep.subr.mxu0 0.0
        %1434 = vmatpush1.msra.mxu0 0.0
        %1435 = vmatprep.subr.mxu0 0.0
        %1436 = vmatpush1.msra.mxu0 0.0
        %1437 = vmatprep.subr.mxu0 0.0
        %1438 = vmatpush1.msra.mxu0 0.0
        %1439 = vmatprep.subr.mxu0 0.0
        %1440 = vmatpush1.msra.mxu0 0.0
        %1441 = vmatprep.subr.mxu0 0.0
        %1442 = vmatpush1.msra.mxu0 0.0
        %1443 = vmatprep.subr.mxu0 0.0
        %1444 = vmatpush1.msra.mxu0 0.0
        %1445 = vmatprep.subr.mxu0 0.0
        %1446 = vmatpush1.msra.mxu0 0.0
        %1447 = vmatprep.subr.mxu0 0.0
        %1448 = vmatpush1.msra.mxu0 0.0
        %1449 = vmatprep.subr.mxu0 0.0
        %1450 = vmatpush1.msra.mxu0 0.0
        %1451 = vmatprep.subr.mxu0 0.0
        %1452 = vmatpush1.msra.mxu0 0.0
        %1453 = vmatprep.subr.mxu0 0.0
        %1454 = vmatpush1.msra.mxu0 0.0
        %1455 = vmatprep.subr.mxu0 0.0
        %1456 = vmatpush1.msra.mxu0 0.0
        %1457 = vmatprep.subr.mxu0 0.0
        %1458 = vmatpush1.msra.mxu0 0.0
        %1459 = vmatprep.subr.mxu0 0.0
        %1460 = vmatpush1.msra.mxu0 0.0
        %1461 = vmatprep.subr.mxu0 0.0
        %1462 = vmatpush1.msra.mxu0 0.0
        %1463 = vmatprep.mubr.f32.mxu0 0.0
        %1464 = vmatmul.mubr.f32.gmra.mrb[0].mxu0 %v1397
        %v1465 = vpop.f32.mrb[0].mxu0
        %v1466 = vadd.f32 0.0, %v1465
        %v1467 = vpop.f32.mrb[0].mxu0
        %1468 = vdwg.mxu0
        %1470 = vrot.lane.b32.xlu0 %v1466, 126
        %v1471 = vpop.permute.xlu0 %1470
        %1473 = vxpose.xlu0.b32.start [1/16] %v1471, 128
        %1474 = vxpose.xlu0.b32.cont [2/16] 0.0, 128
        %1475 = vxpose.xlu0.b32.cont [3/16] 0.0, 128
        %1476 = vxpose.xlu0.b32.cont [4/16] 0.0, 128
        %1477 = vxpose.xlu0.b32.cont [5/16] 0.0, 128
        %1478 = vxpose.xlu0.b32.cont [6/16] 0.0, 128
        %1479 = vxpose.xlu0.b32.cont [7/16] 0.0, 128
        %1480 = vxpose.xlu0.b32.cont [8/16] 0.0, 128
        %1481 = vxpose.xlu0.b32.cont [9/16] 0.0, 128
        %1482 = vxpose.xlu0.b32.cont [10/16] 0.0, 128
        %1483 = vxpose.xlu0.b32.cont [11/16] 0.0, 128
        %1484 = vxpose.xlu0.b32.cont [12/16] 0.0, 128
        %1485 = vxpose.xlu0.b32.cont [13/16] 0.0, 128
        %1486 = vxpose.xlu0.b32.cont [14/16] 0.0, 128
        %1487 = vxpose.xlu0.b32.cont [15/16] 0.0, 128
        %1488 = vxpose.xlu0.b32.end [16/16] 0.0, 128
        %v1489 = vpop.trf.xlu0
        %v1490 = vpop.trf.xlu0
        %v1491 = vpop.trf.xlu0
        %v1492 = vpop.trf.xlu0
        %v1493 = vpop.trf.xlu0
        %v1494 = vpop.trf.xlu0
        %v1495 = vpop.trf.xlu0
        %v1496 = vpop.trf.xlu0
        %v1497 = vpop.trf.xlu0
        %v1498 = vpop.trf.xlu0
        %v1499 = vpop.trf.xlu0
        %v1500 = vpop.trf.xlu0
        %v1501 = vpop.trf.xlu0
        %v1502 = vpop.trf.xlu0
        %v1503 = vpop.trf.xlu0
        %v1504 = vpop.trf.xlu0
        %1505 = vrot.lane.b32.xlu0 %v1466, 110
        %v1506 = vpop.permute.xlu0 %1505
        %1508 = vxpose.xlu0.b32.start [1/16] %v1506, 128
        %1509 = vxpose.xlu0.b32.cont [2/16] 0.0, 128
        %1510 = vxpose.xlu0.b32.cont [3/16] 0.0, 128
        %1511 = vxpose.xlu0.b32.cont [4/16] 0.0, 128
        %1512 = vxpose.xlu0.b32.cont [5/16] 0.0, 128
        %1513 = vxpose.xlu0.b32.cont [6/16] 0.0, 128
        %1514 = vxpose.xlu0.b32.cont [7/16] 0.0, 128
        %1515 = vxpose.xlu0.b32.cont [8/16] 0.0, 128
        %1516 = vxpose.xlu0.b32.cont [9/16] 0.0, 128
        %1517 = vxpose.xlu0.b32.cont [10/16] 0.0, 128
        %1518 = vxpose.xlu0.b32.cont [11/16] 0.0, 128
        %1519 = vxpose.xlu0.b32.cont [12/16] 0.0, 128
        %1520 = vxpose.xlu0.b32.cont [13/16] 0.0, 128
        %1521 = vxpose.xlu0.b32.cont [14/16] 0.0, 128
        %1522 = vxpose.xlu0.b32.cont [15/16] 0.0, 128
        %1523 = vxpose.xlu0.b32.end [16/16] 0.0, 128
        %v1524 = vpop.trf.xlu0
        %v1525 = vpop.trf.xlu0
        %v1526 = vpop.trf.xlu0
        %v1527 = vpop.trf.xlu0
        %v1528 = vpop.trf.xlu0
        %v1529 = vpop.trf.xlu0
        %v1530 = vpop.trf.xlu0
        %v1531 = vpop.trf.xlu0
        %v1532 = vpop.trf.xlu0
        %v1533 = vpop.trf.xlu0
        %v1534 = vpop.trf.xlu0
        %v1535 = vpop.trf.xlu0
        %v1536 = vpop.trf.xlu0
        %v1537 = vpop.trf.xlu0
        %v1538 = vpop.trf.xlu0
        %v1539 = vpop.trf.xlu0
        %v1541 = vlaneseq
        %v1542 = vshrl.u32 %v1541, 7
        %v1543 = vsub.s32 0, %v1542
        %v1544 = vrot.slane %v1350, %v1543
        %v1546 = vsel %vm719, %v1466, 0
        %v1549 = vsel %vm722, %v1348, 0
        %1551 = vmatprep.subr.mxu0 0.0
        %1552 = vmatpush1.msra.mxu0 %v1549
        %1553 = vmatprep.subr.mxu0 0.0
        %1554 = vmatpush1.msra.mxu0 0.0
        %1555 = vmatprep.subr.mxu0 0.0
        %1556 = vmatpush1.msra.mxu0 0.0
        %1557 = vmatprep.subr.mxu0 0.0
        %1558 = vmatpush1.msra.mxu0 0.0
        %1559 = vmatprep.subr.mxu0 0.0
        %1560 = vmatpush1.msra.mxu0 0.0
        %1561 = vmatprep.subr.mxu0 0.0
        %1562 = vmatpush1.msra.mxu0 0.0
        %1563 = vmatprep.subr.mxu0 0.0
        %1564 = vmatpush1.msra.mxu0 0.0
        %1565 = vmatprep.subr.mxu0 0.0
        %1566 = vmatpush1.msra.mxu0 0.0
        %1567 = vmatprep.subr.mxu0 0.0
        %1568 = vmatpush1.msra.mxu0 0.0
        %1569 = vmatprep.subr.mxu0 0.0
        %1570 = vmatpush1.msra.mxu0 0.0
        %1571 = vmatprep.subr.mxu0 0.0
        %1572 = vmatpush1.msra.mxu0 0.0
        %1573 = vmatprep.subr.mxu0 0.0
        %1574 = vmatpush1.msra.mxu0 0.0
        %1575 = vmatprep.subr.mxu0 0.0
        %1576 = vmatpush1.msra.mxu0 0.0
        %1577 = vmatprep.subr.mxu0 0.0
        %1578 = vmatpush1.msra.mxu0 0.0
        %1579 = vmatprep.subr.mxu0 0.0
        %1580 = vmatpush1.msra.mxu0 0.0
        %1581 = vmatprep.subr.mxu0 0.0
        %1582 = vmatpush1.msra.mxu0 0.0
        %1583 = vmatprep.subr.mxu0 0.0
        %1584 = vmatpush1.msra.mxu0 0.0
        %1585 = vmatprep.subr.mxu0 0.0
        %1586 = vmatpush1.msra.mxu0 0.0
        %1587 = vmatprep.subr.mxu0 0.0
        %1588 = vmatpush1.msra.mxu0 0.0
        %1589 = vmatprep.subr.mxu0 0.0
        %1590 = vmatpush1.msra.mxu0 0.0
        %1591 = vmatprep.subr.mxu0 0.0
        %1592 = vmatpush1.msra.mxu0 0.0
        %1593 = vmatprep.subr.mxu0 0.0
        %1594 = vmatpush1.msra.mxu0 0.0
        %1595 = vmatprep.subr.mxu0 0.0
        %1596 = vmatpush1.msra.mxu0 0.0
        %1597 = vmatprep.subr.mxu0 0.0
        %1598 = vmatpush1.msra.mxu0 0.0
        %1599 = vmatprep.subr.mxu0 0.0
        %1600 = vmatpush1.msra.mxu0 0.0
        %1601 = vmatprep.subr.mxu0 0.0
        %1602 = vmatpush1.msra.mxu0 0.0
        %1603 = vmatprep.subr.mxu0 0.0
        %1604 = vmatpush1.msra.mxu0 0.0
        %1605 = vmatprep.subr.mxu0 0.0
        %1606 = vmatpush1.msra.mxu0 0.0
        %1607 = vmatprep.subr.mxu0 0.0
        %1608 = vmatpush1.msra.mxu0 0.0
        %1609 = vmatprep.subr.mxu0 0.0
        %1610 = vmatpush1.msra.mxu0 0.0
        %1611 = vmatprep.subr.mxu0 0.0
        %1612 = vmatpush1.msra.mxu0 0.0
        %1613 = vmatprep.subr.mxu0 0.0
        %1614 = vmatpush1.msra.mxu0 0.0
        %1615 = vmatprep.mubr.f32.mxu0 0.0
        %1616 = vmatmul.mubr.f32.gmra.mrb[0].mxu0 %v1546
        %v1617 = vpop.f32.mrb[0].mxu0
        %v1618 = vadd.f32 %v1544, %v1617
        %v1619 = vpop.f32.mrb[0].mxu0
        %1620 = vdwg.mxu0
        %v1621 = vmax.f32 %v1618, 0.0
        %vm1622 = vcmp.ne.f32.partialorder %v1618, %v1618
        %v1623 = vadd.f32 %v1618, 0.0
        %v1624 = vand.u32 2147483647, %v1618
        %v1625 = vsub.f32 0.0, %v1624
        %v1626 = vmul.f32 %v1625, 1.442695
        %v1627 = vpow.pop %v1626
        %v1628 = vadd.f32 %v1627, 1.0
        %v1629 = vlog2.pop %v1628
        %v1630 = vmul.f32 %v1629, 0.6931472
        %v1631 = vmul.f32 -0.5, %v1627
        %v1632 = vadd.f32 %v1631, 1.0
        %v1633 = vmul.f32 %v1632, %v1627
        %v1634 = vand.u32 2147483647, %v1627
        %vm1635 = vcmp.lt.f32.partialorder %v1634, 0.0004427343
        %v1636 = vsel %vm1635, %v1633, %v1630
        %v1637 = vadd.f32 %v1621, %v1636
        %v1638 = vsel %vm1622, %v1623, %v1637
        %v1639 = vmul.f32 %v1352, 1.442695
        %v1640 = vpow.pop %v1639
        %v1641 = vmul.f32 %v1353, 1.442695
        %v1642 = vpow.pop %v1641
        %v1643 = vsub.f32 0.0, %v1640
        %v1644 = vsub.f32 0.0, %v1642
        %v1645 = vlaneseq
        %v1646 = vshrl.u32 %v1645, 7
        %v1647 = vsub.s32 7, %v1646
        %v1648 = vrot.slane %v1638, %v1647
        %v1649 = vmul.f32 %v1648, %v1643
        %v1650 = vmul.f32 %v1648, %v1644
        %v1651 = vmul.f32 %v1649, 1.442695
        %v1652 = vpow.pop %v1651
        %v1653 = vmul.f32 %v1650, 1.442695
        %v1654 = vpow.pop %v1653
        %v1655 = vmul.f32 %v1652, 0.0
        %v1656 = vmul.f32 %v1654, 0.0
        %v1657 = vmul.f32 %v1638, %v1395
        %v1658 = vlaneseq
        %v1659 = vshrl.u32 %v1658, 7
        %v1660 = vsub.s32 7, %v1659
        %v1661 = vrot.slane %v1657, %v1660
        %1663 = vset.pattern.permute.xlu0 7
        %1664 = vperm.xlu0 %1663, %v1489
        %v1665 = vpop.permute.xlu0 %1664
        %1668 = vset.pattern.permute.xlu0 7
        %1669 = vperm.xlu0 %1668, %v1490
        %v1670 = vpop.permute.xlu0 %1669
        %v1672 = vmul.f32 %v1661, %v1665
        %v1673 = vmul.f32 %v1661, %v1670
        %v1674 = vadd.f32 %v1655, %v1672
        %v1675 = vadd.f32 %v1656, %v1673
        %1677 = vset.pattern.permute.xlu0 7
        %1678 = vperm.xlu0 %1677, %v1524
        %v1679 = vpop.permute.xlu0 %1678
        %1682 = vset.pattern.permute.xlu0 7
        %1683 = vperm.xlu0 %1682, %v1525
        %v1684 = vpop.permute.xlu0 %1683
        %v1686 = vmul.f32 %v1679, %v1674
        %v1687 = vmul.f32 %v1684, %v1675
        %v1688 = vsel %vm411, %v1686, 0.0
        %v1689 = vsel %vm411, %v1687, 0.0
        %v1690 = vadd.f32 %v1688, %v1689
        %v1691 = vrot.slane %v1690, 4
        %v1692 = vadd.f32 %v1690, %v1691
        %v1693 = vrot.slane %v1692, 2
        %v1694 = vadd.f32 %v1692, %v1693
        %v1695 = vrot.slane %v1694, 1
        %v1696 = vadd.f32 %v1694, %v1695
        %v1697 = vcombine.high %v1395, %v1395
        %v1699 = vunpack.c.l.s4 1966171168
        %v1700 = vunpack.c.0.s8 %v1699
        %v1701 = vlaneseq
        %v1702 = vshrl.u32 %v1701, 7
        %v1703 = vsub.s32 %v1700, %v1702
        %v1704 = vrot.slane %v1395, %v1703
        %v1706 = vunpack.c.l.s4 1966171168
        %v1707 = vunpack.c.0.s8 %v1706
        %v1708 = vlaneseq
        %v1709 = vshrl.u32 %v1708, 7
        %v1710 = vsub.s32 %v1707, %v1709
        %v1711 = vrot.slane %v1697, %v1710
        %v1712 = vcombine.high %v1711, %v1711
        %v1714 = vunpack.c.l.s4 1966171168
        %v1715 = vunpack.c.0.s8 %v1714
        %v1716 = vlaneseq
        %v1717 = vshrl.u32 %v1716, 7
        %v1718 = vsub.s32 %v1715, %v1717
        %v1719 = vrot.slane %v1704, %v1718
        %v1721 = vunpack.c.l.s4 1966171168
        %v1722 = vunpack.c.0.s8 %v1721
        %v1723 = vlaneseq
        %v1724 = vshrl.u32 %v1723, 7
        %v1725 = vsub.s32 %v1722, %v1724
        %v1726 = vrot.slane %v1712, %v1725
        %v1727 = vcombine.high %v1726, %v1726
        %v1729 = vmul.f32 %v1355, %v1727
        %v1730 = vadd.f32 %v1696, %v1729
        %v1731 = vlaneseq
        %v1732 = vshrl.u32 %v1731, 7
        %v1733 = vsub.s32 0, %v1732
        %v1734 = vrot.slane %v1730, %v1733
        %v1735 = vsel %vm1315, %v1734, 0.0
        %v1736 = vlaneseq
        %v1737 = vshrl.u32 %v1736, 7
        %v1738 = vsub.s32 6, %v1737
        %v1739 = vrot.slane %v1638, %v1738
        %v1740 = vmul.f32 %v1739, %v1643
        %v1741 = vmul.f32 %v1739, %v1644
        %v1742 = vmul.f32 %v1740, 1.442695
        %v1743 = vpow.pop %v1742
        %v1744 = vmul.f32 %v1741, 1.442695
        %v1745 = vpow.pop %v1744
        %v1746 = vmul.f32 %v1743, %v1674
        %v1747 = vmul.f32 %v1745, %v1675
        %v1748 = vlaneseq
        %v1749 = vshrl.u32 %v1748, 7
        %v1750 = vsub.s32 6, %v1749
        %v1751 = vrot.slane %v1657, %v1750
        %1752 = vset.pattern.permute.xlu0 6
        %1753 = vperm.xlu0 %1752, %v1489
        %v1754 = vpop.permute.xlu0 %1753
        %1756 = vset.pattern.permute.xlu0 6
        %1757 = vperm.xlu0 %1756, %v1490
        %v1758 = vpop.permute.xlu0 %1757
        %v1760 = vmul.f32 %v1751, %v1754
        %v1761 = vmul.f32 %v1751, %v1758
        %v1762 = vadd.f32 %v1746, %v1760
        %v1763 = vadd.f32 %v1747, %v1761
        %1764 = vset.pattern.permute.xlu0 6
        %1765 = vperm.xlu0 %1764, %v1524
        %v1766 = vpop.permute.xlu0 %1765
        %1768 = vset.pattern.permute.xlu0 6
        %1769 = vperm.xlu0 %1768, %v1525
        %v1770 = vpop.permute.xlu0 %1769
        %v1772 = vmul.f32 %v1766, %v1762
        %v1773 = vmul.f32 %v1770, %v1763
        %v1774 = vsel %vm411, %v1772, 0.0
        %v1775 = vsel %vm411, %v1773, 0.0
        %v1776 = vadd.f32 %v1774, %v1775
        %v1777 = vrot.slane %v1776, 4
        %v1778 = vadd.f32 %v1776, %v1777
        %v1779 = vrot.slane %v1778, 2
        %v1780 = vadd.f32 %v1778, %v1779
        %v1781 = vrot.slane %v1780, 1
        %v1782 = vadd.f32 %v1780, %v1781
        %v1784 = vunpack.c.l.s4 1966171168
        %v1785 = vunpack.c.0.s8 %v1784
        %v1786 = vlaneseq
        %v1787 = vshrl.u32 %v1786, 7
        %v1788 = vsub.s32 %v1785, %v1787
        %v1789 = vrot.slane %v1711, %v1788
        %v1790 = vcombine.high %v1789, %v1789
        %v1792 = vmul.f32 %v1355, %v1790
        %v1793 = vadd.f32 %v1782, %v1792
        %v1794 = vlaneseq
        %v1795 = vshrl.u32 %v1794, 7
        %v1796 = vsub.s32 0, %v1795
        %v1797 = vrot.slane %v1793, %v1796
        %v1798 = vsel %vm1258, %v1797, %v1735
        %v1799 = vlaneseq
        %v1800 = vshrl.u32 %v1799, 7
        %v1801 = vsub.s32 5, %v1800
        %v1802 = vrot.slane %v1638, %v1801
        %v1803 = vmul.f32 %v1802, %v1643
        %v1804 = vmul.f32 %v1802, %v1644
        %v1805 = vmul.f32 %v1803, 1.442695
        %v1806 = vpow.pop %v1805
        %v1807 = vmul.f32 %v1804, 1.442695
        %v1808 = vpow.pop %v1807
        %v1809 = vmul.f32 %v1806, %v1762
        %v1810 = vmul.f32 %v1808, %v1763
        %v1811 = vlaneseq
        %v1812 = vshrl.u32 %v1811, 7
        %v1813 = vsub.s32 5, %v1812
        %v1814 = vrot.slane %v1657, %v1813
        %1815 = vset.pattern.permute.xlu0 5
        %1816 = vperm.xlu0 %1815, %v1489
        %v1817 = vpop.permute.xlu0 %1816
        %1819 = vset.pattern.permute.xlu0 5
        %1820 = vperm.xlu0 %1819, %v1490
        %v1821 = vpop.permute.xlu0 %1820
        %v1823 = vmul.f32 %v1814, %v1817
        %v1824 = vmul.f32 %v1814, %v1821
        %v1825 = vadd.f32 %v1809, %v1823
        %v1826 = vadd.f32 %v1810, %v1824
        %1827 = vset.pattern.permute.xlu0 5
        %1828 = vperm.xlu0 %1827, %v1524
        %v1829 = vpop.permute.xlu0 %1828
        %1831 = vset.pattern.permute.xlu0 5
        %1832 = vperm.xlu0 %1831, %v1525
        %v1833 = vpop.permute.xlu0 %1832
        %v1835 = vmul.f32 %v1829, %v1825
        %v1836 = vmul.f32 %v1833, %v1826
        %v1837 = vsel %vm411, %v1835, 0.0
        %v1838 = vsel %vm411, %v1836, 0.0
        %v1839 = vadd.f32 %v1837, %v1838
        %v1840 = vrot.slane %v1839, 4
        %v1841 = vadd.f32 %v1839, %v1840
        %v1842 = vrot.slane %v1841, 2
        %v1843 = vadd.f32 %v1841, %v1842
        %v1844 = vrot.slane %v1843, 1
        %v1845 = vadd.f32 %v1843, %v1844
        %v1847 = vmul.f32 %v1355, %v1726
        %v1848 = vadd.f32 %v1845, %v1847
        %v1849 = vlaneseq
        %v1850 = vshrl.u32 %v1849, 7
        %v1851 = vsub.s32 0, %v1850
        %v1852 = vrot.slane %v1848, %v1851
        %v1853 = vsel %vm1201, %v1852, %v1798
        %v1854 = vlaneseq
        %v1855 = vshrl.u32 %v1854, 7
        %v1856 = vsub.s32 4, %v1855
        %v1857 = vrot.slane %v1638, %v1856
        %v1858 = vmul.f32 %v1857, %v1643
        %v1859 = vmul.f32 %v1857, %v1644
        %v1860 = vmul.f32 %v1858, 1.442695
        %v1861 = vpow.pop %v1860
        %v1862 = vmul.f32 %v1859, 1.442695
        %v1863 = vpow.pop %v1862
        %v1864 = vmul.f32 %v1861, %v1825
        %v1865 = vmul.f32 %v1863, %v1826
        %v1866 = vlaneseq
        %v1867 = vshrl.u32 %v1866, 7
        %v1868 = vsub.s32 4, %v1867
        %v1869 = vrot.slane %v1657, %v1868
        %1870 = vset.pattern.permute.xlu0 4
        %1871 = vperm.xlu0 %1870, %v1489
        %v1872 = vpop.permute.xlu0 %1871
        %1874 = vset.pattern.permute.xlu0 4
        %1875 = vperm.xlu0 %1874, %v1490
        %v1876 = vpop.permute.xlu0 %1875
        %v1878 = vmul.f32 %v1869, %v1872
        %v1879 = vmul.f32 %v1869, %v1876
        %v1880 = vadd.f32 %v1864, %v1878
        %v1881 = vadd.f32 %v1865, %v1879
        %1882 = vset.pattern.permute.xlu0 4
        %1883 = vperm.xlu0 %1882, %v1524
        %v1884 = vpop.permute.xlu0 %1883
        %1886 = vset.pattern.permute.xlu0 4
        %1887 = vperm.xlu0 %1886, %v1525
        %v1888 = vpop.permute.xlu0 %1887
        %v1890 = vmul.f32 %v1884, %v1880
        %v1891 = vmul.f32 %v1888, %v1881
        %v1892 = vsel %vm411, %v1890, 0.0
        %v1893 = vsel %vm411, %v1891, 0.0
        %v1894 = vadd.f32 %v1892, %v1893
        %v1895 = vrot.slane %v1894, 4
        %v1896 = vadd.f32 %v1894, %v1895
        %v1897 = vrot.slane %v1896, 2
        %v1898 = vadd.f32 %v1896, %v1897
        %v1899 = vrot.slane %v1898, 1
        %v1900 = vadd.f32 %v1898, %v1899
        %v1902 = vmul.f32 %v1355, %v1789
        %v1903 = vadd.f32 %v1900, %v1902
        %v1904 = vlaneseq
        %v1905 = vshrl.u32 %v1904, 7
        %v1906 = vsub.s32 0, %v1905
        %v1907 = vrot.slane %v1903, %v1906
        %v1908 = vsel %vm1137, %v1907, %v1853
        %v1909 = vlaneseq
        %v1910 = vshrl.u32 %v1909, 7
        %v1911 = vsub.s32 3, %v1910
        %v1912 = vrot.slane %v1638, %v1911
        %v1913 = vmul.f32 %v1912, %v1643
        %v1914 = vmul.f32 %v1912, %v1644
        %v1915 = vmul.f32 %v1913, 1.442695
        %v1916 = vpow.pop %v1915
        %v1917 = vmul.f32 %v1914, 1.442695
        %v1918 = vpow.pop %v1917
        %v1919 = vmul.f32 %v1916, %v1880
        %v1920 = vmul.f32 %v1918, %v1881
        %v1921 = vlaneseq
        %v1922 = vshrl.u32 %v1921, 7
        %v1923 = vsub.s32 3, %v1922
        %v1924 = vrot.slane %v1657, %v1923
        %1925 = vset.pattern.permute.xlu0 3
        %1926 = vperm.xlu0 %1925, %v1489
        %v1927 = vpop.permute.xlu0 %1926
        %1929 = vset.pattern.permute.xlu0 3
        %1930 = vperm.xlu0 %1929, %v1490
        %v1931 = vpop.permute.xlu0 %1930
        %v1933 = vmul.f32 %v1924, %v1927
        %v1934 = vmul.f32 %v1924, %v1931
        %v1935 = vadd.f32 %v1919, %v1933
        %v1936 = vadd.f32 %v1920, %v1934
        %1937 = vset.pattern.permute.xlu0 3
        %1938 = vperm.xlu0 %1937, %v1524
        %v1939 = vpop.permute.xlu0 %1938
        %1941 = vset.pattern.permute.xlu0 3
        %1942 = vperm.xlu0 %1941, %v1525
        %v1943 = vpop.permute.xlu0 %1942
        %v1945 = vmul.f32 %v1939, %v1935
        %v1946 = vmul.f32 %v1943, %v1936
        %v1947 = vsel %vm411, %v1945, 0.0
        %v1948 = vsel %vm411, %v1946, 0.0
        %v1949 = vadd.f32 %v1947, %v1948
        %v1950 = vrot.slane %v1949, 4
        %v1951 = vadd.f32 %v1949, %v1950
        %v1952 = vrot.slane %v1951, 2
        %v1953 = vadd.f32 %v1951, %v1952
        %v1954 = vrot.slane %v1953, 1
        %v1955 = vadd.f32 %v1953, %v1954
        %v1956 = vcombine.high %v1704, %v1704
        %v1958 = vunpack.c.l.s4 1966171168
        %v1959 = vunpack.c.0.s8 %v1958
        %v1960 = vlaneseq
        %v1961 = vshrl.u32 %v1960, 7
        %v1962 = vsub.s32 %v1959, %v1961
        %v1963 = vrot.slane %v1956, %v1962
        %v1964 = vcombine.high %v1963, %v1963
        %v1966 = vmul.f32 %v1355, %v1964
        %v1967 = vadd.f32 %v1955, %v1966
        %v1968 = vlaneseq
        %v1969 = vshrl.u32 %v1968, 7
        %v1970 = vsub.s32 0, %v1969
        %v1971 = vrot.slane %v1967, %v1970
        %v1972 = vsel %vm1066, %v1971, %v1908
        %v1973 = vlaneseq
        %v1974 = vshrl.u32 %v1973, 7
        %v1975 = vsub.s32 2, %v1974
        %v1976 = vrot.slane %v1638, %v1975
        %v1977 = vmul.f32 %v1976, %v1643
        %v1978 = vmul.f32 %v1976, %v1644
        %v1979 = vmul.f32 %v1977, 1.442695
        %v1980 = vpow.pop %v1979
        %v1981 = vmul.f32 %v1978, 1.442695
        %v1982 = vpow.pop %v1981
        %v1983 = vmul.f32 %v1980, %v1935
        %v1984 = vmul.f32 %v1982, %v1936
        %v1985 = vlaneseq
        %v1986 = vshrl.u32 %v1985, 7
        %v1987 = vsub.s32 2, %v1986
        %v1988 = vrot.slane %v1657, %v1987
        %1989 = vset.pattern.permute.xlu0 2
        %1990 = vperm.xlu0 %1989, %v1489
        %v1991 = vpop.permute.xlu0 %1990
        %1993 = vset.pattern.permute.xlu0 2
        %1994 = vperm.xlu0 %1993, %v1490
        %v1995 = vpop.permute.xlu0 %1994
        %v1997 = vmul.f32 %v1988, %v1991
        %v1998 = vmul.f32 %v1988, %v1995
        %v1999 = vadd.f32 %v1983, %v1997
        %v2000 = vadd.f32 %v1984, %v1998
        %2001 = vset.pattern.permute.xlu0 2
        %2002 = vperm.xlu0 %2001, %v1524
        %v2003 = vpop.permute.xlu0 %2002
        %2005 = vset.pattern.permute.xlu0 2
        %2006 = vperm.xlu0 %2005, %v1525
        %v2007 = vpop.permute.xlu0 %2006
        %v2009 = vmul.f32 %v2003, %v1999
        %v2010 = vmul.f32 %v2007, %v2000
        %v2011 = vsel %vm411, %v2009, 0.0
        %v2012 = vsel %vm411, %v2010, 0.0
        %v2013 = vadd.f32 %v2011, %v2012
        %v2014 = vrot.slane %v2013, 4
        %v2015 = vadd.f32 %v2013, %v2014
        %v2016 = vrot.slane %v2015, 2
        %v2017 = vadd.f32 %v2015, %v2016
        %v2018 = vrot.slane %v2017, 1
        %v2019 = vadd.f32 %v2017, %v2018
        %v2020 = vcombine.high %v1719, %v1719
        %v2022 = vmul.f32 %v1355, %v2020
        %v2023 = vadd.f32 %v2019, %v2022
        %v2024 = vlaneseq
        %v2025 = vshrl.u32 %v2024, 7
        %v2026 = vsub.s32 0, %v2025
        %v2027 = vrot.slane %v2023, %v2026
        %v2028 = vsel %vm1009, %v2027, %v1972
        %v2029 = vlaneseq
        %v2030 = vshrl.u32 %v2029, 7
        %v2031 = vsub.s32 1, %v2030
        %v2032 = vrot.slane %v1638, %v2031
        %v2033 = vmul.f32 %v2032, %v1643
        %v2034 = vmul.f32 %v2032, %v1644
        %v2035 = vmul.f32 %v2033, 1.442695
        %v2036 = vpow.pop %v2035
        %v2037 = vmul.f32 %v2034, 1.442695
        %v2038 = vpow.pop %v2037
        %v2039 = vmul.f32 %v2036, %v1999
        %v2040 = vmul.f32 %v2038, %v2000
        %v2041 = vlaneseq
        %v2042 = vshrl.u32 %v2041, 7
        %v2043 = vsub.s32 1, %v2042
        %v2044 = vrot.slane %v1657, %v2043
        %2045 = vset.pattern.permute.xlu0 1
        %2046 = vperm.xlu0 %2045, %v1489
        %v2047 = vpop.permute.xlu0 %2046
        %2049 = vset.pattern.permute.xlu0 1
        %2050 = vperm.xlu0 %2049, %v1490
        %v2051 = vpop.permute.xlu0 %2050
        %v2053 = vmul.f32 %v2044, %v2047
        %v2054 = vmul.f32 %v2044, %v2051
        %v2055 = vadd.f32 %v2039, %v2053
        %v2056 = vadd.f32 %v2040, %v2054
        %2057 = vset.pattern.permute.xlu0 1
        %2058 = vperm.xlu0 %2057, %v1524
        %v2059 = vpop.permute.xlu0 %2058
        %2061 = vset.pattern.permute.xlu0 1
        %2062 = vperm.xlu0 %2061, %v1525
        %v2063 = vpop.permute.xlu0 %2062
        %v2065 = vmul.f32 %v2059, %v2055
        %v2066 = vmul.f32 %v2063, %v2056
        %v2067 = vsel %vm411, %v2065, 0.0
        %v2068 = vsel %vm411, %v2066, 0.0
        %v2069 = vadd.f32 %v2067, %v2068
        %v2070 = vrot.slane %v2069, 4
        %v2071 = vadd.f32 %v2069, %v2070
        %v2072 = vrot.slane %v2071, 2
        %v2073 = vadd.f32 %v2071, %v2072
        %v2074 = vrot.slane %v2073, 1
        %v2075 = vadd.f32 %v2073, %v2074
        %v2077 = vmul.f32 %v1355, %v1963
        %v2078 = vadd.f32 %v2075, %v2077
        %v2079 = vlaneseq
        %v2080 = vshrl.u32 %v2079, 7
        %v2081 = vsub.s32 0, %v2080
        %v2082 = vrot.slane %v2078, %v2081
        %v2083 = vsel %vm952, %v2082, %v2028
        %v2084 = vlaneseq
        %v2085 = vshrl.u32 %v2084, 7
        %v2086 = vsub.s32 0, %v2085
        %v2087 = vrot.slane %v1638, %v2086
        %v2088 = vmul.f32 %v2087, %v1643
        %v2089 = vmul.f32 %v2087, %v1644
        %v2090 = vmul.f32 %v2088, 1.442695
        %v2091 = vpow.pop %v2090
        %v2092 = vmul.f32 %v2089, 1.442695
        %v2093 = vpow.pop %v2092
        %v2094 = vmul.f32 %v2091, %v2055
        %v2095 = vmul.f32 %v2093, %v2056
        %v2096 = vlaneseq
        %v2097 = vshrl.u32 %v2096, 7
        %v2098 = vsub.s32 0, %v2097
        %v2099 = vrot.slane %v1657, %v2098
        %2100 = vset.pattern.permute.xlu0 0
        %2101 = vperm.xlu0 %2100, %v1489
        %v2102 = vpop.permute.xlu0 %2101
        %2104 = vset.pattern.permute.xlu0 0
        %2105 = vperm.xlu0 %2104, %v1490
        %v2106 = vpop.permute.xlu0 %2105
        %v2108 = vmul.f32 %v2099, %v2102
        %v2109 = vmul.f32 %v2099, %v2106
        %v2110 = vadd.f32 %v2094, %v2108
        %v2111 = vadd.f32 %v2095, %v2109
        %2112 = vset.pattern.permute.xlu0 0
        %2113 = vperm.xlu0 %2112, %v1524
        %v2114 = vpop.permute.xlu0 %2113
        %2116 = vset.pattern.permute.xlu0 0
        %2117 = vperm.xlu0 %2116, %v1525
        %v2118 = vpop.permute.xlu0 %2117
        %v2120 = vmul.f32 %v2114, %v2110
        %v2121 = vmul.f32 %v2118, %v2111
        %v2122 = vsel %vm411, %v2120, 0.0
        %v2123 = vsel %vm411, %v2121, 0.0
        %v2124 = vadd.f32 %v2122, %v2123
        %v2125 = vrot.slane %v2124, 4
        %v2126 = vadd.f32 %v2124, %v2125
        %v2127 = vrot.slane %v2126, 2
        %v2128 = vadd.f32 %v2126, %v2127
        %v2129 = vrot.slane %v2128, 1
        %v2130 = vadd.f32 %v2128, %v2129
        %v2131 = vmul.f32 %v1355, %v1395
        %v2132 = vadd.f32 %v2130, %v2131
        %v2133 = vlaneseq
        %v2134 = vshrl.u32 %v2133, 7
        %v2135 = vsub.s32 0, %v2134
        %v2136 = vrot.slane %v2132, %v2135
        %v2137 = vsel %vm874, %v2136, %v2083
        %v2138 = vmul.f32 %v2137, %v1330
        %v2139 = vadd.f32 %v1333, %v2138
        %v2140 = vld [vmem:[%s10] sm:$0xff]
        %v2141 = vld [vmem:[%s10 + $0x8] sm:$0xff]
        %v2142 = vld [vmem:[%s10 + $0x10] sm:$0xff]
        %v2143 = vld [vmem:[%s10 + $0x18] sm:$0xff]
        %v2144 = vld [vmem:[%s10 + $0x20] sm:$0xff]
        %v2145 = vld [vmem:[%s10 + $0x28] sm:$0xff]
        %v2146 = vld [vmem:[%s10 + $0x30] sm:$0xff]
        %v2147 = vld [vmem:[%s10 + $0x38] sm:$0xff]
        %v2149 = vsel %vm411, %v2139, 0
        %2151 = vmatprep.subr.mxu0 0.0
        %2152 = vmatpush1.msra.mxu0 %v2140
        %2153 = vmatprep.subr.mxu0 0.0
        %2154 = vmatpush1.msra.mxu0 %v2141
        %2155 = vmatprep.subr.mxu0 0.0
        %2156 = vmatpush1.msra.mxu0 %v2142
        %2157 = vmatprep.subr.mxu0 0.0
        %2158 = vmatpush1.msra.mxu0 %v2143
        %2159 = vmatprep.subr.mxu0 0.0
        %2160 = vmatpush1.msra.mxu0 %v2144
        %2161 = vmatprep.subr.mxu0 0.0
        %2162 = vmatpush1.msra.mxu0 %v2145
        %2163 = vmatprep.subr.mxu0 0.0
        %2164 = vmatpush1.msra.mxu0 %v2146
        %2165 = vmatprep.subr.mxu0 0.0
        %2166 = vmatpush1.msra.mxu0 %v2147
        %2167 = vmatprep.subr.mxu0 0.0
        %2168 = vmatpush1.msra.mxu0 0.0
        %2169 = vmatprep.subr.mxu0 0.0
        %2170 = vmatpush1.msra.mxu0 0.0
        %2171 = vmatprep.subr.mxu0 0.0
        %2172 = vmatpush1.msra.mxu0 0.0
        %2173 = vmatprep.subr.mxu0 0.0
        %2174 = vmatpush1.msra.mxu0 0.0
        %2175 = vmatprep.subr.mxu0 0.0
        %2176 = vmatpush1.msra.mxu0 0.0
        %2177 = vmatprep.subr.mxu0 0.0
        %2178 = vmatpush1.msra.mxu0 0.0
        %2179 = vmatprep.subr.mxu0 0.0
        %2180 = vmatpush1.msra.mxu0 0.0
        %2181 = vmatprep.subr.mxu0 0.0
        %2182 = vmatpush1.msra.mxu0 0.0
        %2183 = vmatprep.subr.mxu0 0.0
        %2184 = vmatpush1.msra.mxu0 0.0
        %2185 = vmatprep.subr.mxu0 0.0
        %2186 = vmatpush1.msra.mxu0 0.0
        %2187 = vmatprep.subr.mxu0 0.0
        %2188 = vmatpush1.msra.mxu0 0.0
        %2189 = vmatprep.subr.mxu0 0.0
        %2190 = vmatpush1.msra.mxu0 0.0
        %2191 = vmatprep.subr.mxu0 0.0
        %2192 = vmatpush1.msra.mxu0 0.0
        %2193 = vmatprep.subr.mxu0 0.0
        %2194 = vmatpush1.msra.mxu0 0.0
        %2195 = vmatprep.subr.mxu0 0.0
        %2196 = vmatpush1.msra.mxu0 0.0
        %2197 = vmatprep.subr.mxu0 0.0
        %2198 = vmatpush1.msra.mxu0 0.0
        %2199 = vmatprep.subr.mxu0 0.0
        %2200 = vmatpush1.msra.mxu0 0.0
        %2201 = vmatprep.subr.mxu0 0.0
        %2202 = vmatpush1.msra.mxu0 0.0
        %2203 = vmatprep.subr.mxu0 0.0
        %2204 = vmatpush1.msra.mxu0 0.0
        %2205 = vmatprep.subr.mxu0 0.0
        %2206 = vmatpush1.msra.mxu0 0.0
        %2207 = vmatprep.subr.mxu0 0.0
        %2208 = vmatpush1.msra.mxu0 0.0
        %2209 = vmatprep.subr.mxu0 0.0
        %2210 = vmatpush1.msra.mxu0 0.0
        %2211 = vmatprep.subr.mxu0 0.0
        %2212 = vmatpush1.msra.mxu0 0.0
        %2213 = vmatprep.subr.mxu0 0.0
        %2214 = vmatpush1.msra.mxu0 0.0
        %2215 = vmatprep.mubr.f32.mxu0 0.0
        %2216 = vmatmul.mubr.f32.gmra.mrb[0].mxu0 %v2149
        %v2217 = vpop.f32.mrb[0].mxu0
        %v2218 = vadd.f32 %v416, %v2217
        %v2219 = vpop.f32.mrb[0].mxu0
        %2220 = vdwg.mxu0
        %s2221 = scalar_lea.vmem %s1, 1
        %v2222 = vld [vmem:[%s2221] sm:$0x1]
        %v2223 = vmul.f32 %v2218, %v2218
        %v2224 = vsel %vm419, %v2223, 0.0
        %2225 = vadd.xlane.f32.xlu0 %v2224
        %v2226 = vpop.xlane.xlu0 %2225
        %v2227 = vmul.f32 %v2226, %v423
        %v2228 = vadd.f32 %v2227, 1e-05
        %v2229 = vrsqrt.pop %v2228
        %v2230 = vmul.f32 %v2218, %v2229
        %v2232 = vlaneseq
        %v2233 = vshrl.u32 %v2232, 7
        %v2234 = vsub.s32 0, %v2233
        %v2235 = vrot.slane %v2222, %v2234
        %v2237 = vmul.f32 %v2230, %v2235
        %s2238 = scalar_lea.vmem %s2, 32
        %v2239 = vld [vmem:[%s2238] sm:$0xff]
        %v2240 = vld [vmem:[%s2238 + $0x8] sm:$0xff]
        %v2241 = vld [vmem:[%s2238 + $0x10] sm:$0xff]
        %v2242 = vld [vmem:[%s2238 + $0x18] sm:$0xff]
        %v2244 = vsel %vm419, %v2237, 0
        %2246 = vmatprep.subr.mxu0 0.0
        %2247 = vmatpush1.msra.mxu0 %v2239
        %2248 = vmatprep.subr.mxu0 0.0
        %2249 = vmatpush1.msra.mxu0 %v2240
        %2250 = vmatprep.subr.mxu0 0.0
        %2251 = vmatpush1.msra.mxu0 %v2241
        %2252 = vmatprep.subr.mxu0 0.0
        %2253 = vmatpush1.msra.mxu0 %v2242
        %2254 = vmatprep.subr.mxu0 0.0
        %2255 = vmatpush1.msra.mxu0 0.0
        %2256 = vmatprep.subr.mxu0 0.0
        %2257 = vmatpush1.msra.mxu0 0.0
        %2258 = vmatprep.subr.mxu0 0.0
        %2259 = vmatpush1.msra.mxu0 0.0
        %2260 = vmatprep.subr.mxu0 0.0
        %2261 = vmatpush1.msra.mxu0 0.0
        %2262 = vmatprep.subr.mxu0 0.0
        %2263 = vmatpush1.msra.mxu0 0.0
        %2264 = vmatprep.subr.mxu0 0.0
        %2265 = vmatpush1.msra.mxu0 0.0
        %2266 = vmatprep.subr.mxu0 0.0
        %2267 = vmatpush1.msra.mxu0 0.0
        %2268 = vmatprep.subr.mxu0 0.0
        %2269 = vmatpush1.msra.mxu0 0.0
        %2270 = vmatprep.subr.mxu0 0.0
        %2271 = vmatpush1.msra.mxu0 0.0
        %2272 = vmatprep.subr.mxu0 0.0
        %2273 = vmatpush1.msra.mxu0 0.0
        %2274 = vmatprep.subr.mxu0 0.0
        %2275 = vmatpush1.msra.mxu0 0.0
        %2276 = vmatprep.subr.mxu0 0.0
        %2277 = vmatpush1.msra.mxu0 0.0
        %2278 = vmatprep.subr.mxu0 0.0
        %2279 = vmatpush1.msra.mxu0 0.0
        %2280 = vmatprep.subr.mxu0 0.0
        %2281 = vmatpush1.msra.mxu0 0.0
        %2282 = vmatprep.subr.mxu0 0.0
        %2283 = vmatpush1.msra.mxu0 0.0
        %2284 = vmatprep.subr.mxu0 0.0
        %2285 = vmatpush1.msra.mxu0 0.0
        %2286 = vmatprep.subr.mxu0 0.0
        %2287 = vmatpush1.msra.mxu0 0.0
        %2288 = vmatprep.subr.mxu0 0.0
        %2289 = vmatpush1.msra.mxu0 0.0
        %2290 = vmatprep.subr.mxu0 0.0
        %2291 = vmatpush1.msra.mxu0 0.0
        %2292 = vmatprep.subr.mxu0 0.0
        %2293 = vmatpush1.msra.mxu0 0.0
        %2294 = vmatprep.subr.mxu0 0.0
        %2295 = vmatpush1.msra.mxu0 0.0
        %2296 = vmatprep.subr.mxu0 0.0
        %2297 = vmatpush1.msra.mxu0 0.0
        %2298 = vmatprep.subr.mxu0 0.0
        %2299 = vmatpush1.msra.mxu0 0.0
        %2300 = vmatprep.subr.mxu0 0.0
        %2301 = vmatpush1.msra.mxu0 0.0
        %2302 = vmatprep.subr.mxu0 0.0
        %2303 = vmatpush1.msra.mxu0 0.0
        %2304 = vmatprep.subr.mxu0 0.0
        %2305 = vmatpush1.msra.mxu0 0.0
        %2306 = vmatprep.subr.mxu0 0.0
        %2307 = vmatpush1.msra.mxu0 0.0
        %2308 = vmatprep.subr.mxu0 0.0
        %2309 = vmatpush1.msra.mxu0 0.0
        %2310 = vmatprep.mubr.f32.mxu0 0.0
        %2311 = vmatmul.mubr.f32.gmra.mrb[0].mxu0 %v2244
        %v2312 = vpop.f32.mrb[0].mxu0
        %v2313 = vadd.f32 0.0, %v2312
        %v2314 = vpop.f32.mrb[0].mxu0
        %2315 = vdwg.mxu0
        %2316 = vst.msk [vmem:[#allocation2 + $0x3] sm:$0xff] %vm411, %v2313
        %s2317 = scalar_lea.vmem %s3, 8
        %v2318 = vld [vmem:[%s2317] sm:$0xf]
        %s2319 = scalar_lea.vmem %s4, 2
        %v2320 = vld [vmem:[%s2319] sm:$0x1]
        %s2321 = scalar_lea.vmem %s5, 128
        %v2322 = vld [vmem:[%s2321] sm:$0xff]
        %v2323 = vld [vmem:[%s2321 + $0x8] sm:$0xff]
        %v2324 = vld [vmem:[%s2321 + $0x10] sm:$0xff]
        %v2325 = vld [vmem:[%s2321 + $0x18] sm:$0xff]
        %v2326 = vld [vmem:[%s2321 + $0x20] sm:$0xff]
        %v2327 = vld [vmem:[%s2321 + $0x28] sm:$0xff]
        %v2328 = vld [vmem:[%s2321 + $0x30] sm:$0xff]
        %v2329 = vld [vmem:[%s2321 + $0x38] sm:$0xff]
        %s2330 = scalar_lea.vmem %s6, 4
        %v2331 = vld [vmem:[%s2330] sm:$0x3]
        %s2332 = scalar_lea.vmem %s7, 2
        %v2333 = vld [vmem:[%s2332] sm:$0x1]
        %s2334 = scalar_lea.vmem %s8, 32
        %v2335 = vld [vmem:[%s2334] sm:$0xff]
        %v2336 = vld [vmem:[%s2334 + $0x8] sm:$0xff]
        %s2337 = scalar_lea.vmem %s9, 2
        %v2338 = vld [vmem:[%s2337] sm:$0x1]
        %v2339 = vld [vmem:[#allocation2] sm:$0xff]
        %v2340 = vlaneseq
        %v2341 = vshrl.u32 %v2340, 7
        %v2342 = vsub.s32 0, %v2341
        %v2343 = vrot.slane %v2318, %v2342
        %v2344 = vmul.f32 %v2339, %v2343
        %v2346 = vlaneseq
        %v2347 = vshrl.u32 %v2346, 7
        %v2348 = vsub.s32 0, %v2347
        %v2349 = vrot.slane %v2320, %v2348
        %v2351 = vadd.f32 %v2349, %v2344
        %v2352 = vld [vmem:[#allocation2 + $0x1] sm:$0xff]
        %v2353 = vlaneseq
        %v2354 = vshrl.u32 %v2353, 7
        %v2355 = vsub.s32 1, %v2354
        %v2356 = vrot.slane %v2318, %v2355
        %v2357 = vmul.f32 %v2352, %v2356
        %v2358 = vadd.f32 %v2351, %v2357
        %v2359 = vld [vmem:[#allocation2 + $0x2] sm:$0xff]
        %v2360 = vlaneseq
        %v2361 = vshrl.u32 %v2360, 7
        %v2362 = vsub.s32 2, %v2361
        %v2363 = vrot.slane %v2318, %v2362
        %v2364 = vmul.f32 %v2359, %v2363
        %v2365 = vadd.f32 %v2358, %v2364
        %v2366 = vld [vmem:[#allocation2 + $0x3] sm:$0xff]
        %v2367 = vlaneseq
        %v2368 = vshrl.u32 %v2367, 7
        %v2369 = vsub.s32 3, %v2368
        %v2370 = vrot.slane %v2318, %v2369
        %v2371 = vmul.f32 %v2366, %v2370
        %v2372 = vadd.f32 %v2365, %v2371
        %v2373 = vxor.u32 %v2372, 2147483648
        %v2374 = vmul.f32 %v2373, 1.442695
        %v2375 = vpow.pop %v2374
        %v2376 = vadd.f32 %v2375, 1.0
        %v2377 = vrcp.pop %v2376
        %v2378 = vmul.f32 1.0, %v2377
        %v2379 = vmul.f32 %v2372, %v2378
        %v2381 = vsel %vm411, %v2379, 0
        %2383 = vmatprep.subr.mxu0 0.0
        %2384 = vmatpush1.msra.mxu0 %v2322
        %2385 = vmatprep.subr.mxu0 0.0
        %2386 = vmatpush1.msra.mxu0 %v2323
        %2387 = vmatprep.subr.mxu0 0.0
        %2388 = vmatpush1.msra.mxu0 %v2324
        %2389 = vmatprep.subr.mxu0 0.0
        %2390 = vmatpush1.msra.mxu0 %v2325
        %2391 = vmatprep.subr.mxu0 0.0
        %2392 = vmatpush1.msra.mxu0 %v2326
        %2393 = vmatprep.subr.mxu0 0.0
        %2394 = vmatpush1.msra.mxu0 %v2327
        %2395 = vmatprep.subr.mxu0 0.0
        %2396 = vmatpush1.msra.mxu0 %v2328
        %2397 = vmatprep.subr.mxu0 0.0
        %2398 = vmatpush1.msra.mxu0 %v2329
        %2399 = vmatprep.subr.mxu0 0.0
        %2400 = vmatpush1.msra.mxu0 0.0
        %2401 = vmatprep.subr.mxu0 0.0
        %2402 = vmatpush1.msra.mxu0 0.0
        %2403 = vmatprep.subr.mxu0 0.0
        %2404 = vmatpush1.msra.mxu0 0.0
        %2405 = vmatprep.subr.mxu0 0.0
        %2406 = vmatpush1.msra.mxu0 0.0
        %2407 = vmatprep.subr.mxu0 0.0
        %2408 = vmatpush1.msra.mxu0 0.0
        %2409 = vmatprep.subr.mxu0 0.0
        %2410 = vmatpush1.msra.mxu0 0.0
        %2411 = vmatprep.subr.mxu0 0.0
        %2412 = vmatpush1.msra.mxu0 0.0
        %2413 = vmatprep.subr.mxu0 0.0
        %2414 = vmatpush1.msra.mxu0 0.0
        %2415 = vmatprep.subr.mxu0 0.0
        %2416 = vmatpush1.msra.mxu0 0.0
        %2417 = vmatprep.subr.mxu0 0.0
        %2418 = vmatpush1.msra.mxu0 0.0
        %2419 = vmatprep.subr.mxu0 0.0
        %2420 = vmatpush1.msra.mxu0 0.0
        %2421 = vmatprep.subr.mxu0 0.0
        %2422 = vmatpush1.msra.mxu0 0.0
        %2423 = vmatprep.subr.mxu0 0.0
        %2424 = vmatpush1.msra.mxu0 0.0
        %2425 = vmatprep.subr.mxu0 0.0
        %2426 = vmatpush1.msra.mxu0 0.0
        %2427 = vmatprep.subr.mxu0 0.0
        %2428 = vmatpush1.msra.mxu0 0.0
        %2429 = vmatprep.subr.mxu0 0.0
        %2430 = vmatpush1.msra.mxu0 0.0
        %2431 = vmatprep.subr.mxu0 0.0
        %2432 = vmatpush1.msra.mxu0 0.0
        %2433 = vmatprep.subr.mxu0 0.0
        %2434 = vmatpush1.msra.mxu0 0.0
        %2435 = vmatprep.subr.mxu0 0.0
        %2436 = vmatpush1.msra.mxu0 0.0
        %2437 = vmatprep.subr.mxu0 0.0
        %2438 = vmatpush1.msra.mxu0 0.0
        %2439 = vmatprep.subr.mxu0 0.0
        %2440 = vmatpush1.msra.mxu0 0.0
        %2441 = vmatprep.subr.mxu0 0.0
        %2442 = vmatpush1.msra.mxu0 0.0
        %2443 = vmatprep.subr.mxu0 0.0
        %2444 = vmatpush1.msra.mxu0 0.0
        %2445 = vmatprep.subr.mxu0 0.0
        %2446 = vmatpush1.msra.mxu0 0.0
        %2447 = vmatprep.mubr.f32.mxu0 0.0
        %2448 = vmatmul.mubr.f32.gmra.mrb[0].mxu0 %v2381
        %v2449 = vpop.f32.mrb[0].mxu0
        %v2450 = vadd.f32 0.0, %v2449
        %v2451 = vpop.f32.mrb[0].mxu0
        %2452 = vdwg.mxu0
        %2454 = vrot.lane.b32.xlu0 %v2450, 126
        %v2455 = vpop.permute.xlu0 %2454
        %2457 = vxpose.xlu0.b32.start [1/16] %v2455, 128
        %2458 = vxpose.xlu0.b32.cont [2/16] 0.0, 128
        %2459 = vxpose.xlu0.b32.cont [3/16] 0.0, 128
        %2460 = vxpose.xlu0.b32.cont [4/16] 0.0, 128
        %2461 = vxpose.xlu0.b32.cont [5/16] 0.0, 128
        %2462 = vxpose.xlu0.b32.cont [6/16] 0.0, 128
        %2463 = vxpose.xlu0.b32.cont [7/16] 0.0, 128
        %2464 = vxpose.xlu0.b32.cont [8/16] 0.0, 128
        %2465 = vxpose.xlu0.b32.cont [9/16] 0.0, 128
        %2466 = vxpose.xlu0.b32.cont [10/16] 0.0, 128
        %2467 = vxpose.xlu0.b32.cont [11/16] 0.0, 128
        %2468 = vxpose.xlu0.b32.cont [12/16] 0.0, 128
        %2469 = vxpose.xlu0.b32.cont [13/16] 0.0, 128
        %2470 = vxpose.xlu0.b32.cont [14/16] 0.0, 128
        %2471 = vxpose.xlu0.b32.cont [15/16] 0.0, 128
        %2472 = vxpose.xlu0.b32.end [16/16] 0.0, 128
        %v2473 = vpop.trf.xlu0
        %v2474 = vpop.trf.xlu0
        %v2475 = vpop.trf.xlu0
        %v2476 = vpop.trf.xlu0
        %v2477 = vpop.trf.xlu0
        %v2478 = vpop.trf.xlu0
        %v2479 = vpop.trf.xlu0
        %v2480 = vpop.trf.xlu0
        %v2481 = vpop.trf.xlu0
        %v2482 = vpop.trf.xlu0
        %v2483 = vpop.trf.xlu0
        %v2484 = vpop.trf.xlu0
        %v2485 = vpop.trf.xlu0
        %v2486 = vpop.trf.xlu0
        %v2487 = vpop.trf.xlu0
        %v2488 = vpop.trf.xlu0
        %2489 = vrot.lane.b32.xlu0 %v2450, 110
        %v2490 = vpop.permute.xlu0 %2489
        %2492 = vxpose.xlu0.b32.start [1/16] %v2490, 128
        %2493 = vxpose.xlu0.b32.cont [2/16] 0.0, 128
        %2494 = vxpose.xlu0.b32.cont [3/16] 0.0, 128
        %2495 = vxpose.xlu0.b32.cont [4/16] 0.0, 128
        %2496 = vxpose.xlu0.b32.cont [5/16] 0.0, 128
        %2497 = vxpose.xlu0.b32.cont [6/16] 0.0, 128
        %2498 = vxpose.xlu0.b32.cont [7/16] 0.0, 128
        %2499 = vxpose.xlu0.b32.cont [8/16] 0.0, 128
        %2500 = vxpose.xlu0.b32.cont [9/16] 0.0, 128
        %2501 = vxpose.xlu0.b32.cont [10/16] 0.0, 128
        %2502 = vxpose.xlu0.b32.cont [11/16] 0.0, 128
        %2503 = vxpose.xlu0.b32.cont [12/16] 0.0, 128
        %2504 = vxpose.xlu0.b32.cont [13/16] 0.0, 128
        %2505 = vxpose.xlu0.b32.cont [14/16] 0.0, 128
        %2506 = vxpose.xlu0.b32.cont [15/16] 0.0, 128
        %2507 = vxpose.xlu0.b32.end [16/16] 0.0, 128
        %v2508 = vpop.trf.xlu0
        %v2509 = vpop.trf.xlu0
        %v2510 = vpop.trf.xlu0
        %v2511 = vpop.trf.xlu0
        %v2512 = vpop.trf.xlu0
        %v2513 = vpop.trf.xlu0
        %v2514 = vpop.trf.xlu0
        %v2515 = vpop.trf.xlu0
        %v2516 = vpop.trf.xlu0
        %v2517 = vpop.trf.xlu0
        %v2518 = vpop.trf.xlu0
        %v2519 = vpop.trf.xlu0
        %v2520 = vpop.trf.xlu0
        %v2521 = vpop.trf.xlu0
        %v2522 = vpop.trf.xlu0
        %v2523 = vpop.trf.xlu0
        %v2525 = vlaneseq
        %v2526 = vshrl.u32 %v2525, 7
        %v2527 = vsub.s32 0, %v2526
        %v2528 = vrot.slane %v2333, %v2527
        %v2530 = vsel %vm719, %v2450, 0
        %v2533 = vsel %vm722, %v2331, 0
        %2535 = vmatprep.subr.mxu0 0.0
        %2536 = vmatpush1.msra.mxu0 %v2533
        %2537 = vmatprep.subr.mxu0 0.0
        %2538 = vmatpush1.msra.mxu0 0.0
        %2539 = vmatprep.subr.mxu0 0.0
        %2540 = vmatpush1.msra.mxu0 0.0
        %2541 = vmatprep.subr.mxu0 0.0
        %2542 = vmatpush1.msra.mxu0 0.0
        %2543 = vmatprep.subr.mxu0 0.0
        %2544 = vmatpush1.msra.mxu0 0.0
        %2545 = vmatprep.subr.mxu0 0.0
        %2546 = vmatpush1.msra.mxu0 0.0
        %2547 = vmatprep.subr.mxu0 0.0
        %2548 = vmatpush1.msra.mxu0 0.0
        %2549 = vmatprep.subr.mxu0 0.0
        %2550 = vmatpush1.msra.mxu0 0.0
        %2551 = vmatprep.subr.mxu0 0.0
        %2552 = vmatpush1.msra.mxu0 0.0
        %2553 = vmatprep.subr.mxu0 0.0
        %2554 = vmatpush1.msra.mxu0 0.0
        %2555 = vmatprep.subr.mxu0 0.0
        %2556 = vmatpush1.msra.mxu0 0.0
        %2557 = vmatprep.subr.mxu0 0.0
        %2558 = vmatpush1.msra.mxu0 0.0
        %2559 = vmatprep.subr.mxu0 0.0
        %2560 = vmatpush1.msra.mxu0 0.0
        %2561 = vmatprep.subr.mxu0 0.0
        %2562 = vmatpush1.msra.mxu0 0.0
        %2563 = vmatprep.subr.mxu0 0.0
        %2564 = vmatpush1.msra.mxu0 0.0
        %2565 = vmatprep.subr.mxu0 0.0
        %2566 = vmatpush1.msra.mxu0 0.0
        %2567 = vmatprep.subr.mxu0 0.0
        %2568 = vmatpush1.msra.mxu0 0.0
        %2569 = vmatprep.subr.mxu0 0.0
        %2570 = vmatpush1.msra.mxu0 0.0
        %2571 = vmatprep.subr.mxu0 0.0
        %2572 = vmatpush1.msra.mxu0 0.0
        %2573 = vmatprep.subr.mxu0 0.0
        %2574 = vmatpush1.msra.mxu0 0.0
        %2575 = vmatprep.subr.mxu0 0.0
        %2576 = vmatpush1.msra.mxu0 0.0
        %2577 = vmatprep.subr.mxu0 0.0
        %2578 = vmatpush1.msra.mxu0 0.0
        %2579 = vmatprep.subr.mxu0 0.0
        %2580 = vmatpush1.msra.mxu0 0.0
        %2581 = vmatprep.subr.mxu0 0.0
        %2582 = vmatpush1.msra.mxu0 0.0
        %2583 = vmatprep.subr.mxu0 0.0
        %2584 = vmatpush1.msra.mxu0 0.0
        %2585 = vmatprep.subr.mxu0 0.0
        %2586 = vmatpush1.msra.mxu0 0.0
        %2587 = vmatprep.subr.mxu0 0.0
        %2588 = vmatpush1.msra.mxu0 0.0
        %2589 = vmatprep.subr.mxu0 0.0
        %2590 = vmatpush1.msra.mxu0 0.0
        %2591 = vmatprep.subr.mxu0 0.0
        %2592 = vmatpush1.msra.mxu0 0.0
        %2593 = vmatprep.subr.mxu0 0.0
        %2594 = vmatpush1.msra.mxu0 0.0
        %2595 = vmatprep.subr.mxu0 0.0
        %2596 = vmatpush1.msra.mxu0 0.0
        %2597 = vmatprep.subr.mxu0 0.0
        %2598 = vmatpush1.msra.mxu0 0.0
        %2599 = vmatprep.mubr.f32.mxu0 0.0
        %2600 = vmatmul.mubr.f32.gmra.mrb[0].mxu0 %v2530
        %v2601 = vpop.f32.mrb[0].mxu0
        %v2602 = vadd.f32 %v2528, %v2601
        %v2603 = vpop.f32.mrb[0].mxu0
        %2604 = vdwg.mxu0
        %v2605 = vmax.f32 %v2602, 0.0
        %vm2606 = vcmp.ne.f32.partialorder %v2602, %v2602
        %v2607 = vadd.f32 %v2602, 0.0
        %v2608 = vand.u32 2147483647, %v2602
        %v2609 = vsub.f32 0.0, %v2608
        %v2610 = vmul.f32 %v2609, 1.442695
        %v2611 = vpow.pop %v2610
        %v2612 = vadd.f32 %v2611, 1.0
        %v2613 = vlog2.pop %v2612
        %v2614 = vmul.f32 %v2613, 0.6931472
        %v2615 = vmul.f32 -0.5, %v2611
        %v2616 = vadd.f32 %v2615, 1.0
        %v2617 = vmul.f32 %v2616, %v2611
        %v2618 = vand.u32 2147483647, %v2611
        %vm2619 = vcmp.lt.f32.partialorder %v2618, 0.0004427343
        %v2620 = vsel %vm2619, %v2617, %v2614
        %v2621 = vadd.f32 %v2605, %v2620
        %v2622 = vsel %vm2606, %v2607, %v2621
        %v2623 = vmul.f32 %v2335, 1.442695
        %v2624 = vpow.pop %v2623
        %v2625 = vmul.f32 %v2336, 1.442695
        %v2626 = vpow.pop %v2625
        %v2627 = vsub.f32 0.0, %v2624
        %v2628 = vsub.f32 0.0, %v2626
        %v2629 = vlaneseq
        %v2630 = vshrl.u32 %v2629, 7
        %v2631 = vsub.s32 0, %v2630
        %v2632 = vrot.slane %v2622, %v2631
        %v2633 = vmul.f32 %v2632, %v2627
        %v2634 = vmul.f32 %v2632, %v2628
        %v2635 = vmul.f32 %v2633, 1.442695
        %v2636 = vpow.pop %v2635
        %v2637 = vmul.f32 %v2634, 1.442695
        %v2638 = vpow.pop %v2637
        %v2639 = vmul.f32 %v2636, 0.0
        %v2640 = vmul.f32 %v2638, 0.0
        %v2641 = vmul.f32 %v2622, %v2379
        %v2642 = vlaneseq
        %v2643 = vshrl.u32 %v2642, 7
        %v2644 = vsub.s32 0, %v2643
        %v2645 = vrot.slane %v2641, %v2644
        %2647 = vset.pattern.permute.xlu0 0
        %2648 = vperm.xlu0 %2647, %v2473
        %v2649 = vpop.permute.xlu0 %2648
        %2652 = vset.pattern.permute.xlu0 0
        %2653 = vperm.xlu0 %2652, %v2474
        %v2654 = vpop.permute.xlu0 %2653
        %v2656 = vmul.f32 %v2645, %v2649
        %v2657 = vmul.f32 %v2645, %v2654
        %v2658 = vadd.f32 %v2639, %v2656
        %v2659 = vadd.f32 %v2640, %v2657
        %2661 = vset.pattern.permute.xlu0 0
        %2662 = vperm.xlu0 %2661, %v2508
        %v2663 = vpop.permute.xlu0 %2662
        %2666 = vset.pattern.permute.xlu0 0
        %2667 = vperm.xlu0 %2666, %v2509
        %v2668 = vpop.permute.xlu0 %2667
        %v2670 = vmul.f32 %v2663, %v2658
        %v2671 = vmul.f32 %v2668, %v2659
        %v2672 = vsel %vm411, %v2670, 0.0
        %v2673 = vsel %vm411, %v2671, 0.0
        %v2674 = vadd.f32 %v2672, %v2673
        %v2675 = vrot.slane %v2674, 4
        %v2676 = vadd.f32 %v2674, %v2675
        %v2677 = vrot.slane %v2676, 2
        %v2678 = vadd.f32 %v2676, %v2677
        %v2679 = vrot.slane %v2678, 1
        %v2680 = vadd.f32 %v2678, %v2679
        %v2681 = vmul.f32 %v2338, %v2379
        %v2682 = vadd.f32 %v2680, %v2681
        %v2683 = vlaneseq
        %v2684 = vshrl.u32 %v2683, 7
        %v2685 = vsub.s32 0, %v2684
        %v2686 = vrot.slane %v2682, %v2685
        %v2687 = vsel %vm874, %v2686, 0.0
        %v2688 = vlaneseq
        %v2689 = vshrl.u32 %v2688, 7
        %v2690 = vsub.s32 1, %v2689
        %v2691 = vrot.slane %v2622, %v2690
        %v2692 = vmul.f32 %v2691, %v2627
        %v2693 = vmul.f32 %v2691, %v2628
        %v2694 = vmul.f32 %v2692, 1.442695
        %v2695 = vpow.pop %v2694
        %v2696 = vmul.f32 %v2693, 1.442695
        %v2697 = vpow.pop %v2696
        %v2698 = vmul.f32 %v2695, %v2658
        %v2699 = vmul.f32 %v2697, %v2659
        %v2700 = vlaneseq
        %v2701 = vshrl.u32 %v2700, 7
        %v2702 = vsub.s32 1, %v2701
        %v2703 = vrot.slane %v2641, %v2702
        %2704 = vset.pattern.permute.xlu0 1
        %2705 = vperm.xlu0 %2704, %v2473
        %v2706 = vpop.permute.xlu0 %2705
        %2708 = vset.pattern.permute.xlu0 1
        %2709 = vperm.xlu0 %2708, %v2474
        %v2710 = vpop.permute.xlu0 %2709
        %v2712 = vmul.f32 %v2703, %v2706
        %v2713 = vmul.f32 %v2703, %v2710
        %v2714 = vadd.f32 %v2698, %v2712
        %v2715 = vadd.f32 %v2699, %v2713
        %2716 = vset.pattern.permute.xlu0 1
        %2717 = vperm.xlu0 %2716, %v2508
        %v2718 = vpop.permute.xlu0 %2717
        %2720 = vset.pattern.permute.xlu0 1
        %2721 = vperm.xlu0 %2720, %v2509
        %v2722 = vpop.permute.xlu0 %2721
        %v2724 = vmul.f32 %v2718, %v2714
        %v2725 = vmul.f32 %v2722, %v2715
        %v2726 = vsel %vm411, %v2724, 0.0
        %v2727 = vsel %vm411, %v2725, 0.0
        %v2728 = vadd.f32 %v2726, %v2727
        %v2729 = vrot.slane %v2728, 4
        %v2730 = vadd.f32 %v2728, %v2729
        %v2731 = vrot.slane %v2730, 2
        %v2732 = vadd.f32 %v2730, %v2731
        %v2733 = vrot.slane %v2732, 1
        %v2734 = vadd.f32 %v2732, %v2733
        %v2736 = vunpack.c.l.s4 1966171168
        %v2737 = vunpack.c.0.s8 %v2736
        %v2738 = vlaneseq
        %v2739 = vshrl.u32 %v2738, 7
        %v2740 = vsub.s32 %v2737, %v2739
        %v2741 = vrot.slane %v2379, %v2740
        %v2742 = vcombine.high %v2741, %v2741
        %v2744 = vunpack.c.l.s4 1966171168
        %v2745 = vunpack.c.0.s8 %v2744
        %v2746 = vlaneseq
        %v2747 = vshrl.u32 %v2746, 7
        %v2748 = vsub.s32 %v2745, %v2747
        %v2749 = vrot.slane %v2741, %v2748
        %v2751 = vunpack.c.l.s4 1966171168
        %v2752 = vunpack.c.0.s8 %v2751
        %v2753 = vlaneseq
        %v2754 = vshrl.u32 %v2753, 7
        %v2755 = vsub.s32 %v2752, %v2754
        %v2756 = vrot.slane %v2742, %v2755
        %v2758 = vmul.f32 %v2338, %v2756
        %v2759 = vadd.f32 %v2734, %v2758
        %v2760 = vlaneseq
        %v2761 = vshrl.u32 %v2760, 7
        %v2762 = vsub.s32 0, %v2761
        %v2763 = vrot.slane %v2759, %v2762
        %v2764 = vsel %vm952, %v2763, %v2687
        %v2765 = vlaneseq
        %v2766 = vshrl.u32 %v2765, 7
        %v2767 = vsub.s32 2, %v2766
        %v2768 = vrot.slane %v2622, %v2767
        %v2769 = vmul.f32 %v2768, %v2627
        %v2770 = vmul.f32 %v2768, %v2628
        %v2771 = vmul.f32 %v2769, 1.442695
        %v2772 = vpow.pop %v2771
        %v2773 = vmul.f32 %v2770, 1.442695
        %v2774 = vpow.pop %v2773
        %v2775 = vmul.f32 %v2772, %v2714
        %v2776 = vmul.f32 %v2774, %v2715
        %v2777 = vlaneseq
        %v2778 = vshrl.u32 %v2777, 7
        %v2779 = vsub.s32 2, %v2778
        %v2780 = vrot.slane %v2641, %v2779
        %2781 = vset.pattern.permute.xlu0 2
        %2782 = vperm.xlu0 %2781, %v2473
        %v2783 = vpop.permute.xlu0 %2782
        %2785 = vset.pattern.permute.xlu0 2
        %2786 = vperm.xlu0 %2785, %v2474
        %v2787 = vpop.permute.xlu0 %2786
        %v2789 = vmul.f32 %v2780, %v2783
        %v2790 = vmul.f32 %v2780, %v2787
        %v2791 = vadd.f32 %v2775, %v2789
        %v2792 = vadd.f32 %v2776, %v2790
        %2793 = vset.pattern.permute.xlu0 2
        %2794 = vperm.xlu0 %2793, %v2508
        %v2795 = vpop.permute.xlu0 %2794
        %2797 = vset.pattern.permute.xlu0 2
        %2798 = vperm.xlu0 %2797, %v2509
        %v2799 = vpop.permute.xlu0 %2798
        %v2801 = vmul.f32 %v2795, %v2791
        %v2802 = vmul.f32 %v2799, %v2792
        %v2803 = vsel %vm411, %v2801, 0.0
        %v2804 = vsel %vm411, %v2802, 0.0
        %v2805 = vadd.f32 %v2803, %v2804
        %v2806 = vrot.slane %v2805, 4
        %v2807 = vadd.f32 %v2805, %v2806
        %v2808 = vrot.slane %v2807, 2
        %v2809 = vadd.f32 %v2807, %v2808
        %v2810 = vrot.slane %v2809, 1
        %v2811 = vadd.f32 %v2809, %v2810
        %v2812 = vcombine.high %v2749, %v2749
        %v2814 = vmul.f32 %v2338, %v2812
        %v2815 = vadd.f32 %v2811, %v2814
        %v2816 = vlaneseq
        %v2817 = vshrl.u32 %v2816, 7
        %v2818 = vsub.s32 0, %v2817
        %v2819 = vrot.slane %v2815, %v2818
        %v2820 = vsel %vm1009, %v2819, %v2764
        %v2821 = vlaneseq
        %v2822 = vshrl.u32 %v2821, 7
        %v2823 = vsub.s32 3, %v2822
        %v2824 = vrot.slane %v2622, %v2823
        %v2825 = vmul.f32 %v2824, %v2627
        %v2826 = vmul.f32 %v2824, %v2628
        %v2827 = vmul.f32 %v2825, 1.442695
        %v2828 = vpow.pop %v2827
        %v2829 = vmul.f32 %v2826, 1.442695
        %v2830 = vpow.pop %v2829
        %v2831 = vmul.f32 %v2828, %v2791
        %v2832 = vmul.f32 %v2830, %v2792
        %v2833 = vlaneseq
        %v2834 = vshrl.u32 %v2833, 7
        %v2835 = vsub.s32 3, %v2834
        %v2836 = vrot.slane %v2641, %v2835
        %2837 = vset.pattern.permute.xlu0 3
        %2838 = vperm.xlu0 %2837, %v2473
        %v2839 = vpop.permute.xlu0 %2838
        %2841 = vset.pattern.permute.xlu0 3
        %2842 = vperm.xlu0 %2841, %v2474
        %v2843 = vpop.permute.xlu0 %2842
        %v2845 = vmul.f32 %v2836, %v2839
        %v2846 = vmul.f32 %v2836, %v2843
        %v2847 = vadd.f32 %v2831, %v2845
        %v2848 = vadd.f32 %v2832, %v2846
        %2849 = vset.pattern.permute.xlu0 3
        %2850 = vperm.xlu0 %2849, %v2508
        %v2851 = vpop.permute.xlu0 %2850
        %2853 = vset.pattern.permute.xlu0 3
        %2854 = vperm.xlu0 %2853, %v2509
        %v2855 = vpop.permute.xlu0 %2854
        %v2857 = vmul.f32 %v2851, %v2847
        %v2858 = vmul.f32 %v2855, %v2848
        %v2859 = vsel %vm411, %v2857, 0.0
        %v2860 = vsel %vm411, %v2858, 0.0
        %v2861 = vadd.f32 %v2859, %v2860
        %v2862 = vrot.slane %v2861, 4
        %v2863 = vadd.f32 %v2861, %v2862
        %v2864 = vrot.slane %v2863, 2
        %v2865 = vadd.f32 %v2863, %v2864
        %v2866 = vrot.slane %v2865, 1
        %v2867 = vadd.f32 %v2865, %v2866
        %v2868 = vcombine.high %v2756, %v2756
        %v2870 = vmul.f32 %v2338, %v2868
        %v2871 = vadd.f32 %v2867, %v2870
        %v2872 = vlaneseq
        %v2873 = vshrl.u32 %v2872, 7
        %v2874 = vsub.s32 0, %v2873
        %v2875 = vrot.slane %v2871, %v2874
        %v2876 = vsel %vm1066, %v2875, %v2820
        %v2877 = vlaneseq
        %v2878 = vshrl.u32 %v2877, 7
        %v2879 = vsub.s32 4, %v2878
        %v2880 = vrot.slane %v2622, %v2879
        %v2881 = vmul.f32 %v2880, %v2627
        %v2882 = vmul.f32 %v2880, %v2628
        %v2883 = vmul.f32 %v2881, 1.442695
        %v2884 = vpow.pop %v2883
        %v2885 = vmul.f32 %v2882, 1.442695
        %v2886 = vpow.pop %v2885
        %v2887 = vmul.f32 %v2884, %v2847
        %v2888 = vmul.f32 %v2886, %v2848
        %v2889 = vlaneseq
        %v2890 = vshrl.u32 %v2889, 7
        %v2891 = vsub.s32 4, %v2890
        %v2892 = vrot.slane %v2641, %v2891
        %2893 = vset.pattern.permute.xlu0 4
        %2894 = vperm.xlu0 %2893, %v2473
        %v2895 = vpop.permute.xlu0 %2894
        %2897 = vset.pattern.permute.xlu0 4
        %2898 = vperm.xlu0 %2897, %v2474
        %v2899 = vpop.permute.xlu0 %2898
        %v2901 = vmul.f32 %v2892, %v2895
        %v2902 = vmul.f32 %v2892, %v2899
        %v2903 = vadd.f32 %v2887, %v2901
        %v2904 = vadd.f32 %v2888, %v2902
        %2905 = vset.pattern.permute.xlu0 4
        %2906 = vperm.xlu0 %2905, %v2508
        %v2907 = vpop.permute.xlu0 %2906
        %2909 = vset.pattern.permute.xlu0 4
        %2910 = vperm.xlu0 %2909, %v2509
        %v2911 = vpop.permute.xlu0 %2910
        %v2913 = vmul.f32 %v2907, %v2903
        %v2914 = vmul.f32 %v2911, %v2904
        %v2915 = vsel %vm411, %v2913, 0.0
        %v2916 = vsel %vm411, %v2914, 0.0
        %v2917 = vadd.f32 %v2915, %v2916
        %v2918 = vrot.slane %v2917, 4
        %v2919 = vadd.f32 %v2917, %v2918
        %v2920 = vrot.slane %v2919, 2
        %v2921 = vadd.f32 %v2919, %v2920
        %v2922 = vrot.slane %v2921, 1
        %v2923 = vadd.f32 %v2921, %v2922
        %v2924 = vcombine.high %v2379, %v2379
        %v2926 = vunpack.c.l.s4 1966171168
        %v2927 = vunpack.c.0.s8 %v2926
        %v2928 = vlaneseq
        %v2929 = vshrl.u32 %v2928, 7
        %v2930 = vsub.s32 %v2927, %v2929
        %v2931 = vrot.slane %v2924, %v2930
        %v2933 = vunpack.c.l.s4 1966171168
        %v2934 = vunpack.c.0.s8 %v2933
        %v2935 = vlaneseq
        %v2936 = vshrl.u32 %v2935, 7
        %v2937 = vsub.s32 %v2934, %v2936
        %v2938 = vrot.slane %v2931, %v2937
        %v2940 = vmul.f32 %v2338, %v2938
        %v2941 = vadd.f32 %v2923, %v2940
        %v2942 = vlaneseq
        %v2943 = vshrl.u32 %v2942, 7
        %v2944 = vsub.s32 0, %v2943
        %v2945 = vrot.slane %v2941, %v2944
        %v2946 = vsel %vm1137, %v2945, %v2876
        %v2947 = vlaneseq
        %v2948 = vshrl.u32 %v2947, 7
        %v2949 = vsub.s32 5, %v2948
        %v2950 = vrot.slane %v2622, %v2949
        %v2951 = vmul.f32 %v2950, %v2627
        %v2952 = vmul.f32 %v2950, %v2628
        %v2953 = vmul.f32 %v2951, 1.442695
        %v2954 = vpow.pop %v2953
        %v2955 = vmul.f32 %v2952, 1.442695
        %v2956 = vpow.pop %v2955
        %v2957 = vmul.f32 %v2954, %v2903
        %v2958 = vmul.f32 %v2956, %v2904
        %v2959 = vlaneseq
        %v2960 = vshrl.u32 %v2959, 7
        %v2961 = vsub.s32 5, %v2960
        %v2962 = vrot.slane %v2641, %v2961
        %2963 = vset.pattern.permute.xlu0 5
        %2964 = vperm.xlu0 %2963, %v2473
        %v2965 = vpop.permute.xlu0 %2964
        %2967 = vset.pattern.permute.xlu0 5
        %2968 = vperm.xlu0 %2967, %v2474
        %v2969 = vpop.permute.xlu0 %2968
        %v2971 = vmul.f32 %v2962, %v2965
        %v2972 = vmul.f32 %v2962, %v2969
        %v2973 = vadd.f32 %v2957, %v2971
        %v2974 = vadd.f32 %v2958, %v2972
        %2975 = vset.pattern.permute.xlu0 5
        %2976 = vperm.xlu0 %2975, %v2508
        %v2977 = vpop.permute.xlu0 %2976
        %2979 = vset.pattern.permute.xlu0 5
        %2980 = vperm.xlu0 %2979, %v2509
        %v2981 = vpop.permute.xlu0 %2980
        %v2983 = vmul.f32 %v2977, %v2973
        %v2984 = vmul.f32 %v2981, %v2974
        %v2985 = vsel %vm411, %v2983, 0.0
        %v2986 = vsel %vm411, %v2984, 0.0
        %v2987 = vadd.f32 %v2985, %v2986
        %v2988 = vrot.slane %v2987, 4
        %v2989 = vadd.f32 %v2987, %v2988
        %v2990 = vrot.slane %v2989, 2
        %v2991 = vadd.f32 %v2989, %v2990
        %v2992 = vrot.slane %v2991, 1
        %v2993 = vadd.f32 %v2991, %v2992
        %v2994 = vcombine.high %v2931, %v2931
        %v2996 = vunpack.c.l.s4 1966171168
        %v2997 = vunpack.c.0.s8 %v2996
        %v2998 = vlaneseq
        %v2999 = vshrl.u32 %v2998, 7
        %v3000 = vsub.s32 %v2997, %v2999
        %v3001 = vrot.slane %v2994, %v3000
        %v3003 = vmul.f32 %v2338, %v3001
        %v3004 = vadd.f32 %v2993, %v3003
        %v3005 = vlaneseq
        %v3006 = vshrl.u32 %v3005, 7
        %v3007 = vsub.s32 0, %v3006
        %v3008 = vrot.slane %v3004, %v3007
        %v3009 = vsel %vm1201, %v3008, %v2946
        %v3010 = vlaneseq
        %v3011 = vshrl.u32 %v3010, 7
        %v3012 = vsub.s32 6, %v3011
        %v3013 = vrot.slane %v2622, %v3012
        %v3014 = vmul.f32 %v3013, %v2627
        %v3015 = vmul.f32 %v3013, %v2628
        %v3016 = vmul.f32 %v3014, 1.442695
        %v3017 = vpow.pop %v3016
        %v3018 = vmul.f32 %v3015, 1.442695
        %v3019 = vpow.pop %v3018
        %v3020 = vmul.f32 %v3017, %v2973
        %v3021 = vmul.f32 %v3019, %v2974
        %v3022 = vlaneseq
        %v3023 = vshrl.u32 %v3022, 7
        %v3024 = vsub.s32 6, %v3023
        %v3025 = vrot.slane %v2641, %v3024
        %3026 = vset.pattern.permute.xlu0 6
        %3027 = vperm.xlu0 %3026, %v2473
        %v3028 = vpop.permute.xlu0 %3027
        %3030 = vset.pattern.permute.xlu0 6
        %3031 = vperm.xlu0 %3030, %v2474
        %v3032 = vpop.permute.xlu0 %3031
        %v3034 = vmul.f32 %v3025, %v3028
        %v3035 = vmul.f32 %v3025, %v3032
        %v3036 = vadd.f32 %v3020, %v3034
        %v3037 = vadd.f32 %v3021, %v3035
        %3038 = vset.pattern.permute.xlu0 6
        %3039 = vperm.xlu0 %3038, %v2508
        %v3040 = vpop.permute.xlu0 %3039
        %3042 = vset.pattern.permute.xlu0 6
        %3043 = vperm.xlu0 %3042, %v2509
        %v3044 = vpop.permute.xlu0 %3043
        %v3046 = vmul.f32 %v3040, %v3036
        %v3047 = vmul.f32 %v3044, %v3037
        %v3048 = vsel %vm411, %v3046, 0.0
        %v3049 = vsel %vm411, %v3047, 0.0
        %v3050 = vadd.f32 %v3048, %v3049
        %v3051 = vrot.slane %v3050, 4
        %v3052 = vadd.f32 %v3050, %v3051
        %v3053 = vrot.slane %v3052, 2
        %v3054 = vadd.f32 %v3052, %v3053
        %v3055 = vrot.slane %v3054, 1
        %v3056 = vadd.f32 %v3054, %v3055
        %v3057 = vcombine.high %v2938, %v2938
        %v3059 = vmul.f32 %v2338, %v3057
        %v3060 = vadd.f32 %v3056, %v3059
        %v3061 = vlaneseq
        %v3062 = vshrl.u32 %v3061, 7
        %v3063 = vsub.s32 0, %v3062
        %v3064 = vrot.slane %v3060, %v3063
        %v3065 = vsel %vm1258, %v3064, %v3009
        %v3066 = vlaneseq
        %v3067 = vshrl.u32 %v3066, 7
        %v3068 = vsub.s32 7, %v3067
        %v3069 = vrot.slane %v2622, %v3068
        %v3070 = vmul.f32 %v3069, %v2627
        %v3071 = vmul.f32 %v3069, %v2628
        %v3072 = vmul.f32 %v3070, 1.442695
        %v3073 = vpow.pop %v3072
        %v3074 = vmul.f32 %v3071, 1.442695
        %v3075 = vpow.pop %v3074
        %v3076 = vmul.f32 %v3073, %v3036
        %v3077 = vmul.f32 %v3075, %v3037
        %v3078 = vlaneseq
        %v3079 = vshrl.u32 %v3078, 7
        %v3080 = vsub.s32 7, %v3079
        %v3081 = vrot.slane %v2641, %v3080
        %3082 = vset.pattern.permute.xlu0 7
        %3083 = vperm.xlu0 %3082, %v2473
        %v3084 = vpop.permute.xlu0 %3083
        %3086 = vset.pattern.permute.xlu0 7
        %3087 = vperm.xlu0 %3086, %v2474
        %v3088 = vpop.permute.xlu0 %3087
        %v3090 = vmul.f32 %v3081, %v3084
        %v3091 = vmul.f32 %v3081, %v3088
        %v3092 = vadd.f32 %v3076, %v3090
        %v3093 = vadd.f32 %v3077, %v3091
        %3094 = vset.pattern.permute.xlu0 7
        %3095 = vperm.xlu0 %3094, %v2508
        %v3096 = vpop.permute.xlu0 %3095
        %3098 = vset.pattern.permute.xlu0 7
        %3099 = vperm.xlu0 %3098, %v2509
        %v3100 = vpop.permute.xlu0 %3099
        %v3102 = vmul.f32 %v3096, %v3092
        %v3103 = vmul.f32 %v3100, %v3093
        %v3104 = vsel %vm411, %v3102, 0.0
        %v3105 = vsel %vm411, %v3103, 0.0
        %v3106 = vadd.f32 %v3104, %v3105
        %v3107 = vrot.slane %v3106, 4
        %v3108 = vadd.f32 %v3106, %v3107
        %v3109 = vrot.slane %v3108, 2
        %v3110 = vadd.f32 %v3108, %v3109
        %v3111 = vrot.slane %v3110, 1
        %v3112 = vadd.f32 %v3110, %v3111
        %v3113 = vcombine.high %v3001, %v3001
        %v3115 = vmul.f32 %v2338, %v3113
        %v3116 = vadd.f32 %v3112, %v3115
        %v3117 = vlaneseq
        %v3118 = vshrl.u32 %v3117, 7
        %v3119 = vsub.s32 0, %v3118
        %v3120 = vrot.slane %v3116, %v3119
        %v3121 = vsel %vm1315, %v3120, %v3065
        %v3122 = vxor.u32 %v2313, 2147483648
        %v3123 = vmul.f32 %v3122, 1.442695
        %v3124 = vpow.pop %v3123
        %v3125 = vadd.f32 %v3124, 1.0
        %v3126 = vrcp.pop %v3125
        %v3127 = vmul.f32 1.0, %v3126
        %v3128 = vmul.f32 %v2313, %v3127
        %3130 = vrot.lane.b32.xlu0 %v3128, 64
        %v3131 = vpop.permute.xlu0 %3130
        %v3133 = vmul.f32 %v3121, %v3131
        %v3134 = vadd.f32 %v3133, 0.0
        %s3135 = scalar_lea.vmem %s3, 12
        %v3136 = vld [vmem:[%s3135] sm:$0xf]
        %s3137 = scalar_lea.vmem %s4, 3
        %v3138 = vld [vmem:[%s3137] sm:$0x1]
        %s3139 = scalar_lea.vmem %s5, 192
        %v3140 = vld [vmem:[%s3139] sm:$0xff]
        %v3141 = vld [vmem:[%s3139 + $0x8] sm:$0xff]
        %v3142 = vld [vmem:[%s3139 + $0x10] sm:$0xff]
        %v3143 = vld [vmem:[%s3139 + $0x18] sm:$0xff]
        %v3144 = vld [vmem:[%s3139 + $0x20] sm:$0xff]
        %v3145 = vld [vmem:[%s3139 + $0x28] sm:$0xff]
        %v3146 = vld [vmem:[%s3139 + $0x30] sm:$0xff]
        %v3147 = vld [vmem:[%s3139 + $0x38] sm:$0xff]
        %s3148 = scalar_lea.vmem %s6, 6
        %v3149 = vld [vmem:[%s3148] sm:$0x3]
        %s3150 = scalar_lea.vmem %s7, 3
        %v3151 = vld [vmem:[%s3150] sm:$0x1]
        %s3152 = scalar_lea.vmem %s8, 48
        %v3153 = vld [vmem:[%s3152] sm:$0xff]
        %v3154 = vld [vmem:[%s3152 + $0x8] sm:$0xff]
        %s3155 = scalar_lea.vmem %s9, 3
        %v3156 = vld [vmem:[%s3155] sm:$0x1]
        %v3157 = vld [vmem:[#allocation2 + $0x6] sm:$0xff]
        %v3158 = vlaneseq
        %v3159 = vshrl.u32 %v3158, 7
        %v3160 = vsub.s32 0, %v3159
        %v3161 = vrot.slane %v3136, %v3160
        %v3162 = vmul.f32 %v3157, %v3161
        %v3164 = vlaneseq
        %v3165 = vshrl.u32 %v3164, 7
        %v3166 = vsub.s32 0, %v3165
        %v3167 = vrot.slane %v3138, %v3166
        %v3169 = vadd.f32 %v3167, %v3162
        %v3170 = vld [vmem:[#allocation2 + $0x5] sm:$0xff]
        %v3171 = vlaneseq
        %v3172 = vshrl.u32 %v3171, 7
        %v3173 = vsub.s32 1, %v3172
        %v3174 = vrot.slane %v3136, %v3173
        %v3175 = vmul.f32 %v3170, %v3174
        %v3176 = vadd.f32 %v3169, %v3175
        %v3177 = vld [vmem:[#allocation2 + $0x4] sm:$0xff]
        %v3178 = vlaneseq
        %v3179 = vshrl.u32 %v3178, 7
        %v3180 = vsub.s32 2, %v3179
        %v3181 = vrot.slane %v3136, %v3180
        %v3182 = vmul.f32 %v3177, %v3181
        %v3183 = vadd.f32 %v3176, %v3182
        %v3184 = vlaneseq
        %v3185 = vshrl.u32 %v3184, 7
        %v3186 = vsub.s32 3, %v3185
        %v3187 = vrot.slane %v3136, %v3186
        %v3188 = vmul.f32 %v2366, %v3187
        %v3189 = vadd.f32 %v3183, %v3188
        %v3190 = vxor.u32 %v3189, 2147483648
        %v3191 = vmul.f32 %v3190, 1.442695
        %v3192 = vpow.pop %v3191
        %v3193 = vadd.f32 %v3192, 1.0
        %v3194 = vrcp.pop %v3193
        %v3195 = vmul.f32 1.0, %v3194
        %v3196 = vmul.f32 %v3189, %v3195
        %v3198 = vsel %vm411, %v3196, 0
        %3200 = vmatprep.subr.mxu0 0.0
        %3201 = vmatpush1.msra.mxu0 %v3140
        %3202 = vmatprep.subr.mxu0 0.0
        %3203 = vmatpush1.msra.mxu0 %v3141
        %3204 = vmatprep.subr.mxu0 0.0
        %3205 = vmatpush1.msra.mxu0 %v3142
        %3206 = vmatprep.subr.mxu0 0.0
        %3207 = vmatpush1.msra.mxu0 %v3143
        %3208 = vmatprep.subr.mxu0 0.0
        %3209 = vmatpush1.msra.mxu0 %v3144
        %3210 = vmatprep.subr.mxu0 0.0
        %3211 = vmatpush1.msra.mxu0 %v3145
        %3212 = vmatprep.subr.mxu0 0.0
        %3213 = vmatpush1.msra.mxu0 %v3146
        %3214 = vmatprep.subr.mxu0 0.0
        %3215 = vmatpush1.msra.mxu0 %v3147
        %3216 = vmatprep.subr.mxu0 0.0
        %3217 = vmatpush1.msra.mxu0 0.0
        %3218 = vmatprep.subr.mxu0 0.0
        %3219 = vmatpush1.msra.mxu0 0.0
        %3220 = vmatprep.subr.mxu0 0.0
        %3221 = vmatpush1.msra.mxu0 0.0
        %3222 = vmatprep.subr.mxu0 0.0
        %3223 = vmatpush1.msra.mxu0 0.0
        %3224 = vmatprep.subr.mxu0 0.0
        %3225 = vmatpush1.msra.mxu0 0.0
        %3226 = vmatprep.subr.mxu0 0.0
        %3227 = vmatpush1.msra.mxu0 0.0
        %3228 = vmatprep.subr.mxu0 0.0
        %3229 = vmatpush1.msra.mxu0 0.0
        %3230 = vmatprep.subr.mxu0 0.0
        %3231 = vmatpush1.msra.mxu0 0.0
        %3232 = vmatprep.subr.mxu0 0.0
        %3233 = vmatpush1.msra.mxu0 0.0
        %3234 = vmatprep.subr.mxu0 0.0
        %3235 = vmatpush1.msra.mxu0 0.0
        %3236 = vmatprep.subr.mxu0 0.0
        %3237 = vmatpush1.msra.mxu0 0.0
        %3238 = vmatprep.subr.mxu0 0.0
        %3239 = vmatpush1.msra.mxu0 0.0
        %3240 = vmatprep.subr.mxu0 0.0
        %3241 = vmatpush1.msra.mxu0 0.0
        %3242 = vmatprep.subr.mxu0 0.0
        %3243 = vmatpush1.msra.mxu0 0.0
        %3244 = vmatprep.subr.mxu0 0.0
        %3245 = vmatpush1.msra.mxu0 0.0
        %3246 = vmatprep.subr.mxu0 0.0
        %3247 = vmatpush1.msra.mxu0 0.0
        %3248 = vmatprep.subr.mxu0 0.0
        %3249 = vmatpush1.msra.mxu0 0.0
        %3250 = vmatprep.subr.mxu0 0.0
        %3251 = vmatpush1.msra.mxu0 0.0
        %3252 = vmatprep.subr.mxu0 0.0
        %3253 = vmatpush1.msra.mxu0 0.0
        %3254 = vmatprep.subr.mxu0 0.0
        %3255 = vmatpush1.msra.mxu0 0.0
        %3256 = vmatprep.subr.mxu0 0.0
        %3257 = vmatpush1.msra.mxu0 0.0
        %3258 = vmatprep.subr.mxu0 0.0
        %3259 = vmatpush1.msra.mxu0 0.0
        %3260 = vmatprep.subr.mxu0 0.0
        %3261 = vmatpush1.msra.mxu0 0.0
        %3262 = vmatprep.subr.mxu0 0.0
        %3263 = vmatpush1.msra.mxu0 0.0
        %3264 = vmatprep.mubr.f32.mxu0 0.0
        %3265 = vmatmul.mubr.f32.gmra.mrb[0].mxu0 %v3198
        %v3266 = vpop.f32.mrb[0].mxu0
        %v3267 = vadd.f32 0.0, %v3266
        %v3268 = vpop.f32.mrb[0].mxu0
        %3269 = vdwg.mxu0
        %3271 = vrot.lane.b32.xlu0 %v3267, 126
        %v3272 = vpop.permute.xlu0 %3271
        %3274 = vxpose.xlu0.b32.start [1/16] %v3272, 128
        %3275 = vxpose.xlu0.b32.cont [2/16] 0.0, 128
        %3276 = vxpose.xlu0.b32.cont [3/16] 0.0, 128
        %3277 = vxpose.xlu0.b32.cont [4/16] 0.0, 128
        %3278 = vxpose.xlu0.b32.cont [5/16] 0.0, 128
        %3279 = vxpose.xlu0.b32.cont [6/16] 0.0, 128
        %3280 = vxpose.xlu0.b32.cont [7/16] 0.0, 128
        %3281 = vxpose.xlu0.b32.cont [8/16] 0.0, 128
        %3282 = vxpose.xlu0.b32.cont [9/16] 0.0, 128
        %3283 = vxpose.xlu0.b32.cont [10/16] 0.0, 128
        %3284 = vxpose.xlu0.b32.cont [11/16] 0.0, 128
        %3285 = vxpose.xlu0.b32.cont [12/16] 0.0, 128
        %3286 = vxpose.xlu0.b32.cont [13/16] 0.0, 128
        %3287 = vxpose.xlu0.b32.cont [14/16] 0.0, 128
        %3288 = vxpose.xlu0.b32.cont [15/16] 0.0, 128
        %3289 = vxpose.xlu0.b32.end [16/16] 0.0, 128
        %v3290 = vpop.trf.xlu0
        %v3291 = vpop.trf.xlu0
        %v3292 = vpop.trf.xlu0
        %v3293 = vpop.trf.xlu0
        %v3294 = vpop.trf.xlu0
        %v3295 = vpop.trf.xlu0
        %v3296 = vpop.trf.xlu0
        %v3297 = vpop.trf.xlu0
        %v3298 = vpop.trf.xlu0
        %v3299 = vpop.trf.xlu0
        %v3300 = vpop.trf.xlu0
        %v3301 = vpop.trf.xlu0
        %v3302 = vpop.trf.xlu0
        %v3303 = vpop.trf.xlu0
        %v3304 = vpop.trf.xlu0
        %v3305 = vpop.trf.xlu0
        %3306 = vrot.lane.b32.xlu0 %v3267, 110
        %v3307 = vpop.permute.xlu0 %3306
        %3309 = vxpose.xlu0.b32.start [1/16] %v3307, 128
        %3310 = vxpose.xlu0.b32.cont [2/16] 0.0, 128
        %3311 = vxpose.xlu0.b32.cont [3/16] 0.0, 128
        %3312 = vxpose.xlu0.b32.cont [4/16] 0.0, 128
        %3313 = vxpose.xlu0.b32.cont [5/16] 0.0, 128
        %3314 = vxpose.xlu0.b32.cont [6/16] 0.0, 128
        %3315 = vxpose.xlu0.b32.cont [7/16] 0.0, 128
        %3316 = vxpose.xlu0.b32.cont [8/16] 0.0, 128
        %3317 = vxpose.xlu0.b32.cont [9/16] 0.0, 128
        %3318 = vxpose.xlu0.b32.cont [10/16] 0.0, 128
        %3319 = vxpose.xlu0.b32.cont [11/16] 0.0, 128
        %3320 = vxpose.xlu0.b32.cont [12/16] 0.0, 128
        %3321 = vxpose.xlu0.b32.cont [13/16] 0.0, 128
        %3322 = vxpose.xlu0.b32.cont [14/16] 0.0, 128
        %3323 = vxpose.xlu0.b32.cont [15/16] 0.0, 128
        %3324 = vxpose.xlu0.b32.end [16/16] 0.0, 128
        %v3325 = vpop.trf.xlu0
        %v3326 = vpop.trf.xlu0
        %v3327 = vpop.trf.xlu0
        %v3328 = vpop.trf.xlu0
        %v3329 = vpop.trf.xlu0
        %v3330 = vpop.trf.xlu0
        %v3331 = vpop.trf.xlu0
        %v3332 = vpop.trf.xlu0
        %v3333 = vpop.trf.xlu0
        %v3334 = vpop.trf.xlu0
        %v3335 = vpop.trf.xlu0
        %v3336 = vpop.trf.xlu0
        %v3337 = vpop.trf.xlu0
        %v3338 = vpop.trf.xlu0
        %v3339 = vpop.trf.xlu0
        %v3340 = vpop.trf.xlu0
        %v3342 = vlaneseq
        %v3343 = vshrl.u32 %v3342, 7
        %v3344 = vsub.s32 0, %v3343
        %v3345 = vrot.slane %v3151, %v3344
        %v3347 = vsel %vm719, %v3267, 0
        %v3350 = vsel %vm722, %v3149, 0
        %3352 = vmatprep.subr.mxu0 0.0
        %3353 = vmatpush1.msra.mxu0 %v3350
        %3354 = vmatprep.subr.mxu0 0.0
        %3355 = vmatpush1.msra.mxu0 0.0
        %3356 = vmatprep.subr.mxu0 0.0
        %3357 = vmatpush1.msra.mxu0 0.0
        %3358 = vmatprep.subr.mxu0 0.0
        %3359 = vmatpush1.msra.mxu0 0.0
        %3360 = vmatprep.subr.mxu0 0.0
        %3361 = vmatpush1.msra.mxu0 0.0
        %3362 = vmatprep.subr.mxu0 0.0
        %3363 = vmatpush1.msra.mxu0 0.0
        %3364 = vmatprep.subr.mxu0 0.0
        %3365 = vmatpush1.msra.mxu0 0.0
        %3366 = vmatprep.subr.mxu0 0.0
        %3367 = vmatpush1.msra.mxu0 0.0
        %3368 = vmatprep.subr.mxu0 0.0
        %3369 = vmatpush1.msra.mxu0 0.0
        %3370 = vmatprep.subr.mxu0 0.0
        %3371 = vmatpush1.msra.mxu0 0.0
        %3372 = vmatprep.subr.mxu0 0.0
        %3373 = vmatpush1.msra.mxu0 0.0
        %3374 = vmatprep.subr.mxu0 0.0
        %3375 = vmatpush1.msra.mxu0 0.0
        %3376 = vmatprep.subr.mxu0 0.0
        %3377 = vmatpush1.msra.mxu0 0.0
        %3378 = vmatprep.subr.mxu0 0.0
        %3379 = vmatpush1.msra.mxu0 0.0
        %3380 = vmatprep.subr.mxu0 0.0
        %3381 = vmatpush1.msra.mxu0 0.0
        %3382 = vmatprep.subr.mxu0 0.0
        %3383 = vmatpush1.msra.mxu0 0.0
        %3384 = vmatprep.subr.mxu0 0.0
        %3385 = vmatpush1.msra.mxu0 0.0
        %3386 = vmatprep.subr.mxu0 0.0
        %3387 = vmatpush1.msra.mxu0 0.0
        %3388 = vmatprep.subr.mxu0 0.0
        %3389 = vmatpush1.msra.mxu0 0.0
        %3390 = vmatprep.subr.mxu0 0.0
        %3391 = vmatpush1.msra.mxu0 0.0
        %3392 = vmatprep.subr.mxu0 0.0
        %3393 = vmatpush1.msra.mxu0 0.0
        %3394 = vmatprep.subr.mxu0 0.0
        %3395 = vmatpush1.msra.mxu0 0.0
        %3396 = vmatprep.subr.mxu0 0.0
        %3397 = vmatpush1.msra.mxu0 0.0
        %3398 = vmatprep.subr.mxu0 0.0
        %3399 = vmatpush1.msra.mxu0 0.0
        %3400 = vmatprep.subr.mxu0 0.0
        %3401 = vmatpush1.msra.mxu0 0.0
        %3402 = vmatprep.subr.mxu0 0.0
        %3403 = vmatpush1.msra.mxu0 0.0
        %3404 = vmatprep.subr.mxu0 0.0
        %3405 = vmatpush1.msra.mxu0 0.0
        %3406 = vmatprep.subr.mxu0 0.0
        %3407 = vmatpush1.msra.mxu0 0.0
        %3408 = vmatprep.subr.mxu0 0.0
        %3409 = vmatpush1.msra.mxu0 0.0
        %3410 = vmatprep.subr.mxu0 0.0
        %3411 = vmatpush1.msra.mxu0 0.0
        %3412 = vmatprep.subr.mxu0 0.0
        %3413 = vmatpush1.msra.mxu0 0.0
        %3414 = vmatprep.subr.mxu0 0.0
        %3415 = vmatpush1.msra.mxu0 0.0
        %3416 = vmatprep.mubr.f32.mxu0 0.0
        %3417 = vmatmul.mubr.f32.gmra.mrb[0].mxu0 %v3347
        %v3418 = vpop.f32.mrb[0].mxu0
        %v3419 = vadd.f32 %v3345, %v3418
        %v3420 = vpop.f32.mrb[0].mxu0
        %3421 = vdwg.mxu0
        %v3422 = vmax.f32 %v3419, 0.0
        %vm3423 = vcmp.ne.f32.partialorder %v3419, %v3419
        %v3424 = vadd.f32 %v3419, 0.0
        %v3425 = vand.u32 2147483647, %v3419
        %v3426 = vsub.f32 0.0, %v3425
        %v3427 = vmul.f32 %v3426, 1.442695
        %v3428 = vpow.pop %v3427
        %v3429 = vadd.f32 %v3428, 1.0
        %v3430 = vlog2.pop %v3429
        %v3431 = vmul.f32 %v3430, 0.6931472
        %v3432 = vmul.f32 -0.5, %v3428
        %v3433 = vadd.f32 %v3432, 1.0
        %v3434 = vmul.f32 %v3433, %v3428
        %v3435 = vand.u32 2147483647, %v3428
        %vm3436 = vcmp.lt.f32.partialorder %v3435, 0.0004427343
        %v3437 = vsel %vm3436, %v3434, %v3431
        %v3438 = vadd.f32 %v3422, %v3437
        %v3439 = vsel %vm3423, %v3424, %v3438
        %v3440 = vmul.f32 %v3153, 1.442695
        %v3441 = vpow.pop %v3440
        %v3442 = vmul.f32 %v3154, 1.442695
        %v3443 = vpow.pop %v3442
        %v3444 = vsub.f32 0.0, %v3441
        %v3445 = vsub.f32 0.0, %v3443
        %v3446 = vlaneseq
        %v3447 = vshrl.u32 %v3446, 7
        %v3448 = vsub.s32 7, %v3447
        %v3449 = vrot.slane %v3439, %v3448
        %v3450 = vmul.f32 %v3449, %v3444
        %v3451 = vmul.f32 %v3449, %v3445
        %v3452 = vmul.f32 %v3450, 1.442695
        %v3453 = vpow.pop %v3452
        %v3454 = vmul.f32 %v3451, 1.442695
        %v3455 = vpow.pop %v3454
        %v3456 = vmul.f32 %v3453, 0.0
        %v3457 = vmul.f32 %v3455, 0.0
        %v3458 = vmul.f32 %v3439, %v3196
        %v3459 = vlaneseq
        %v3460 = vshrl.u32 %v3459, 7
        %v3461 = vsub.s32 7, %v3460
        %v3462 = vrot.slane %v3458, %v3461
        %3464 = vset.pattern.permute.xlu0 7
        %3465 = vperm.xlu0 %3464, %v3290
        %v3466 = vpop.permute.xlu0 %3465
        %3469 = vset.pattern.permute.xlu0 7
        %3470 = vperm.xlu0 %3469, %v3291
        %v3471 = vpop.permute.xlu0 %3470
        %v3473 = vmul.f32 %v3462, %v3466
        %v3474 = vmul.f32 %v3462, %v3471
        %v3475 = vadd.f32 %v3456, %v3473
        %v3476 = vadd.f32 %v3457, %v3474
        %3478 = vset.pattern.permute.xlu0 7
        %3479 = vperm.xlu0 %3478, %v3325
        %v3480 = vpop.permute.xlu0 %3479
        %3483 = vset.pattern.permute.xlu0 7
        %3484 = vperm.xlu0 %3483, %v3326
        %v3485 = vpop.permute.xlu0 %3484
        %v3487 = vmul.f32 %v3480, %v3475
        %v3488 = vmul.f32 %v3485, %v3476
        %v3489 = vsel %vm411, %v3487, 0.0
        %v3490 = vsel %vm411, %v3488, 0.0
        %v3491 = vadd.f32 %v3489, %v3490
        %v3492 = vrot.slane %v3491, 4
        %v3493 = vadd.f32 %v3491, %v3492
        %v3494 = vrot.slane %v3493, 2
        %v3495 = vadd.f32 %v3493, %v3494
        %v3496 = vrot.slane %v3495, 1
        %v3497 = vadd.f32 %v3495, %v3496
        %v3498 = vcombine.high %v3196, %v3196
        %v3500 = vunpack.c.l.s4 1966171168
        %v3501 = vunpack.c.0.s8 %v3500
        %v3502 = vlaneseq
        %v3503 = vshrl.u32 %v3502, 7
        %v3504 = vsub.s32 %v3501, %v3503
        %v3505 = vrot.slane %v3196, %v3504
        %v3507 = vunpack.c.l.s4 1966171168
        %v3508 = vunpack.c.0.s8 %v3507
        %v3509 = vlaneseq
        %v3510 = vshrl.u32 %v3509, 7
        %v3511 = vsub.s32 %v3508, %v3510
        %v3512 = vrot.slane %v3498, %v3511
        %v3513 = vcombine.high %v3512, %v3512
        %v3515 = vunpack.c.l.s4 1966171168
        %v3516 = vunpack.c.0.s8 %v3515
        %v3517 = vlaneseq
        %v3518 = vshrl.u32 %v3517, 7
        %v3519 = vsub.s32 %v3516, %v3518
        %v3520 = vrot.slane %v3505, %v3519
        %v3522 = vunpack.c.l.s4 1966171168
        %v3523 = vunpack.c.0.s8 %v3522
        %v3524 = vlaneseq
        %v3525 = vshrl.u32 %v3524, 7
        %v3526 = vsub.s32 %v3523, %v3525
        %v3527 = vrot.slane %v3513, %v3526
        %v3528 = vcombine.high %v3527, %v3527
        %v3530 = vmul.f32 %v3156, %v3528
        %v3531 = vadd.f32 %v3497, %v3530
        %v3532 = vlaneseq
        %v3533 = vshrl.u32 %v3532, 7
        %v3534 = vsub.s32 0, %v3533
        %v3535 = vrot.slane %v3531, %v3534
        %v3536 = vsel %vm1315, %v3535, 0.0
        %v3537 = vlaneseq
        %v3538 = vshrl.u32 %v3537, 7
        %v3539 = vsub.s32 6, %v3538
        %v3540 = vrot.slane %v3439, %v3539
        %v3541 = vmul.f32 %v3540, %v3444
        %v3542 = vmul.f32 %v3540, %v3445
        %v3543 = vmul.f32 %v3541, 1.442695
        %v3544 = vpow.pop %v3543
        %v3545 = vmul.f32 %v3542, 1.442695
        %v3546 = vpow.pop %v3545
        %v3547 = vmul.f32 %v3544, %v3475
        %v3548 = vmul.f32 %v3546, %v3476
        %v3549 = vlaneseq
        %v3550 = vshrl.u32 %v3549, 7
        %v3551 = vsub.s32 6, %v3550
        %v3552 = vrot.slane %v3458, %v3551
        %3553 = vset.pattern.permute.xlu0 6
        %3554 = vperm.xlu0 %3553, %v3290
        %v3555 = vpop.permute.xlu0 %3554
        %3557 = vset.pattern.permute.xlu0 6
        %3558 = vperm.xlu0 %3557, %v3291
        %v3559 = vpop.permute.xlu0 %3558
        %v3561 = vmul.f32 %v3552, %v3555
        %v3562 = vmul.f32 %v3552, %v3559
        %v3563 = vadd.f32 %v3547, %v3561
        %v3564 = vadd.f32 %v3548, %v3562
        %3565 = vset.pattern.permute.xlu0 6
        %3566 = vperm.xlu0 %3565, %v3325
        %v3567 = vpop.permute.xlu0 %3566
        %3569 = vset.pattern.permute.xlu0 6
        %3570 = vperm.xlu0 %3569, %v3326
        %v3571 = vpop.permute.xlu0 %3570
        %v3573 = vmul.f32 %v3567, %v3563
        %v3574 = vmul.f32 %v3571, %v3564
        %v3575 = vsel %vm411, %v3573, 0.0
        %v3576 = vsel %vm411, %v3574, 0.0
        %v3577 = vadd.f32 %v3575, %v3576
        %v3578 = vrot.slane %v3577, 4
        %v3579 = vadd.f32 %v3577, %v3578
        %v3580 = vrot.slane %v3579, 2
        %v3581 = vadd.f32 %v3579, %v3580
        %v3582 = vrot.slane %v3581, 1
        %v3583 = vadd.f32 %v3581, %v3582
        %v3585 = vunpack.c.l.s4 1966171168
        %v3586 = vunpack.c.0.s8 %v3585
        %v3587 = vlaneseq
        %v3588 = vshrl.u32 %v3587, 7
        %v3589 = vsub.s32 %v3586, %v3588
        %v3590 = vrot.slane %v3512, %v3589
        %v3591 = vcombine.high %v3590, %v3590
        %v3593 = vmul.f32 %v3156, %v3591
        %v3594 = vadd.f32 %v3583, %v3593
        %v3595 = vlaneseq
        %v3596 = vshrl.u32 %v3595, 7
        %v3597 = vsub.s32 0, %v3596
        %v3598 = vrot.slane %v3594, %v3597
        %v3599 = vsel %vm1258, %v3598, %v3536
        %v3600 = vlaneseq
        %v3601 = vshrl.u32 %v3600, 7
        %v3602 = vsub.s32 5, %v3601
        %v3603 = vrot.slane %v3439, %v3602
        %v3604 = vmul.f32 %v3603, %v3444
        %v3605 = vmul.f32 %v3603, %v3445
        %v3606 = vmul.f32 %v3604, 1.442695
        %v3607 = vpow.pop %v3606
        %v3608 = vmul.f32 %v3605, 1.442695
        %v3609 = vpow.pop %v3608
        %v3610 = vmul.f32 %v3607, %v3563
        %v3611 = vmul.f32 %v3609, %v3564
        %v3612 = vlaneseq
        %v3613 = vshrl.u32 %v3612, 7
        %v3614 = vsub.s32 5, %v3613
        %v3615 = vrot.slane %v3458, %v3614
        %3616 = vset.pattern.permute.xlu0 5
        %3617 = vperm.xlu0 %3616, %v3290
        %v3618 = vpop.permute.xlu0 %3617
        %3620 = vset.pattern.permute.xlu0 5
        %3621 = vperm.xlu0 %3620, %v3291
        %v3622 = vpop.permute.xlu0 %3621
        %v3624 = vmul.f32 %v3615, %v3618
        %v3625 = vmul.f32 %v3615, %v3622
        %v3626 = vadd.f32 %v3610, %v3624
        %v3627 = vadd.f32 %v3611, %v3625
        %3628 = vset.pattern.permute.xlu0 5
        %3629 = vperm.xlu0 %3628, %v3325
        %v3630 = vpop.permute.xlu0 %3629
        %3632 = vset.pattern.permute.xlu0 5
        %3633 = vperm.xlu0 %3632, %v3326
        %v3634 = vpop.permute.xlu0 %3633
        %v3636 = vmul.f32 %v3630, %v3626
        %v3637 = vmul.f32 %v3634, %v3627
        %v3638 = vsel %vm411, %v3636, 0.0
        %v3639 = vsel %vm411, %v3637, 0.0
        %v3640 = vadd.f32 %v3638, %v3639
        %v3641 = vrot.slane %v3640, 4
        %v3642 = vadd.f32 %v3640, %v3641
        %v3643 = vrot.slane %v3642, 2
        %v3644 = vadd.f32 %v3642, %v3643
        %v3645 = vrot.slane %v3644, 1
        %v3646 = vadd.f32 %v3644, %v3645
        %v3648 = vmul.f32 %v3156, %v3527
        %v3649 = vadd.f32 %v3646, %v3648
        %v3650 = vlaneseq
        %v3651 = vshrl.u32 %v3650, 7
        %v3652 = vsub.s32 0, %v3651
        %v3653 = vrot.slane %v3649, %v3652
        %v3654 = vsel %vm1201, %v3653, %v3599
        %v3655 = vlaneseq
        %v3656 = vshrl.u32 %v3655, 7
        %v3657 = vsub.s32 4, %v3656
        %v3658 = vrot.slane %v3439, %v3657
        %v3659 = vmul.f32 %v3658, %v3444
        %v3660 = vmul.f32 %v3658, %v3445
        %v3661 = vmul.f32 %v3659, 1.442695
        %v3662 = vpow.pop %v3661
        %v3663 = vmul.f32 %v3660, 1.442695
        %v3664 = vpow.pop %v3663
        %v3665 = vmul.f32 %v3662, %v3626
        %v3666 = vmul.f32 %v3664, %v3627
        %v3667 = vlaneseq
        %v3668 = vshrl.u32 %v3667, 7
        %v3669 = vsub.s32 4, %v3668
        %v3670 = vrot.slane %v3458, %v3669
        %3671 = vset.pattern.permute.xlu0 4
        %3672 = vperm.xlu0 %3671, %v3290
        %v3673 = vpop.permute.xlu0 %3672
        %3675 = vset.pattern.permute.xlu0 4
        %3676 = vperm.xlu0 %3675, %v3291
        %v3677 = vpop.permute.xlu0 %3676
        %v3679 = vmul.f32 %v3670, %v3673
        %v3680 = vmul.f32 %v3670, %v3677
        %v3681 = vadd.f32 %v3665, %v3679
        %v3682 = vadd.f32 %v3666, %v3680
        %3683 = vset.pattern.permute.xlu0 4
        %3684 = vperm.xlu0 %3683, %v3325
        %v3685 = vpop.permute.xlu0 %3684
        %3687 = vset.pattern.permute.xlu0 4
        %3688 = vperm.xlu0 %3687, %v3326
        %v3689 = vpop.permute.xlu0 %3688
        %v3691 = vmul.f32 %v3685, %v3681
        %v3692 = vmul.f32 %v3689, %v3682
        %v3693 = vsel %vm411, %v3691, 0.0
        %v3694 = vsel %vm411, %v3692, 0.0
        %v3695 = vadd.f32 %v3693, %v3694
        %v3696 = vrot.slane %v3695, 4
        %v3697 = vadd.f32 %v3695, %v3696
        %v3698 = vrot.slane %v3697, 2
        %v3699 = vadd.f32 %v3697, %v3698
        %v3700 = vrot.slane %v3699, 1
        %v3701 = vadd.f32 %v3699, %v3700
        %v3703 = vmul.f32 %v3156, %v3590
        %v3704 = vadd.f32 %v3701, %v3703
        %v3705 = vlaneseq
        %v3706 = vshrl.u32 %v3705, 7
        %v3707 = vsub.s32 0, %v3706
        %v3708 = vrot.slane %v3704, %v3707
        %v3709 = vsel %vm1137, %v3708, %v3654
        %v3710 = vlaneseq
        %v3711 = vshrl.u32 %v3710, 7
        %v3712 = vsub.s32 3, %v3711
        %v3713 = vrot.slane %v3439, %v3712
        %v3714 = vmul.f32 %v3713, %v3444
        %v3715 = vmul.f32 %v3713, %v3445
        %v3716 = vmul.f32 %v3714, 1.442695
        %v3717 = vpow.pop %v3716
        %v3718 = vmul.f32 %v3715, 1.442695
        %v3719 = vpow.pop %v3718
        %v3720 = vmul.f32 %v3717, %v3681
        %v3721 = vmul.f32 %v3719, %v3682
        %v3722 = vlaneseq
        %v3723 = vshrl.u32 %v3722, 7
        %v3724 = vsub.s32 3, %v3723
        %v3725 = vrot.slane %v3458, %v3724
        %3726 = vset.pattern.permute.xlu0 3
        %3727 = vperm.xlu0 %3726, %v3290
        %v3728 = vpop.permute.xlu0 %3727
        %3730 = vset.pattern.permute.xlu0 3
        %3731 = vperm.xlu0 %3730, %v3291
        %v3732 = vpop.permute.xlu0 %3731
        %v3734 = vmul.f32 %v3725, %v3728
        %v3735 = vmul.f32 %v3725, %v3732
        %v3736 = vadd.f32 %v3720, %v3734
        %v3737 = vadd.f32 %v3721, %v3735
        %3738 = vset.pattern.permute.xlu0 3
        %3739 = vperm.xlu0 %3738, %v3325
        %v3740 = vpop.permute.xlu0 %3739
        %3742 = vset.pattern.permute.xlu0 3
        %3743 = vperm.xlu0 %3742, %v3326
        %v3744 = vpop.permute.xlu0 %3743
        %v3746 = vmul.f32 %v3740, %v3736
        %v3747 = vmul.f32 %v3744, %v3737
        %v3748 = vsel %vm411, %v3746, 0.0
        %v3749 = vsel %vm411, %v3747, 0.0
        %v3750 = vadd.f32 %v3748, %v3749
        %v3751 = vrot.slane %v3750, 4
        %v3752 = vadd.f32 %v3750, %v3751
        %v3753 = vrot.slane %v3752, 2
        %v3754 = vadd.f32 %v3752, %v3753
        %v3755 = vrot.slane %v3754, 1
        %v3756 = vadd.f32 %v3754, %v3755
        %v3757 = vcombine.high %v3505, %v3505
        %v3759 = vunpack.c.l.s4 1966171168
        %v3760 = vunpack.c.0.s8 %v3759
        %v3761 = vlaneseq
        %v3762 = vshrl.u32 %v3761, 7
        %v3763 = vsub.s32 %v3760, %v3762
        %v3764 = vrot.slane %v3757, %v3763
        %v3765 = vcombine.high %v3764, %v3764
        %v3767 = vmul.f32 %v3156, %v3765
        %v3768 = vadd.f32 %v3756, %v3767
        %v3769 = vlaneseq
        %v3770 = vshrl.u32 %v3769, 7
        %v3771 = vsub.s32 0, %v3770
        %v3772 = vrot.slane %v3768, %v3771
        %v3773 = vsel %vm1066, %v3772, %v3709
        %v3774 = vlaneseq
        %v3775 = vshrl.u32 %v3774, 7
        %v3776 = vsub.s32 2, %v3775
        %v3777 = vrot.slane %v3439, %v3776
        %v3778 = vmul.f32 %v3777, %v3444
        %v3779 = vmul.f32 %v3777, %v3445
        %v3780 = vmul.f32 %v3778, 1.442695
        %v3781 = vpow.pop %v3780
        %v3782 = vmul.f32 %v3779, 1.442695
        %v3783 = vpow.pop %v3782
        %v3784 = vmul.f32 %v3781, %v3736
        %v3785 = vmul.f32 %v3783, %v3737
        %v3786 = vlaneseq
        %v3787 = vshrl.u32 %v3786, 7
        %v3788 = vsub.s32 2, %v3787
        %v3789 = vrot.slane %v3458, %v3788
        %3790 = vset.pattern.permute.xlu0 2
        %3791 = vperm.xlu0 %3790, %v3290
        %v3792 = vpop.permute.xlu0 %3791
        %3794 = vset.pattern.permute.xlu0 2
        %3795 = vperm.xlu0 %3794, %v3291
        %v3796 = vpop.permute.xlu0 %3795
        %v3798 = vmul.f32 %v3789, %v3792
        %v3799 = vmul.f32 %v3789, %v3796
        %v3800 = vadd.f32 %v3784, %v3798
        %v3801 = vadd.f32 %v3785, %v3799
        %3802 = vset.pattern.permute.xlu0 2
        %3803 = vperm.xlu0 %3802, %v3325
        %v3804 = vpop.permute.xlu0 %3803
        %3806 = vset.pattern.permute.xlu0 2
        %3807 = vperm.xlu0 %3806, %v3326
        %v3808 = vpop.permute.xlu0 %3807
        %v3810 = vmul.f32 %v3804, %v3800
        %v3811 = vmul.f32 %v3808, %v3801
        %v3812 = vsel %vm411, %v3810, 0.0
        %v3813 = vsel %vm411, %v3811, 0.0
        %v3814 = vadd.f32 %v3812, %v3813
        %v3815 = vrot.slane %v3814, 4
        %v3816 = vadd.f32 %v3814, %v3815
        %v3817 = vrot.slane %v3816, 2
        %v3818 = vadd.f32 %v3816, %v3817
        %v3819 = vrot.slane %v3818, 1
        %v3820 = vadd.f32 %v3818, %v3819
        %v3821 = vcombine.high %v3520, %v3520
        %v3823 = vmul.f32 %v3156, %v3821
        %v3824 = vadd.f32 %v3820, %v3823
        %v3825 = vlaneseq
        %v3826 = vshrl.u32 %v3825, 7
        %v3827 = vsub.s32 0, %v3826
        %v3828 = vrot.slane %v3824, %v3827
        %v3829 = vsel %vm1009, %v3828, %v3773
        %v3830 = vlaneseq
        %v3831 = vshrl.u32 %v3830, 7
        %v3832 = vsub.s32 1, %v3831
        %v3833 = vrot.slane %v3439, %v3832
        %v3834 = vmul.f32 %v3833, %v3444
        %v3835 = vmul.f32 %v3833, %v3445
        %v3836 = vmul.f32 %v3834, 1.442695
        %v3837 = vpow.pop %v3836
        %v3838 = vmul.f32 %v3835, 1.442695
        %v3839 = vpow.pop %v3838
        %v3840 = vmul.f32 %v3837, %v3800
        %v3841 = vmul.f32 %v3839, %v3801
        %v3842 = vlaneseq
        %v3843 = vshrl.u32 %v3842, 7
        %v3844 = vsub.s32 1, %v3843
        %v3845 = vrot.slane %v3458, %v3844
        %3846 = vset.pattern.permute.xlu0 1
        %3847 = vperm.xlu0 %3846, %v3290
        %v3848 = vpop.permute.xlu0 %3847
        %3850 = vset.pattern.permute.xlu0 1
        %3851 = vperm.xlu0 %3850, %v3291
        %v3852 = vpop.permute.xlu0 %3851
        %v3854 = vmul.f32 %v3845, %v3848
        %v3855 = vmul.f32 %v3845, %v3852
        %v3856 = vadd.f32 %v3840, %v3854
        %v3857 = vadd.f32 %v3841, %v3855
        %3858 = vset.pattern.permute.xlu0 1
        %3859 = vperm.xlu0 %3858, %v3325
        %v3860 = vpop.permute.xlu0 %3859
        %3862 = vset.pattern.permute.xlu0 1
        %3863 = vperm.xlu0 %3862, %v3326
        %v3864 = vpop.permute.xlu0 %3863
        %v3866 = vmul.f32 %v3860, %v3856
        %v3867 = vmul.f32 %v3864, %v3857
        %v3868 = vsel %vm411, %v3866, 0.0
        %v3869 = vsel %vm411, %v3867, 0.0
        %v3870 = vadd.f32 %v3868, %v3869
        %v3871 = vrot.slane %v3870, 4
        %v3872 = vadd.f32 %v3870, %v3871
        %v3873 = vrot.slane %v3872, 2
        %v3874 = vadd.f32 %v3872, %v3873
        %v3875 = vrot.slane %v3874, 1
        %v3876 = vadd.f32 %v3874, %v3875
        %v3878 = vmul.f32 %v3156, %v3764
        %v3879 = vadd.f32 %v3876, %v3878
        %v3880 = vlaneseq
        %v3881 = vshrl.u32 %v3880, 7
        %v3882 = vsub.s32 0, %v3881
        %v3883 = vrot.slane %v3879, %v3882
        %v3884 = vsel %vm952, %v3883, %v3829
        %v3885 = vlaneseq
        %v3886 = vshrl.u32 %v3885, 7
        %v3887 = vsub.s32 0, %v3886
        %v3888 = vrot.slane %v3439, %v3887
        %v3889 = vmul.f32 %v3888, %v3444
        %v3890 = vmul.f32 %v3888, %v3445
        %v3891 = vmul.f32 %v3889, 1.442695
        %v3892 = vpow.pop %v3891
        %v3893 = vmul.f32 %v3890, 1.442695
        %v3894 = vpow.pop %v3893
        %v3895 = vmul.f32 %v3892, %v3856
        %v3896 = vmul.f32 %v3894, %v3857
        %v3897 = vlaneseq
        %v3898 = vshrl.u32 %v3897, 7
        %v3899 = vsub.s32 0, %v3898
        %v3900 = vrot.slane %v3458, %v3899
        %3901 = vset.pattern.permute.xlu0 0
        %3902 = vperm.xlu0 %3901, %v3290
        %v3903 = vpop.permute.xlu0 %3902
        %3905 = vset.pattern.permute.xlu0 0
        %3906 = vperm.xlu0 %3905, %v3291
        %v3907 = vpop.permute.xlu0 %3906
        %v3909 = vmul.f32 %v3900, %v3903
        %v3910 = vmul.f32 %v3900, %v3907
        %v3911 = vadd.f32 %v3895, %v3909
        %v3912 = vadd.f32 %v3896, %v3910
        %3913 = vset.pattern.permute.xlu0 0
        %3914 = vperm.xlu0 %3913, %v3325
        %v3915 = vpop.permute.xlu0 %3914
        %3917 = vset.pattern.permute.xlu0 0
        %3918 = vperm.xlu0 %3917, %v3326
        %v3919 = vpop.permute.xlu0 %3918
        %v3921 = vmul.f32 %v3915, %v3911
        %v3922 = vmul.f32 %v3919, %v3912
        %v3923 = vsel %vm411, %v3921, 0.0
        %v3924 = vsel %vm411, %v3922, 0.0
        %v3925 = vadd.f32 %v3923, %v3924
        %v3926 = vrot.slane %v3925, 4
        %v3927 = vadd.f32 %v3925, %v3926
        %v3928 = vrot.slane %v3927, 2
        %v3929 = vadd.f32 %v3927, %v3928
        %v3930 = vrot.slane %v3929, 1
        %v3931 = vadd.f32 %v3929, %v3930
        %v3932 = vmul.f32 %v3156, %v3196
        %v3933 = vadd.f32 %v3931, %v3932
        %v3934 = vlaneseq
        %v3935 = vshrl.u32 %v3934, 7
        %v3936 = vsub.s32 0, %v3935
        %v3937 = vrot.slane %v3933, %v3936
        %v3938 = vsel %vm874, %v3937, %v3884
        %v3939 = vmul.f32 %v3938, %v3131
        %v3940 = vadd.f32 %v3134, %v3939
        %s3941 = scalar_lea.vmem %s10, 64
        %v3942 = vld [vmem:[%s3941] sm:$0xff]
        %v3943 = vld [vmem:[%s3941 + $0x8] sm:$0xff]
        %v3944 = vld [vmem:[%s3941 + $0x10] sm:$0xff]
        %v3945 = vld [vmem:[%s3941 + $0x18] sm:$0xff]
        %v3946 = vld [vmem:[%s3941 + $0x20] sm:$0xff]
        %v3947 = vld [vmem:[%s3941 + $0x28] sm:$0xff]
        %v3948 = vld [vmem:[%s3941 + $0x30] sm:$0xff]
        %v3949 = vld [vmem:[%s3941 + $0x38] sm:$0xff]
        %v3951 = vsel %vm411, %v3940, 0
        %3953 = vmatprep.subr.mxu0 0.0
        %3954 = vmatpush1.msra.mxu0 %v3942
        %3955 = vmatprep.subr.mxu0 0.0
        %3956 = vmatpush1.msra.mxu0 %v3943
        %3957 = vmatprep.subr.mxu0 0.0
        %3958 = vmatpush1.msra.mxu0 %v3944
        %3959 = vmatprep.subr.mxu0 0.0
        %3960 = vmatpush1.msra.mxu0 %v3945
        %3961 = vmatprep.subr.mxu0 0.0
        %3962 = vmatpush1.msra.mxu0 %v3946
        %3963 = vmatprep.subr.mxu0 0.0
        %3964 = vmatpush1.msra.mxu0 %v3947
        %3965 = vmatprep.subr.mxu0 0.0
        %3966 = vmatpush1.msra.mxu0 %v3948
        %3967 = vmatprep.subr.mxu0 0.0
        %3968 = vmatpush1.msra.mxu0 %v3949
        %3969 = vmatprep.subr.mxu0 0.0
        %3970 = vmatpush1.msra.mxu0 0.0
        %3971 = vmatprep.subr.mxu0 0.0
        %3972 = vmatpush1.msra.mxu0 0.0
        %3973 = vmatprep.subr.mxu0 0.0
        %3974 = vmatpush1.msra.mxu0 0.0
        %3975 = vmatprep.subr.mxu0 0.0
        %3976 = vmatpush1.msra.mxu0 0.0
        %3977 = vmatprep.subr.mxu0 0.0
        %3978 = vmatpush1.msra.mxu0 0.0
        %3979 = vmatprep.subr.mxu0 0.0
        %3980 = vmatpush1.msra.mxu0 0.0
        %3981 = vmatprep.subr.mxu0 0.0
        %3982 = vmatpush1.msra.mxu0 0.0
        %3983 = vmatprep.subr.mxu0 0.0
        %3984 = vmatpush1.msra.mxu0 0.0
        %3985 = vmatprep.subr.mxu0 0.0
        %3986 = vmatpush1.msra.mxu0 0.0
        %3987 = vmatprep.subr.mxu0 0.0
        %3988 = vmatpush1.msra.mxu0 0.0
        %3989 = vmatprep.subr.mxu0 0.0
        %3990 = vmatpush1.msra.mxu0 0.0
        %3991 = vmatprep.subr.mxu0 0.0
        %3992 = vmatpush1.msra.mxu0 0.0
        %3993 = vmatprep.subr.mxu0 0.0
        %3994 = vmatpush1.msra.mxu0 0.0
        %3995 = vmatprep.subr.mxu0 0.0
        %3996 = vmatpush1.msra.mxu0 0.0
        %3997 = vmatprep.subr.mxu0 0.0
        %3998 = vmatpush1.msra.mxu0 0.0
        %3999 = vmatprep.subr.mxu0 0.0
        %4000 = vmatpush1.msra.mxu0 0.0
        %4001 = vmatprep.subr.mxu0 0.0
        %4002 = vmatpush1.msra.mxu0 0.0
        %4003 = vmatprep.subr.mxu0 0.0
        %4004 = vmatpush1.msra.mxu0 0.0
        %4005 = vmatprep.subr.mxu0 0.0
        %4006 = vmatpush1.msra.mxu0 0.0
        %4007 = vmatprep.subr.mxu0 0.0
        %4008 = vmatpush1.msra.mxu0 0.0
        %4009 = vmatprep.subr.mxu0 0.0
        %4010 = vmatpush1.msra.mxu0 0.0
        %4011 = vmatprep.subr.mxu0 0.0
        %4012 = vmatpush1.msra.mxu0 0.0
        %4013 = vmatprep.subr.mxu0 0.0
        %4014 = vmatpush1.msra.mxu0 0.0
        %4015 = vmatprep.subr.mxu0 0.0
        %4016 = vmatpush1.msra.mxu0 0.0
        %4017 = vmatprep.mubr.f32.mxu0 0.0
        %4018 = vmatmul.mubr.f32.gmra.mrb[0].mxu0 %v3951
        %v4019 = vpop.f32.mrb[0].mxu0
        %v4020 = vadd.f32 %v2218, %v4019
        %v4021 = vpop.f32.mrb[0].mxu0
        %4022 = vdwg.mxu0
        %v4023 = vld [vmem:[%s11] sm:$0x1]
        %v4024 = vmul.f32 %v4020, %v4020
        %v4025 = vsel %vm419, %v4024, 0.0
        %4026 = vadd.xlane.f32.xlu0 %v4025
        %v4027 = vpop.xlane.xlu0 %4026
        %v4028 = vmul.f32 %v4027, %v423
        %v4029 = vadd.f32 %v4028, 1e-05
        %v4030 = vrsqrt.pop %v4029
        %v4031 = vmul.f32 %v4020, %v4030
        %v4033 = vlaneseq
        %v4034 = vshrl.u32 %v4033, 7
        %v4035 = vsub.s32 0, %v4034
        %v4036 = vrot.slane %v4023, %v4035
        %v4038 = vmul.f32 %v4031, %v4036
        %4039 = vst.msk [vmem:[%s404] sm:$0xff] %vm419, %v4038
        %s4040 = sand.u32 %s291, 1
        %s4041 = scalar_lea.sflag [#allocation4], %s4040
        %s4042 = sand.u32 %s291, 1
        %s4043 = smul.addr %s4042, 8
        %s4044 = scalar_lea.vmem [#allocation3], %s4043
        // Predicated region
        $region69: #{dna_embedding_caduceus_forward.1} parent=67 // pred_check
          %p4045 = pneg %p301
        $region70: #{dna_embedding_caduceus_forward.1} parent=67 // pred_check_branch
          %4047 = sbr.rel (%p4045) target = $region72
        $region71: #{dna_embedding_caduceus_forward.1} parent=67 // pred_region
          %s4049 = ssub.s32 128, 128
          %4050 = vsyncadd %s4041, %s4049
          %s4051 = smul.addr %s26, 128
          %s4052 = scalar_lea.hbm %s12, %s4051
          %s4054 = sshll.u32 %s4044, 4
          %s4055 = int_to_ptr.vmem [resolvable:$true] %s4054
          %4057 = dma.vmem_to_hbm [thread:$0]  %s4055, 128, %s4052, %s4041
        $region72: #{dna_embedding_caduceus_forward.1} parent=67 // pred_fallthru
          _
      $region68: #{dna_embedding_caduceus_forward.1} parent=5 // pred_fallthru
        _
      %p4058 = scmp.le.s32.totalorder 2, %s21
      // Predicated region
      $region73: #{dna_embedding_caduceus_forward.1} parent=5 // pred_check
        %p4059 = pneg %p4058
      $region74: #{dna_embedding_caduceus_forward.1} parent=5 // pred_check_branch
        %4061 = sbr.rel (%p4059) target = $region76
      $region75: #{dna_embedding_caduceus_forward.1} parent=5 // pred_region
        %s4062 = ssub.s32 %s21, 2
        // Predicated region
        $region77: #{dna_embedding_caduceus_forward.1} parent=75 // pred_check
          %p4063 = pneg %p307
        $region78: #{dna_embedding_caduceus_forward.1} parent=75 // pred_check_branch
          %4065 = sbr.rel (%p4063) target = $region80
        $region79: #{dna_embedding_caduceus_forward.1} parent=75 // pred_region
          %s4066 = sand.u32 %s292, 1
          %s4067 = scalar_lea.sflag [#allocation4], %s4066
          %s4068 = sand.u32 %s292, 1
          %s4069 = smul.addr %s4068, 8
          %s4070 = scalar_lea.vmem [#allocation3], %s4069
          %4071 = dma.done %s4067, 128
        $region80: #{dna_embedding_caduceus_forward.1} parent=75 // pred_fallthru
          _
      $region76: #{dna_embedding_caduceus_forward.1} parent=5 // pred_fallthru
        _
    $region6: #{dna_embedding_caduceus_forward.1} parent=1 // loop_footer
      %s25 = sadd.s32 1, %s21
    $region7: #{dna_embedding_caduceus_forward.1} parent=1 // loop_footer_branch
      %20 = sbr.rel target = $region3
    $region8: #{dna_embedding_caduceus_forward.1} parent=1 // loop_exit
      _
    %4072 = vsyncpa [#allocation4], 1
    %s4073 = scalar_lea.sflag [#allocation4], 1
    %4074 = vsyncpa %s4073, 1

</llo_original>
